<compile_context>
chip_gen: v5e
topology: v5e:2x2
jax: 0.10.0
libtpu: 0.0.40
codegen_flags: <defaults>
</compile_context>

<pallas_src>
import jax
import jax.numpy as jnp
from jax.experimental import pallas as pl
from jax.experimental.pallas import tpu as pltpu

B, C_IN, H, W = 2, 3, 32, 32
C_OUT = 24
NUM_EXPERTS = 10
ROUTER_DIM = C_IN * H * W          # 3072
K_IM2COL = C_IN * 9                # 27
HW = H * W                         # 1024
FC1_IN = C_OUT * H * W             # 24576
FC1_OUT = 128
NUM_CLASSES = 10


# ------------- Kernel 1: router linear + softmax + top1/loss (fused) -------------
def _router_kernel(x_ref, w_ref, idx_ref, rw_ref, loss_ref):
    # x: (B, 3072), w: (E, 3072) lane-dense; NT matmul -> (B, E)
    logits = jax.lax.dot_general(
        x_ref[...], w_ref[...],
        dimension_numbers=(((1,), (1,)), ((), ())),
        preferred_element_type=jnp.float32)
    m = jnp.max(logits, axis=-1, keepdims=True)
    e = jnp.exp(logits - m)
    probs = e / jnp.sum(e, axis=-1, keepdims=True)            # (B, E)

    # aux router loss: MSE(mean_b probs, 1/E)
    avg = jnp.mean(probs, axis=0, keepdims=True)              # (1, E)
    loss_ref[0, 0] = jnp.mean((avg - 1.0 / NUM_EXPERTS) ** 2)

    # top-1 expert / weight of batch element 0 (PyTorch quirk)
    p0 = probs[0:1, :]                                        # (1, E)
    maxv = jnp.max(p0)
    rw_ref[0, 0] = maxv
    lane = jax.lax.broadcasted_iota(jnp.int32, p0.shape, 1)
    idx_ref[0] = jnp.min(jnp.where(p0 == maxv, lane, NUM_EXPERTS)).astype(jnp.int32)


def router_select(x_flat, router_w):
    return pl.pallas_call(
        _router_kernel,
        out_shape=(
            jax.ShapeDtypeStruct((1,), jnp.int32),       # expert_idx
            jax.ShapeDtypeStruct((1, 1), jnp.float32),   # routing_weight
            jax.ShapeDtypeStruct((1, 1), jnp.float32),   # router_loss
        ),
        in_specs=[
            pl.BlockSpec(memory_space=pltpu.MemorySpace.VMEM),
            pl.BlockSpec(memory_space=pltpu.MemorySpace.VMEM),
        ],
        out_specs=(
            pl.BlockSpec(memory_space=pltpu.MemorySpace.SMEM),
            pl.BlockSpec(memory_space=pltpu.MemorySpace.SMEM),
            pl.BlockSpec(memory_space=pltpu.MemorySpace.SMEM),
        ),
    )(x_flat, router_w)


# ------- Kernel 2: expert conv as W @ patches (lane-dense out) + bias + scale + relu -------
def _conv_kernel(idx_ref, scale_ref, patches_ref, w_ref, b_ref, out_ref):
    del idx_ref  # only used by the index_maps (scalar prefetch)
    acc = jnp.dot(w_ref[0], patches_ref[0],                  # (24,27)@(27,1024)
                  preferred_element_type=jnp.float32)
    acc = (acc + b_ref[0]) * scale_ref[0, 0]
    out_ref[0] = jnp.maximum(acc, 0.0)


def moe_conv(expert_idx, scale, patches, experts_w_flat, experts_b_col):
    b = patches.shape[0]
    return pl.pallas_call(
        _conv_kernel,
        out_shape=jax.ShapeDtypeStruct((b, C_OUT, HW), jnp.float32),
        grid_spec=pltpu.PrefetchScalarGridSpec(
            num_scalar_prefetch=1,
            grid=(b,),
            in_specs=[
                pl.BlockSpec((1, 1), lambda i, idx: (0, 0),
                             memory_space=pltpu.MemorySpace.SMEM),
                pl.BlockSpec((1, K_IM2COL, HW), lambda i, idx: (i, 0, 0)),
                pl.BlockSpec((1, C_OUT, K_IM2COL), lambda i, idx: (idx[0], 0, 0)),
                pl.BlockSpec((1, C_OUT, 1), lambda i, idx: (idx[0], 0, 0)),
            ],
            out_specs=pl.BlockSpec((1, C_OUT, HW), lambda i, idx: (i, 0, 0)),
        ),
        compiler_params=pltpu.CompilerParams(dimension_semantics=("parallel",)),
    )(expert_idx, scale, patches, experts_w_flat, experts_b_col)


# ------------- Kernel 3: fused MLP: fc1 (K-tiled, bf16 weights) + relu + fc2 -------------
def _mlp_kernel(x_ref, w1_ref, b1_ref, w2_ref, b2_ref, o_ref, acc_ref):
    k = pl.program_id(0)

    @pl.when(k == 0)
    def _():
        acc_ref[...] = jnp.zeros_like(acc_ref)

    acc_ref[...] += jnp.dot(x_ref[...].astype(jnp.bfloat16), w1_ref[...],
                            preferred_element_type=jnp.float32)

    @pl.when(k == pl.num_programs(0) - 1)
    def _():
        h = jnp.maximum(acc_ref[...] + b1_ref[...], 0.0)
        o_ref[...] = (jnp.dot(h, w2_ref[...],
                              preferred_element_type=jnp.float32) + b2_ref[...])


def mlp_fused(feat, w1_t_bf16, b1_row, w2_t, b2_row, tk=8192):
    b, kdim = feat.shape
    n_out = w2_t.shape[1]
    assert kdim % tk == 0
    return pl.pallas_call(
        _mlp_kernel,
        out_shape=jax.ShapeDtypeStruct((b, n_out), jnp.float32),
        grid=(kdim // tk,),
        in_specs=[
            pl.BlockSpec((b, tk), lambda k: (0, k)),
            pl.BlockSpec((tk, FC1_OUT), lambda k: (k, 0)),
            pl.BlockSpec((1, FC1_OUT), lambda k: (0, 0)),
            pl.BlockSpec((FC1_OUT, n_out), lambda k: (0, 0)),
            pl.BlockSpec((1, n_out), lambda k: (0, 0)),
        ],
        out_specs=pl.BlockSpec((b, n_out), lambda k: (0, 0)),
        scratch_shapes=[pltpu.VMEM((b, FC1_OUT), jnp.float32)],
        compiler_params=pltpu.CompilerParams(dimension_semantics=("arbitrary",)),
    )(feat, w1_t_bf16, b1_row, w2_t, b2_row)


# ---------------- Parameters (deterministic, PyTorch-like init) ----------------
def init_params(key):
    keys = jax.random.split(key, 7)
    lim_r = float(jnp.sqrt(6.0 / (ROUTER_DIM + NUM_EXPERTS)))       # xavier_uniform
    router_w = jax.random.uniform(keys[0], (NUM_EXPERTS, ROUTER_DIM),
                                  jnp.float32, -lim_r, lim_r)
    bc = 1.0 / float(jnp.sqrt(C_IN * 3 * 3))
    experts_w = jax.random.uniform(keys[1], (NUM_EXPERTS, C_OUT, C_IN, 3, 3),
                                   jnp.float32, -bc, bc)
    experts_b = jax.random.uniform(keys[2], (NUM_EXPERTS, C_OUT),
                                   jnp.float32, -bc, bc)
    b1 = 1.0 / float(jnp.sqrt(FC1_IN))
    fc1_w = jax.random.uniform(keys[3], (FC1_OUT, FC1_IN), jnp.float32, -b1, b1)
    fc1_b = jax.random.uniform(keys[4], (FC1_OUT,), jnp.float32, -b1, b1)
    b2 = 1.0 / float(jnp.sqrt(FC1_OUT))
    fc2_w = jax.random.uniform(keys[5], (NUM_CLASSES, FC1_OUT), jnp.float32, -b2, b2)
    fc2_b = jax.random.uniform(keys[6], (NUM_CLASSES,), jnp.float32, -b2, b2)
    return {
        # router weight kept lane-dense (E, D)
        "router_w": router_w,                                           # (10, 3072)
        # expert conv weights/bias in im2col kernel layout
        "experts_w_flat": experts_w.reshape(NUM_EXPERTS, C_OUT, K_IM2COL),
        "experts_b_col": experts_b.reshape(NUM_EXPERTS, C_OUT, 1),
        # fc1: bf16 weight stream for the kernel, f32 master for the reference
        "fc1_w_t_bf16": fc1_w.T.astype(jnp.bfloat16),                   # (24576, 128)
        "fc1_w_t": fc1_w.T,
        "fc1_b_row": fc1_b.reshape(1, FC1_OUT),
        "fc2_w_t": fc2_w.T,                                             # (128, 10)
        "fc2_b_row": fc2_b.reshape(1, NUM_CLASSES),
        # f32 originals for the pure-JAX reference
        "experts_w": experts_w, "experts_b": experts_b,
    }


# ---------------- Forward (glue + Pallas kernels) ----------------
def routed_cnn_forward(params, x, return_router_loss=False):
    b = x.shape[0]
    x_flat = x.reshape(b, -1)

    expert_idx, routing_weight, router_loss = router_select(x_flat, params["router_w"])

    # im2col glue: patches[b, c*9 + kh*3 + kw, h*W + w] = x_pad[b, c, h+kh, w+kw]
    x_pad = jnp.pad(x, ((0, 0), (0, 0), (1, 1), (1, 1)))
    taps = [x_pad[:, :, kh:kh + H, kw:kw + W] for kh in range(3) for kw in range(3)]
    patches = jnp.stack(taps, axis=2).reshape(b, K_IM2COL, HW)          # (B, 27, 1024)

    conv_out = moe_conv(expert_idx, routing_weight, patches,
                        params["experts_w_flat"], params["experts_b_col"])  # (B, 24, 1024)

    # already NCHW-flatten order -> matches torch x.view(-1, 24*32*32)
    feat = conv_out.reshape(b, FC1_IN)

    out = mlp_fused(feat, params["fc1_w_t_bf16"], params["fc1_b_row"],
                    params["fc2_w_t"], params["fc2_b_row"])
    if return_router_loss:
        return out, router_loss[0, 0]
    return out


# ---------------- Pure-JAX f32 reference for a sanity check ----------------
def reference_forward(params, x):
    b = x.shape[0]
    logits = x.reshape(b, -1) @ params["router_w"].T
    probs = jax.nn.softmax(logits, axis=-1)
    idx = jnp.argmax(probs[0])
    rw = jnp.max(probs[0])
    w_sel = jnp.take(params["experts_w"], idx, axis=0)
    b_sel = jnp.take(params["experts_b"], idx, axis=0)
    conv = jax.lax.conv_general_dilated(
        x, w_sel, (1, 1), ((1, 1), (1, 1)),
        dimension_numbers=("NCHW", "OIHW", "NCHW"))
    conv = jnp.maximum((conv + b_sel[None, :, None, None]) * rw, 0.0)
    feat = conv.reshape(b, -1)
    h1 = jnp.maximum(feat @ params["fc1_w_t"] + params["fc1_b_row"], 0.0)
    return h1 @ params["fc2_w_t"] + params["fc2_b_row"]


if __name__ == "__main__":
    key = jax.random.PRNGKey(0)
    pkey, xkey = jax.random.split(key)
    params = init_params(pkey)
    x = jax.random.normal(xkey, (B, C_IN, H, W), jnp.float32)

    fwd = jax.jit(routed_cnn_forward)
    out = jax.block_until_ready(fwd(params, x))
    assert out.shape == (B, NUM_CLASSES)

    ref = reference_forward(params, x)
    rel_err = float(jnp.max(jnp.abs(out - ref)) / (jnp.max(jnp.abs(ref)) + 1e-6))
    assert rel_err < 5e-2, f"mismatch vs reference: rel err {rel_err}"

    print("KERNEL_OK")
</pallas_src>

<mosaic_0001>
module attributes {stable_mosaic.version = 11 : i64} {
  func.func @_router_kernel(%arg0: memref<2x3072xf32, #tpu.memory_space<vmem>>, %arg1: memref<10x3072xf32, #tpu.memory_space<vmem>>, %arg2: memref<1xi32, #tpu.memory_space<smem>>, %arg3: memref<1x1xf32, #tpu.memory_space<smem>>, %arg4: memref<1x1xf32, #tpu.memory_space<smem>>) attributes {dimension_semantics = [], scalar_prefetch = 0 : i64, scratch_operands = 0 : i64, tpu.core_type = #tpu.core_type<tc>} {
    %c0 = arith.constant 0 : index
    %c0_0 = arith.constant 0 : index
    %0 = vector.load %arg0[%c0, %c0_0] : memref<2x3072xf32, #tpu.memory_space<vmem>>, vector<2x3072xf32>
    %c0_1 = arith.constant 0 : index
    %c0_2 = arith.constant 0 : index
    %1 = vector.load %arg1[%c0_1, %c0_2] : memref<10x3072xf32, #tpu.memory_space<vmem>>, vector<10x3072xf32>
    %cst = arith.constant dense<0.000000e+00> : vector<2x10xf32>
    %2 = tpu.matmul %0, %1, %cst {dimension_numbers = #tpu.dot_dimension_numbers<[1], [1], [0], [0], [0, 0, 1, 0], [], []>} : vector<2x3072xf32>, vector<10x3072xf32>, vector<2x10xf32> -> vector<2x10xf32>
    %cst_3 = arith.constant dense<0xFF800000> : vector<2xf32>
    %3 = vector.multi_reduction <maximumf>, %2, %cst_3 [1] : vector<2x10xf32> to vector<2xf32>
    %4 = vector.shape_cast %3 : vector<2xf32> to vector<2x1xf32>
    %5 = vector.broadcast %4 : vector<2x1xf32> to vector<2x10xf32>
    %6 = arith.subf %2, %5 : vector<2x10xf32>
    %7 = math.exp %6 : vector<2x10xf32>
    %cst_4 = arith.constant dense<0.000000e+00> : vector<2xf32>
    %8 = vector.multi_reduction <add>, %7, %cst_4 [1] : vector<2x10xf32> to vector<2xf32>
    %9 = vector.shape_cast %8 : vector<2xf32> to vector<2x1xf32>
    %10 = vector.broadcast %9 : vector<2x1xf32> to vector<2x10xf32>
    %11 = arith.divf %7, %10 : vector<2x10xf32>
    %cst_5 = arith.constant dense<0.000000e+00> : vector<10xf32>
    %12 = vector.multi_reduction <add>, %11, %cst_5 [0] : vector<2x10xf32> to vector<10xf32>
    %13 = vector.shape_cast %12 : vector<10xf32> to vector<1x10xf32>
    %cst_6 = arith.constant 2.000000e+00 : f32
    %14 = vector.broadcast %cst_6 : f32 to vector<1x10xf32>
    %15 = arith.divf %13, %14 : vector<1x10xf32>
    %cst_7 = arith.constant 1.000000e-01 : f32
    %16 = vector.broadcast %cst_7 : f32 to vector<1x10xf32>
    %17 = arith.subf %15, %16 : vector<1x10xf32>
    %18 = arith.mulf %17, %17 : vector<1x10xf32>
    %19 = vector.shape_cast %18 : vector<1x10xf32> to vector<1x1x10xf32>
    %cst_8 = arith.constant dense<0.000000e+00> : vector<1xf32>
    %20 = vector.multi_reduction <add>, %19, %cst_8 [1, 2] : vector<1x1x10xf32> to vector<1xf32>
    %21 = vector.shape_cast %20 : vector<1xf32> to vector<1x1x1xf32>
    %22 = vector.extract %21[0, 0, 0] : f32 from vector<1x1x1xf32>
    %cst_9 = arith.constant 1.000000e+01 : f32
    %23 = arith.divf %22, %cst_9 : f32
    %c0_10 = arith.constant 0 : index
    %c0_11 = arith.constant 0 : index
    %24 = memref.load %arg4[%c0_10, %c0_11] : memref<1x1xf32, #tpu.memory_space<smem>>
    memref.store %23, %arg4[%c0_10, %c0_11] : memref<1x1xf32, #tpu.memory_space<smem>>
    %25 = vector.extract_strided_slice %11 {offsets = [0, 0], sizes = [1, 10], strides = [1, 1]} : vector<2x10xf32> to vector<1x10xf32>
    %26 = vector.shape_cast %25 : vector<1x10xf32> to vector<1x1x10xf32>
    %cst_12 = arith.constant dense<0xFF800000> : vector<1xf32>
    %27 = vector.multi_reduction <maximumf>, %26, %cst_12 [1, 2] : vector<1x1x10xf32> to vector<1xf32>
    %28 = vector.shape_cast %27 : vector<1xf32> to vector<1x1x1xf32>
    %29 = vector.extract %28[0, 0, 0] : f32 from vector<1x1x1xf32>
    %c0_13 = arith.constant 0 : index
    %c0_14 = arith.constant 0 : index
    %30 = memref.load %arg3[%c0_13, %c0_14] : memref<1x1xf32, #tpu.memory_space<smem>>
    memref.store %29, %arg3[%c0_13, %c0_14] : memref<1x1xf32, #tpu.memory_space<smem>>
    %31 = tpu.iota {dimensions = array<i32: 1>} : vector<1x10xi32>
    %32 = vector.broadcast %29 : f32 to vector<1x10xf32>
    %33 = arith.cmpf oeq, %25, %32 : vector<1x10xf32>
    %c10_i32 = arith.constant 10 : i32
    %34 = vector.broadcast %c10_i32 : i32 to vector<1x10xi32>
    %35 = arith.select %33, %31, %34 : vector<1x10xi1>, vector<1x10xi32>
    %36 = vector.shape_cast %35 : vector<1x10xi32> to vector<1x1x10xi32>
    %cst_15 = arith.constant dense<2147483647> : vector<1xi32>
    %37 = vector.multi_reduction <minsi>, %36, %cst_15 [1, 2] : vector<1x1x10xi32> to vector<1xi32>
    %38 = vector.shape_cast %37 : vector<1xi32> to vector<1x1x1xi32>
    %39 = vector.extract %38[0, 0, 0] : i32 from vector<1x1x1xi32>
    %c0_16 = arith.constant 0 : index
    %40 = memref.load %arg2[%c0_16] : memref<1xi32, #tpu.memory_space<smem>>
    memref.store %39, %arg2[%c0_16] : memref<1xi32, #tpu.memory_space<smem>>
    return
  }
}

module attributes {stable_mosaic.version = 11 : i64} {
  func.func @_conv_kernel(%arg0: i32, %arg1: memref<1xi32, #tpu.memory_space<smem>>, %arg2: memref<1x1xf32, #tpu.memory_space<smem>>, %arg3: memref<1x27x1024xf32, #tpu.memory_space<vmem>>, %arg4: memref<1x24x27xf32, #tpu.memory_space<vmem>>, %arg5: memref<1x24x1xf32, #tpu.memory_space<vmem>>, %arg6: memref<1x24x1024xf32, #tpu.memory_space<vmem>>) attributes {dimension_semantics = [#tpu.dimension_semantics<parallel>], iteration_bounds = array<i64: 2>, scalar_prefetch = 1 : i64, scratch_operands = 0 : i64, tpu.core_type = #tpu.core_type<tc>, window_params = [{transform_indices = @transform_0, window_bounds = array<i64: 1, 1>}, {transform_indices = @transform_1, window_bounds = array<i64: 1, 27, 1024>}, {transform_indices = @transform_2, window_bounds = array<i64: 1, 24, 27>}, {transform_indices = @transform_3, window_bounds = array<i64: 1, 24, 1>}, {transform_indices = @transform_4, window_bounds = array<i64: 1, 24, 1024>}]} {
    %c0 = arith.constant 0 : index
    %c0_0 = arith.constant 0 : index
    %c0_1 = arith.constant 0 : index
    %0 = vector.load %arg4[%c0, %c0_0, %c0_1] : memref<1x24x27xf32, #tpu.memory_space<vmem>>, vector<1x24x27xf32>
    %1 = vector.shape_cast %0 : vector<1x24x27xf32> to vector<24x27xf32>
    %c0_2 = arith.constant 0 : index
    %c0_3 = arith.constant 0 : index
    %c0_4 = arith.constant 0 : index
    %2 = vector.load %arg3[%c0_2, %c0_3, %c0_4] : memref<1x27x1024xf32, #tpu.memory_space<vmem>>, vector<1x27x1024xf32>
    %3 = vector.shape_cast %2 : vector<1x27x1024xf32> to vector<27x1024xf32>
    %cst = arith.constant dense<0.000000e+00> : vector<24x1024xf32>
    %4 = tpu.matmul %1, %3, %cst {dimension_numbers = #tpu.dot_dimension_numbers<[1], [0], [0], [1], [0, 0, 1, 1], [], []>} : vector<24x27xf32>, vector<27x1024xf32>, vector<24x1024xf32> -> vector<24x1024xf32>
    %c0_5 = arith.constant 0 : index
    %c0_6 = arith.constant 0 : index
    %c0_7 = arith.constant 0 : index
    %5 = vector.load %arg5[%c0_5, %c0_6, %c0_7] : memref<1x24x1xf32, #tpu.memory_space<vmem>>, vector<1x24x1xf32>
    %6 = vector.shape_cast %5 : vector<1x24x1xf32> to vector<24x1xf32>
    %7 = vector.broadcast %6 : vector<24x1xf32> to vector<24x1024xf32>
    %8 = arith.addf %4, %7 : vector<24x1024xf32>
    %c0_8 = arith.constant 0 : index
    %c0_9 = arith.constant 0 : index
    %9 = memref.load %arg2[%c0_8, %c0_9] : memref<1x1xf32, #tpu.memory_space<smem>>
    %10 = vector.broadcast %9 : f32 to vector<24x1024xf32>
    %11 = arith.mulf %8, %10 : vector<24x1024xf32>
    %cst_10 = arith.constant 0.000000e+00 : f32
    %12 = vector.broadcast %cst_10 : f32 to vector<24x1024xf32>
    %13 = arith.maximumf %11, %12 : vector<24x1024xf32>
    %c0_11 = arith.constant 0 : index
    %c0_12 = arith.constant 0 : index
    %c0_13 = arith.constant 0 : index
    %14 = vector.load %arg6[%c0_11, %c0_12, %c0_13] : memref<1x24x1024xf32, #tpu.memory_space<vmem>>, vector<1x24x1024xf32>
    %15 = vector.shape_cast %14 : vector<1x24x1024xf32> to vector<24x1024xf32>
    %16 = vector.shape_cast %13 : vector<24x1024xf32> to vector<1x24x1024xf32>
    tpu.vector_store %arg6[%c0_11, %c0_12, %c0_13], %16 {strides = array<i32>} : memref<1x24x1024xf32, #tpu.memory_space<vmem>>, vector<1x24x1024xf32>,
    return
  }
  func.func @transform_0(%arg0: i32, %arg1: memref<1xi32, #tpu.memory_space<smem>>) -> (i32, i32) {
    %c0_i32 = arith.constant 0 : i32
    %c0_i32_0 = arith.constant 0 : i32
    %c0_i32_1 = arith.constant 0 : i32
    return %c0_i32, %c0_i32_0 : i32, i32
  }
  func.func @transform_1(%arg0: i32, %arg1: memref<1xi32, #tpu.memory_space<smem>>) -> (i32, i32, i32) {
    %c0_i32 = arith.constant 0 : i32
    %c0_i32_0 = arith.constant 0 : i32
    %c0_i32_1 = arith.constant 0 : i32
    return %arg0, %c0_i32, %c0_i32_0 : i32, i32, i32
  }
  func.func @transform_2(%arg0: i32, %arg1: memref<1xi32, #tpu.memory_space<smem>>) -> (i32, i32, i32) {
    %c0 = arith.constant 0 : index
    %0 = memref.load %arg1[%c0] : memref<1xi32, #tpu.memory_space<smem>>
    %c0_i32 = arith.constant 0 : i32
    %c0_i32_0 = arith.constant 0 : i32
    %c0_i32_1 = arith.constant 0 : i32
    return %0, %c0_i32, %c0_i32_0 : i32, i32, i32
  }
  func.func @transform_3(%arg0: i32, %arg1: memref<1xi32, #tpu.memory_space<smem>>) -> (i32, i32, i32) {
    %c0 = arith.constant 0 : index
    %0 = memref.load %arg1[%c0] : memref<1xi32, #tpu.memory_space<smem>>
    %c0_i32 = arith.constant 0 : i32
    %c0_i32_0 = arith.constant 0 : i32
    %c0_i32_1 = arith.constant 0 : i32
    return %0, %c0_i32, %c0_i32_0 : i32, i32, i32
  }
  func.func @transform_4(%arg0: i32, %arg1: memref<1xi32, #tpu.memory_space<smem>>) -> (i32, i32, i32) {
    %c0_i32 = arith.constant 0 : i32
    %c0_i32_0 = arith.constant 0 : i32
    %c0_i32_1 = arith.constant 0 : i32
    return %arg0, %c0_i32, %c0_i32_0 : i32, i32, i32
  }
}

module attributes {stable_mosaic.version = 11 : i64} {
  func.func @_mlp_kernel(%arg0: i32, %arg1: memref<2x8192xf32, #tpu.memory_space<vmem>>, %arg2: memref<8192x128xbf16, #tpu.memory_space<vmem>>, %arg3: memref<1x128xf32, #tpu.memory_space<vmem>>, %arg4: memref<128x10xf32, #tpu.memory_space<vmem>>, %arg5: memref<1x10xf32, #tpu.memory_space<vmem>>, %arg6: memref<2x10xf32, #tpu.memory_space<vmem>>, %arg7: memref<2x128xf32, #tpu.memory_space<vmem>>) attributes {dimension_semantics = [#tpu.dimension_semantics<arbitrary>], iteration_bounds = array<i64: 3>, scalar_prefetch = 0 : i64, scratch_operands = 1 : i64, tpu.core_type = #tpu.core_type<tc>, window_params = [{transform_indices = @transform_0, window_bounds = array<i64: 2, 8192>}, {transform_indices = @transform_1, window_bounds = array<i64: 8192, 128>}, {pipeline_mode = #tpu.pipeline_mode<synchronous>, transform_indices = @transform_2, window_bounds = array<i64: 1, 128>}, {pipeline_mode = #tpu.pipeline_mode<synchronous>, transform_indices = @transform_3, window_bounds = array<i64: 128, 10>}, {pipeline_mode = #tpu.pipeline_mode<synchronous>, transform_indices = @transform_4, window_bounds = array<i64: 1, 10>}, {pipeline_mode = #tpu.pipeline_mode<synchronous>, transform_indices = @transform_5, window_bounds = array<i64: 2, 10>}]} {
    %c0_i32 = arith.constant 0 : i32
    %0 = arith.cmpi eq, %arg0, %c0_i32 : i32
    %1 = arith.extui %0 : i1 to i32
    %c0_i32_0 = arith.constant 0 : i32
    %2 = arith.cmpi ne, %1, %c0_i32_0 : i32
    scf.if %2 {
      %cst_9 = arith.constant 0.000000e+00 : f32
      %13 = vector.broadcast %cst_9 : f32 to vector<2x128xf32>
      %c0_10 = arith.constant 0 : index
      %c0_11 = arith.constant 0 : index
      %14 = vector.load %arg7[%c0_10, %c0_11] : memref<2x128xf32, #tpu.memory_space<vmem>>, vector<2x128xf32>
      tpu.vector_store %arg7[%c0_10, %c0_11], %13 {strides = array<i32>} : memref<2x128xf32, #tpu.memory_space<vmem>>, vector<2x128xf32>,
    } else {
    }
    %c0 = arith.constant 0 : index
    %c0_1 = arith.constant 0 : index
    %3 = vector.load %arg7[%c0, %c0_1] : memref<2x128xf32, #tpu.memory_space<vmem>>, vector<2x128xf32>
    %c0_2 = arith.constant 0 : index
    %c0_3 = arith.constant 0 : index
    %4 = vector.load %arg1[%c0_2, %c0_3] : memref<2x8192xf32, #tpu.memory_space<vmem>>, vector<2x8192xf32>
    %5 = arith.truncf %4 : vector<2x8192xf32> to vector<2x8192xbf16>
    %c0_4 = arith.constant 0 : index
    %c0_5 = arith.constant 0 : index
    %6 = vector.load %arg2[%c0_4, %c0_5] : memref<8192x128xbf16, #tpu.memory_space<vmem>>, vector<8192x128xbf16>
    %cst = arith.constant dense<0.000000e+00> : vector<2x128xf32>
    %7 = tpu.matmul %5, %6, %cst {dimension_numbers = #tpu.dot_dimension_numbers<[1], [0], [0], [1], [0, 0, 1, 1], [], []>} : vector<2x8192xbf16>, vector<8192x128xbf16>, vector<2x128xf32> -> vector<2x128xf32>
    %8 = arith.addf %3, %7 : vector<2x128xf32>
    %c0_6 = arith.constant 0 : index
    %c0_7 = arith.constant 0 : index
    %9 = vector.load %arg7[%c0_6, %c0_7] : memref<2x128xf32, #tpu.memory_space<vmem>>, vector<2x128xf32>
    tpu.vector_store %arg7[%c0_6, %c0_7], %8 {strides = array<i32>} : memref<2x128xf32, #tpu.memory_space<vmem>>, vector<2x128xf32>,
    %c2_i32 = arith.constant 2 : i32
    %10 = arith.cmpi eq, %arg0, %c2_i32 : i32
    %11 = arith.extui %10 : i1 to i32
    %c0_i32_8 = arith.constant 0 : i32
    %12 = arith.cmpi ne, %11, %c0_i32_8 : i32
    scf.if %12 {
      %c0_9 = arith.constant 0 : index
      %c0_10 = arith.constant 0 : index
      %13 = vector.load %arg7[%c0_9, %c0_10] : memref<2x128xf32, #tpu.memory_space<vmem>>, vector<2x128xf32>
      %c0_11 = arith.constant 0 : index
      %c0_12 = arith.constant 0 : index
      %14 = vector.load %arg3[%c0_11, %c0_12] : memref<1x128xf32, #tpu.memory_space<vmem>>, vector<1x128xf32>
      %15 = vector.broadcast %14 : vector<1x128xf32> to vector<2x128xf32>
      %16 = arith.addf %13, %15 : vector<2x128xf32>
      %cst_13 = arith.constant 0.000000e+00 : f32
      %17 = vector.broadcast %cst_13 : f32 to vector<2x128xf32>
      %18 = arith.maximumf %16, %17 : vector<2x128xf32>
      %c0_14 = arith.constant 0 : index
      %c0_15 = arith.constant 0 : index
      %19 = vector.load %arg4[%c0_14, %c0_15] : memref<128x10xf32, #tpu.memory_space<vmem>>, vector<128x10xf32>
      %cst_16 = arith.constant dense<0.000000e+00> : vector<2x10xf32>
      %20 = tpu.matmul %18, %19, %cst_16 {dimension_numbers = #tpu.dot_dimension_numbers<[1], [0], [0], [1], [0, 0, 1, 1], [], []>} : vector<2x128xf32>, vector<128x10xf32>, vector<2x10xf32> -> vector<2x10xf32>
      %c0_17 = arith.constant 0 : index
      %c0_18 = arith.constant 0 : index
      %21 = vector.load %arg5[%c0_17, %c0_18] : memref<1x10xf32, #tpu.memory_space<vmem>>, vector<1x10xf32>
      %22 = vector.broadcast %21 : vector<1x10xf32> to vector<2x10xf32>
      %23 = arith.addf %20, %22 : vector<2x10xf32>
      %c0_19 = arith.constant 0 : index
      %c0_20 = arith.constant 0 : index
      %24 = vector.load %arg6[%c0_19, %c0_20] : memref<2x10xf32, #tpu.memory_space<vmem>>, vector<2x10xf32>
      tpu.vector_store %arg6[%c0_19, %c0_20], %23 {strides = array<i32>} : memref<2x10xf32, #tpu.memory_space<vmem>>, vector<2x10xf32>,
    } else {
    }
    return
  }
  func.func @transform_0(%arg0: i32) -> (i32, i32) {
    %c0_i32 = arith.constant 0 : i32
    %c0_i32_0 = arith.constant 0 : i32
    return %c0_i32, %arg0 : i32, i32
  }
  func.func @transform_1(%arg0: i32) -> (i32, i32) {
    %c0_i32 = arith.constant 0 : i32
    %c0_i32_0 = arith.constant 0 : i32
    return %arg0, %c0_i32 : i32, i32
  }
  func.func @transform_2(%arg0: i32) -> (i32, i32) {
    %c0_i32 = arith.constant 0 : i32
    %c0_i32_0 = arith.constant 0 : i32
    %c0_i32_1 = arith.constant 0 : i32
    return %c0_i32, %c0_i32_0 : i32, i32
  }
  func.func @transform_3(%arg0: i32) -> (i32, i32) {
    %c0_i32 = arith.constant 0 : i32
    %c0_i32_0 = arith.constant 0 : i32
    %c0_i32_1 = arith.constant 0 : i32
    return %c0_i32, %c0_i32_0 : i32, i32
  }
  func.func @transform_4(%arg0: i32) -> (i32, i32) {
    %c0_i32 = arith.constant 0 : i32
    %c0_i32_0 = arith.constant 0 : i32
    %c0_i32_1 = arith.constant 0 : i32
    return %c0_i32, %c0_i32_0 : i32, i32
  }
  func.func @transform_5(%arg0: i32) -> (i32, i32) {
    %c0_i32 = arith.constant 0 : i32
    %c0_i32_0 = arith.constant 0 : i32
    %c0_i32_1 = arith.constant 0 : i32
    return %c0_i32, %c0_i32_0 : i32, i32
  }
}

</mosaic_0001>

<llo_original>
// kernel: routed_cnn_forward.4
$region0: #{routed_cnn_forward.4}
  #allocation0 [shape = 'u32[]', space=smem, size = 0x4, offset = 0x4, fixed_abs, tag = 'smem constant byte address 0x4 - core index']
  #allocation1 [shape = 'u32[72,128]{1,0:T(1,128)}', space=vmem, size = 0x9000, scoped, tag = 'internal scratch']
  #allocation2 [shape = 's32[1]{0}', space=sflag, size = 0x4, scoped, tag = 'scoped memory for routed_cnn_forward.4']
  #allocation3 [shape = 's32[1]{0:T(128)S(6)}', space=smem, size = 0x200, scoped, tag = 'prefetched SMEM operand 0']
  #allocation4 [shape = 'f32[1,1]{1,0:T(1,128)S(6)}', space=smem, size = 0x200, scoped, tag = 'scoped memory for routed_cnn_forward.4']
  %s0 = inlined_call_operand.<no memory space> [shape: s32[1], index: 0, kind: input, shape index: {}]
  %s1 = inlined_call_operand.<no memory space> [shape: f32[1,1], index: 1, kind: input, shape index: {}]
  %s2 = inlined_call_operand.vmem [shape: f32[2,27,1024], index: 2, kind: input, shape index: {}]
  %s3 = inlined_call_operand.hbm [shape: f32[10,24,27], index: 3, kind: input, shape index: {}]
  %s4 = inlined_call_operand.vmem [shape: f32[10,24,1], index: 4, kind: input, shape index: {}]
  %s5 = inlined_call_operand.vmem [shape: f32[2,24,1024], index: 5, kind: output, shape index: {}]
  %s6 = sld [smem:[#allocation0]]
  $region53: #{routed_cnn_forward.4} parent=0
    _
  %s8 = ssub.s32 1, %s6
  %s9 = scalar_select 0, %s8, %s6
  %10 = sst [smem:[#allocation3]] %s0
  %11 = sst [smem:[#allocation4]] %s1
  $region1: #{routed_cnn_forward.4} parent=0
    #allocation5 [shape = 'u8[12288]{0}', space=vmem, size = 0x3000, scoped, tag = 'input window, operand 3, single buffered']
    #allocation6 [shape = 's32[2]{0}', space=sflag, size = 0x8, scoped, tag = 'scoped memory for routed_cnn_forward.4']
    %12 = vsyncpa [#allocation6], 0
    loop: start=0, step=1, limit=4
    $region2: #{routed_cnn_forward.4} parent=1 // loop_pre_header
      _
    $region3: #{routed_cnn_forward.4} parent=1 // loop_header
      %s14 = sphi 0, %s18
      %p15 = scmp.ge.s32.totalorder %s14, 4
      %s22 = sphi 0, %s22
      %s24 = sphi 0, %s22
      %s25 = sphi 0, %s24
      %s39 = sphi 0, %s25
      %s45 = sphi 0, %s47
      %s48 = sphi 0, %s45
      %s49 = sphi 0, %s48
      %s65 = sphi 0, %s49
      %s73 = sphi 0, %s75
      %s76 = sphi 0, %s73
      %s77 = sphi 0, %s76
      %s93 = sphi 0, %s77
      %s101 = sphi 0, %s103
      %s104 = sphi 0, %s101
      %s105 = sphi 0, %s104
      %s121 = sphi 0, %s105
      %s127 = sphi 0, %s129
      %s130 = sphi 0, %s127
      %s131 = sphi 0, %s130
      %s147 = sphi 0, %s131
    $region4: #{routed_cnn_forward.4} parent=1 // loop_header_branch
      %17 = sbr.rel (%p15) target = $region8
    $region5: #{routed_cnn_forward.4} parent=1 // loop_body
      %s19 = ssub.s32 %s14, 1
      %s20 = ssub.s32 %s14, 2
      %s21 = sadd.s32 %s14, 1
      %s23 = sadd.s32 %s22, 1
      %p26 = scmp.eq.s32.totalorder %s14, 1
      %p27 = scmp.ne.s32.totalorder %s22, %s24
      %p28 = scmp.eq.s32.totalorder %s14, 0
      %p29 = por %p27, %p28
      %p30 = scmp.ne.s32.totalorder %s22, %s24
      %p31 = scmp.eq.s32.totalorder %s19, 1
      %p32 = por %p30, %p31
      %p33 = scmp.ne.s32.totalorder %s24, %s25
      %p34 = scmp.eq.s32.totalorder %s19, 0
      %p35 = por %p33, %p34
      %p36 = scmp.ne.s32.totalorder %s24, %s25
      %p37 = scmp.eq.s32.totalorder %s20, 1
      %p38 = por %p36, %p37
      %p40 = scmp.ne.s32.totalorder %s25, %s39
      %p41 = scmp.eq.s32.totalorder %s20, 0
      %p42 = por %p40, %p41
      %s43 = ssub.s32 %s14, %s21
      %p44 = scmp.eq.s32.totalorder %s43, 0
      %s46 = sadd.s32 %s45, 1
      %s47 = scalar_select %p44, %s45, %s46
      %p50 = pneg %p44
      %p51 = scmp.eq.s32.totalorder %s14, 1
      %p52 = por %p50, %p51
      %p53 = scmp.ne.s32.totalorder %s45, %s48
      %p54 = scmp.eq.s32.totalorder %s14, 0
      %p55 = por %p53, %p54
      %p56 = scmp.ne.s32.totalorder %s45, %s48
      %p57 = scmp.eq.s32.totalorder %s19, 1
      %p58 = por %p56, %p57
      %p59 = scmp.ne.s32.totalorder %s48, %s49
      %p60 = scmp.eq.s32.totalorder %s19, 0
      %p61 = por %p59, %p60
      %p62 = scmp.ne.s32.totalorder %s48, %s49
      %p63 = scmp.eq.s32.totalorder %s20, 1
      %p64 = por %p62, %p63
      %p66 = scmp.ne.s32.totalorder %s49, %s65
      %p67 = scmp.eq.s32.totalorder %s20, 0
      %p68 = por %p66, %p67
      %s69 = sld [smem:[#allocation3]]
      %s70 = sld [smem:[#allocation3]]
      %s71 = ssub.s32 %s69, %s70
      %p72 = scmp.eq.s32.totalorder %s71, 0
      %s74 = sadd.s32 %s73, 1
      %s75 = scalar_select %p72, %s73, %s74
      %p78 = pneg %p72
      %p79 = scmp.eq.s32.totalorder %s14, 1
      %p80 = por %p78, %p79
      %p81 = scmp.ne.s32.totalorder %s73, %s76
      %p82 = scmp.eq.s32.totalorder %s14, 0
      %p83 = por %p81, %p82
      %p84 = scmp.ne.s32.totalorder %s73, %s76
      %p85 = scmp.eq.s32.totalorder %s19, 1
      %p86 = por %p84, %p85
      %p87 = scmp.ne.s32.totalorder %s76, %s77
      %p88 = scmp.eq.s32.totalorder %s19, 0
      %p89 = por %p87, %p88
      %p90 = scmp.ne.s32.totalorder %s76, %s77
      %p91 = scmp.eq.s32.totalorder %s20, 1
      %p92 = por %p90, %p91
      %p94 = scmp.ne.s32.totalorder %s77, %s93
      %p95 = scmp.eq.s32.totalorder %s20, 0
      %p96 = por %p94, %p95
      %s97 = sld [smem:[#allocation3]]
      %s98 = sld [smem:[#allocation3]]
      %s99 = ssub.s32 %s97, %s98
      %p100 = scmp.eq.s32.totalorder %s99, 0
      %s102 = sadd.s32 %s101, 1
      %s103 = scalar_select %p100, %s101, %s102
      %p106 = pneg %p100
      %p107 = scmp.eq.s32.totalorder %s14, 1
      %p108 = por %p106, %p107
      %p109 = scmp.ne.s32.totalorder %s101, %s104
      %p110 = scmp.eq.s32.totalorder %s14, 0
      %p111 = por %p109, %p110
      %p112 = scmp.ne.s32.totalorder %s101, %s104
      %p113 = scmp.eq.s32.totalorder %s19, 1
      %p114 = por %p112, %p113
      %p115 = scmp.ne.s32.totalorder %s104, %s105
      %p116 = scmp.eq.s32.totalorder %s19, 0
      %p117 = por %p115, %p116
      %p118 = scmp.ne.s32.totalorder %s104, %s105
      %p119 = scmp.eq.s32.totalorder %s20, 1
      %p120 = por %p118, %p119
      %p122 = scmp.ne.s32.totalorder %s105, %s121
      %p123 = scmp.eq.s32.totalorder %s20, 0
      %p124 = por %p122, %p123
      %s125 = ssub.s32 %s14, %s21
      %p126 = scmp.eq.s32.totalorder %s125, 0
      %s128 = sadd.s32 %s127, 1
      %s129 = scalar_select %p126, %s127, %s128
      %p132 = pneg %p126
      %p133 = scmp.eq.s32.totalorder %s14, 1
      %p134 = por %p132, %p133
      %p135 = scmp.ne.s32.totalorder %s127, %s130
      %p136 = scmp.eq.s32.totalorder %s14, 0
      %p137 = por %p135, %p136
      %p138 = scmp.ne.s32.totalorder %s127, %s130
      %p139 = scmp.eq.s32.totalorder %s19, 1
      %p140 = por %p138, %p139
      %p141 = scmp.ne.s32.totalorder %s130, %s131
      %p142 = scmp.eq.s32.totalorder %s19, 0
      %p143 = por %p141, %p142
      %p144 = scmp.ne.s32.totalorder %s130, %s131
      %p145 = scmp.eq.s32.totalorder %s20, 1
      %p146 = por %p144, %p145
      %p148 = scmp.ne.s32.totalorder %s131, %s147
      %p149 = scmp.eq.s32.totalorder %s20, 0
      %p150 = por %p148, %p149
      %p151 = scmp.le.s32.totalorder 1, %s14
      %p152 = scmp.lt.s32.totalorder %s14, 3
      %p153 = pnand %p151, %p152
      %p154 = pneg %p153
      // Predicated region
      $region9: #{routed_cnn_forward.4} parent=5 // pred_check
        _
      $region10: #{routed_cnn_forward.4} parent=5 // pred_check_branch
        %156 = sbr.rel (%p153) target = $region12
      $region11: #{routed_cnn_forward.4} parent=5 // pred_region
        %s157 = ssub.s32 %s14, 1
        // Predicated region
        $region13: #{routed_cnn_forward.4} parent=11 // pred_check
          %p158 = pneg %p35
        $region14: #{routed_cnn_forward.4} parent=11 // pred_check_branch
          %160 = sbr.rel (%p158) target = $region16
        $region15: #{routed_cnn_forward.4} parent=11 // pred_region
          _
        $region16: #{routed_cnn_forward.4} parent=11 // pred_fallthru
          _
        // Predicated region
        $region17: #{routed_cnn_forward.4} parent=11 // pred_check
          %p161 = pneg %p89
        $region18: #{routed_cnn_forward.4} parent=11 // pred_check_branch
          %163 = sbr.rel (%p161) target = $region20
        $region19: #{routed_cnn_forward.4} parent=11 // pred_region
          %s164 = sld [smem:[#allocation3]]
          %166 = vsyncadd [#allocation6], 0
          %s167 = smul.addr %s164, 3
          %s168 = smul.addr %s167, 8
          %s169 = scalar_lea.hbm %s3, %s168
          %s170 = sshll.u32 %s169, 4
          %s171 = int_to_ptr.hbm [resolvable:$true] %s170
          %s172 = sshll.u32 [#allocation5], 4
          %s173 = int_to_ptr.vmem [resolvable:$true] %s172
          %178 = dma.hbm_to_vmem [thread:$0]  %s171, 384, %s173, [#allocation6], 128, 128, 8
        $region20: #{routed_cnn_forward.4} parent=11 // pred_fallthru
          _
        // Predicated region
        $region21: #{routed_cnn_forward.4} parent=11 // pred_check
          %p179 = pneg %p117
        $region22: #{routed_cnn_forward.4} parent=11 // pred_check_branch
          %181 = sbr.rel (%p179) target = $region24
        $region23: #{routed_cnn_forward.4} parent=11 // pred_region
          %s182 = sld [smem:[#allocation3]]
          %p183 = scmp.lt.s32.totalorder %s182, 9
          %s184 = scalar_select %p183, %s182, 9
          %s185 = smul.addr %s184, 3
          %s186 = smul.addr %s185, 8
          %s187 = scalar_lea.vmem %s4, %s186
          %s188 = sld [smem:[#allocation3]]
        $region24: #{routed_cnn_forward.4} parent=11 // pred_fallthru
          _
      $region12: #{routed_cnn_forward.4} parent=5 // pred_fallthru
        _
      %p189 = scmp.lt.s32.totalorder %s14, 2
      // Predicated region
      $region25: #{routed_cnn_forward.4} parent=5 // pred_check
        %p190 = pneg %p189
      $region26: #{routed_cnn_forward.4} parent=5 // pred_check_branch
        %192 = sbr.rel (%p190) target = $region28
      $region27: #{routed_cnn_forward.4} parent=5 // pred_region
        // Predicated region
        $region29: #{routed_cnn_forward.4} parent=27 // pred_check
          %p193 = pneg %p55
        $region30: #{routed_cnn_forward.4} parent=27 // pred_check_branch
          %195 = sbr.rel (%p193) target = $region32
        $region31: #{routed_cnn_forward.4} parent=27 // pred_region
          %p196 = scmp.lt.s32.totalorder %s14, 1
          %s197 = scalar_select %p196, %s14, 1
          %s198 = smul.addr %s197, 32
          %s199 = smul.addr %s198, 8
          %s200 = scalar_lea.vmem %s2, %s199
        $region32: #{routed_cnn_forward.4} parent=27 // pred_fallthru
          _
      $region28: #{routed_cnn_forward.4} parent=5 // pred_fallthru
        _
      %p201 = scmp.le.s32.totalorder 1, %s14
      %p202 = scmp.lt.s32.totalorder %s14, 3
      %p203 = pnand %p201, %p202
      %p204 = pneg %p203
      // Predicated region
      $region33: #{routed_cnn_forward.4} parent=5 // pred_check
        _
      $region34: #{routed_cnn_forward.4} parent=5 // pred_check_branch
        %206 = sbr.rel (%p203) target = $region36
      $region35: #{routed_cnn_forward.4} parent=5 // pred_region
        %s207 = ssub.s32 %s14, 1
        // Predicated region
        $region37: #{routed_cnn_forward.4} parent=35 // pred_check
          %p208 = pneg %p89
        $region38: #{routed_cnn_forward.4} parent=35 // pred_check_branch
          %210 = sbr.rel (%p208) target = $region40
        $region39: #{routed_cnn_forward.4} parent=35 // pred_region
          %212 = dma.done [#allocation6], 384
        $region40: #{routed_cnn_forward.4} parent=35 // pred_fallthru
          _
        %p213 = pneg %p35
        %p214 = pneg %p32
        %p215 = scmp.lt.s32.totalorder %s19, 1
        %s216 = scalar_select %p215, %s19, 1
        %s217 = smul.addr %s216, 32
        %s218 = smul.addr %s217, 8
        %s219 = scalar_lea.vmem %s2, %s218
        %p220 = pneg %p61
        %p221 = pneg %p58
        %p222 = pneg %p89
        %p223 = pneg %p86
        %s224 = sld [smem:[#allocation3]]
        %p225 = scmp.lt.s32.totalorder %s224, 9
        %s226 = scalar_select %p225, %s224, 9
        %s227 = smul.addr %s226, 3
        %s228 = smul.addr %s227, 8
        %s229 = scalar_lea.vmem %s4, %s228
        %p230 = pneg %p117
        %p231 = pneg %p114
        %p232 = pneg %p143
        %p233 = pneg %p140
        %p234 = scmp.lt.s32.totalorder %s19, 1
        %s235 = scalar_select %p234, %s19, 1
        %s236 = smul.addr %s235, 24
        %s237 = smul.addr %s236, 8
        %s238 = scalar_lea.vmem %s5, %s237
        %p239 = scmp.lt.s32.totalorder %s19, 1
        %s240 = scalar_select %p239, %s19, 1
        %s241 = smul.addr %s240, 32
        %s242 = smul.addr %s241, 8
        %s243 = scalar_lea.vmem %s2, %s242
        %s244 = sld [smem:[#allocation3]]
        %s245 = sld [smem:[#allocation3]]
        %p246 = scmp.lt.s32.totalorder %s245, 9
        %s247 = scalar_select %p246, %s245, 9
        %s248 = smul.addr %s247, 3
        %s249 = smul.addr %s248, 8
        %s250 = scalar_lea.vmem %s4, %s249
        %s251 = sld [smem:[#allocation3]]
        %p252 = scmp.lt.s32.totalorder %s19, 1
        %s253 = scalar_select %p252, %s19, 1
        %s254 = smul.addr %s253, 24
        %s255 = smul.addr %s254, 8
        %s256 = scalar_lea.vmem %s5, %s255
        %v257 = vld [vmem:[#allocation5] sm:$0xff]
        %v258 = vld [vmem:[#allocation5 + $0x8] sm:$0xff]
        %v259 = vld [vmem:[#allocation5 + $0x10] sm:$0xff]
        %v260 = vld [vmem:[%s243] sm:$0xff]
        %v261 = vld [vmem:[%s243 + $0x8] sm:$0xff]
        %v262 = vld [vmem:[%s243 + $0x10] sm:$0xff]
        %v263 = vld [vmem:[%s243 + $0x18] sm:$0xff]
        %v264 = vld [vmem:[%s243 + $0x20] sm:$0xff]
        %v265 = vld [vmem:[%s243 + $0x28] sm:$0xff]
        %v266 = vld [vmem:[%s243 + $0x30] sm:$0xff]
        %v267 = vld [vmem:[%s243 + $0x38] sm:$0xff]
        %v268 = vld [vmem:[%s243 + $0x40] sm:$0xff]
        %v269 = vld [vmem:[%s243 + $0x48] sm:$0xff]
        %v270 = vld [vmem:[%s243 + $0x50] sm:$0xff]
        %v271 = vld [vmem:[%s243 + $0x58] sm:$0xff]
        %v272 = vld [vmem:[%s243 + $0x60] sm:$0xff]
        %v273 = vld [vmem:[%s243 + $0x68] sm:$0xff]
        %v274 = vld [vmem:[%s243 + $0x70] sm:$0xff]
        %v275 = vld [vmem:[%s243 + $0x78] sm:$0xff]
        %v276 = vld [vmem:[%s243 + $0x80] sm:$0xff]
        %v277 = vld [vmem:[%s243 + $0x88] sm:$0xff]
        %v278 = vld [vmem:[%s243 + $0x90] sm:$0xff]
        %v279 = vld [vmem:[%s243 + $0x98] sm:$0xff]
        %v280 = vld [vmem:[%s243 + $0xa0] sm:$0xff]
        %v281 = vld [vmem:[%s243 + $0xa8] sm:$0xff]
        %v282 = vld [vmem:[%s243 + $0xb0] sm:$0xff]
        %v283 = vld [vmem:[%s243 + $0xb8] sm:$0xff]
        %v284 = vld [vmem:[%s243 + $0xc0] sm:$0x7]
        %v285 = vld [vmem:[%s243 + $0xc8] sm:$0x7]
        %v286 = vld [vmem:[%s243 + $0xd0] sm:$0x7]
        %v287 = vld [vmem:[%s243 + $0xd8] sm:$0x7]
        %v288 = vld [vmem:[%s243 + $0xe0] sm:$0x7]
        %v289 = vld [vmem:[%s243 + $0xe8] sm:$0x7]
        %v290 = vld [vmem:[%s243 + $0xf0] sm:$0x7]
        %v291 = vld [vmem:[%s243 + $0xf8] sm:$0x7]
        %v292 = vld [vmem:[%s250] sm:$0xff]
        %v293 = vld [vmem:[%s250 + $0x8] sm:$0xff]
        %v294 = vld [vmem:[%s250 + $0x10] sm:$0xff]
        %296 = vset.pattern.permute.xlu0 0
        %297 = vperm.xlu0 %296, %v292
        %v298 = vpop.permute.xlu0 %297
        %301 = vset.pattern.permute.xlu0 0
        %302 = vperm.xlu0 %301, %v293
        %v303 = vpop.permute.xlu0 %302
        %306 = vset.pattern.permute.xlu0 0
        %307 = vperm.xlu0 %306, %v294
        %v308 = vpop.permute.xlu0 %307
        %vm310 = vcmask 220160
        %v312 = vsel %vm310, %v257, 0
        %v315 = vsel %vm310, %v258, 0
        %v318 = vsel %vm310, %v259, 0
        %vm320 = vcmask 1042432
        %v322 = vsel %vm320, %v284, 0
        %v325 = vsel %vm320, %v285, 0
        %v328 = vsel %vm320, %v286, 0
        %v331 = vsel %vm320, %v287, 0
        %v334 = vsel %vm320, %v288, 0
        %v337 = vsel %vm320, %v289, 0
        %v340 = vsel %vm320, %v290, 0
        %v343 = vsel %vm320, %v291, 0
        %345 = vmatpush.msra.mxu0 0.0
        %346 = vmatpush.msra.mxu0 0.0
        %347 = vmatpush.msra.mxu0 0.0
        %348 = vmatpush.msra.mxu0 0.0
        %349 = vmatpush.msra.mxu0 0.0
        %350 = vmatpush.msra.mxu0 0.0
        %351 = vmatpush.msra.mxu0 0.0
        %352 = vmatpush.msra.mxu0 0.0
        %353 = vmatpush.msra.mxu0 0.0
        %354 = vmatpush.msra.mxu0 0.0
        %355 = vmatpush.msra.mxu0 0.0
        %356 = vmatpush.msra.mxu0 0.0
        %357 = vmatpush.msra.mxu0 %v322
        %358 = vmatpush.msra.mxu0 %v276
        %359 = vmatpush.msra.mxu0 %v268
        %360 = vmatpush.msra.mxu0 %v260
        %361 = vmatmul.f32.gmra.mxu0 %v312
        %v362 = vpop.f32.mrf.mxu0
        %v363 = vadd.f32 %v298, %v362
        %364 = vmatmul.f32.gmra.mxu0 %v315
        %v365 = vpop.f32.mrf.mxu0
        %v366 = vadd.f32 %v303, %v365
        %367 = vmatmul.f32.gmra.mxu0 %v318
        %v368 = vpop.f32.mrf.mxu0
        %v369 = vadd.f32 %v308, %v368
        %370 = vdwg.mxu0
        %371 = vmatpush.msra.mxu0 0.0
        %372 = vmatpush.msra.mxu0 0.0
        %373 = vmatpush.msra.mxu0 0.0
        %374 = vmatpush.msra.mxu0 0.0
        %375 = vmatpush.msra.mxu0 0.0
        %376 = vmatpush.msra.mxu0 0.0
        %377 = vmatpush.msra.mxu0 0.0
        %378 = vmatpush.msra.mxu0 0.0
        %379 = vmatpush.msra.mxu0 0.0
        %380 = vmatpush.msra.mxu0 0.0
        %381 = vmatpush.msra.mxu0 0.0
        %382 = vmatpush.msra.mxu0 0.0
        %383 = vmatpush.msra.mxu0 %v325
        %384 = vmatpush.msra.mxu0 %v277
        %385 = vmatpush.msra.mxu0 %v269
        %386 = vmatpush.msra.mxu0 %v261
        %387 = vmatmul.f32.gmra.mxu0 %v312
        %v388 = vpop.f32.mrf.mxu0
        %v389 = vadd.f32 %v298, %v388
        %390 = vmatmul.f32.gmra.mxu0 %v315
        %v391 = vpop.f32.mrf.mxu0
        %v392 = vadd.f32 %v303, %v391
        %393 = vmatmul.f32.gmra.mxu0 %v318
        %v394 = vpop.f32.mrf.mxu0
        %v395 = vadd.f32 %v308, %v394
        %396 = vdwg.mxu0
        %397 = vmatpush.msra.mxu0 0.0
        %398 = vmatpush.msra.mxu0 0.0
        %399 = vmatpush.msra.mxu0 0.0
        %400 = vmatpush.msra.mxu0 0.0
        %401 = vmatpush.msra.mxu0 0.0
        %402 = vmatpush.msra.mxu0 0.0
        %403 = vmatpush.msra.mxu0 0.0
        %404 = vmatpush.msra.mxu0 0.0
        %405 = vmatpush.msra.mxu0 0.0
        %406 = vmatpush.msra.mxu0 0.0
        %407 = vmatpush.msra.mxu0 0.0
        %408 = vmatpush.msra.mxu0 0.0
        %409 = vmatpush.msra.mxu0 %v328
        %410 = vmatpush.msra.mxu0 %v278
        %411 = vmatpush.msra.mxu0 %v270
        %412 = vmatpush.msra.mxu0 %v262
        %413 = vmatmul.f32.gmra.mxu0 %v312
        %v414 = vpop.f32.mrf.mxu0
        %v415 = vadd.f32 %v298, %v414
        %416 = vmatmul.f32.gmra.mxu0 %v315
        %v417 = vpop.f32.mrf.mxu0
        %v418 = vadd.f32 %v303, %v417
        %419 = vmatmul.f32.gmra.mxu0 %v318
        %v420 = vpop.f32.mrf.mxu0
        %v421 = vadd.f32 %v308, %v420
        %422 = vdwg.mxu0
        %423 = vmatpush.msra.mxu0 0.0
        %424 = vmatpush.msra.mxu0 0.0
        %425 = vmatpush.msra.mxu0 0.0
        %426 = vmatpush.msra.mxu0 0.0
        %427 = vmatpush.msra.mxu0 0.0
        %428 = vmatpush.msra.mxu0 0.0
        %429 = vmatpush.msra.mxu0 0.0
        %430 = vmatpush.msra.mxu0 0.0
        %431 = vmatpush.msra.mxu0 0.0
        %432 = vmatpush.msra.mxu0 0.0
        %433 = vmatpush.msra.mxu0 0.0
        %434 = vmatpush.msra.mxu0 0.0
        %435 = vmatpush.msra.mxu0 %v331
        %436 = vmatpush.msra.mxu0 %v279
        %437 = vmatpush.msra.mxu0 %v271
        %438 = vmatpush.msra.mxu0 %v263
        %439 = vmatmul.f32.gmra.mxu0 %v312
        %v440 = vpop.f32.mrf.mxu0
        %v441 = vadd.f32 %v298, %v440
        %442 = vmatmul.f32.gmra.mxu0 %v315
        %v443 = vpop.f32.mrf.mxu0
        %v444 = vadd.f32 %v303, %v443
        %445 = vmatmul.f32.gmra.mxu0 %v318
        %v446 = vpop.f32.mrf.mxu0
        %v447 = vadd.f32 %v308, %v446
        %448 = vdwg.mxu0
        %449 = vmatpush.msra.mxu0 0.0
        %450 = vmatpush.msra.mxu0 0.0
        %451 = vmatpush.msra.mxu0 0.0
        %452 = vmatpush.msra.mxu0 0.0
        %453 = vmatpush.msra.mxu0 0.0
        %454 = vmatpush.msra.mxu0 0.0
        %455 = vmatpush.msra.mxu0 0.0
        %456 = vmatpush.msra.mxu0 0.0
        %457 = vmatpush.msra.mxu0 0.0
        %458 = vmatpush.msra.mxu0 0.0
        %459 = vmatpush.msra.mxu0 0.0
        %460 = vmatpush.msra.mxu0 0.0
        %461 = vmatpush.msra.mxu0 %v334
        %462 = vmatpush.msra.mxu0 %v280
        %463 = vmatpush.msra.mxu0 %v272
        %464 = vmatpush.msra.mxu0 %v264
        %465 = vmatmul.f32.gmra.mxu0 %v312
        %v466 = vpop.f32.mrf.mxu0
        %v467 = vadd.f32 %v298, %v466
        %468 = vmatmul.f32.gmra.mxu0 %v315
        %v469 = vpop.f32.mrf.mxu0
        %v470 = vadd.f32 %v303, %v469
        %471 = vmatmul.f32.gmra.mxu0 %v318
        %v472 = vpop.f32.mrf.mxu0
        %v473 = vadd.f32 %v308, %v472
        %474 = vdwg.mxu0
        %475 = vmatpush.msra.mxu0 0.0
        %476 = vmatpush.msra.mxu0 0.0
        %477 = vmatpush.msra.mxu0 0.0
        %478 = vmatpush.msra.mxu0 0.0
        %479 = vmatpush.msra.mxu0 0.0
        %480 = vmatpush.msra.mxu0 0.0
        %481 = vmatpush.msra.mxu0 0.0
        %482 = vmatpush.msra.mxu0 0.0
        %483 = vmatpush.msra.mxu0 0.0
        %484 = vmatpush.msra.mxu0 0.0
        %485 = vmatpush.msra.mxu0 0.0
        %486 = vmatpush.msra.mxu0 0.0
        %487 = vmatpush.msra.mxu0 %v337
        %488 = vmatpush.msra.mxu0 %v281
        %489 = vmatpush.msra.mxu0 %v273
        %490 = vmatpush.msra.mxu0 %v265
        %491 = vmatmul.f32.gmra.mxu0 %v312
        %v492 = vpop.f32.mrf.mxu0
        %v493 = vadd.f32 %v298, %v492
        %494 = vmatmul.f32.gmra.mxu0 %v315
        %v495 = vpop.f32.mrf.mxu0
        %v496 = vadd.f32 %v303, %v495
        %497 = vmatmul.f32.gmra.mxu0 %v318
        %v498 = vpop.f32.mrf.mxu0
        %v499 = vadd.f32 %v308, %v498
        %500 = vdwg.mxu0
        %501 = vmatpush.msra.mxu0 0.0
        %502 = vmatpush.msra.mxu0 0.0
        %503 = vmatpush.msra.mxu0 0.0
        %504 = vmatpush.msra.mxu0 0.0
        %505 = vmatpush.msra.mxu0 0.0
        %506 = vmatpush.msra.mxu0 0.0
        %507 = vmatpush.msra.mxu0 0.0
        %508 = vmatpush.msra.mxu0 0.0
        %509 = vmatpush.msra.mxu0 0.0
        %510 = vmatpush.msra.mxu0 0.0
        %511 = vmatpush.msra.mxu0 0.0
        %512 = vmatpush.msra.mxu0 0.0
        %513 = vmatpush.msra.mxu0 %v340
        %514 = vmatpush.msra.mxu0 %v282
        %515 = vmatpush.msra.mxu0 %v274
        %516 = vmatpush.msra.mxu0 %v266
        %517 = vmatmul.f32.gmra.mxu0 %v312
        %v518 = vpop.f32.mrf.mxu0
        %v519 = vadd.f32 %v298, %v518
        %520 = vmatmul.f32.gmra.mxu0 %v315
        %v521 = vpop.f32.mrf.mxu0
        %v522 = vadd.f32 %v303, %v521
        %523 = vmatmul.f32.gmra.mxu0 %v318
        %v524 = vpop.f32.mrf.mxu0
        %v525 = vadd.f32 %v308, %v524
        %526 = vdwg.mxu0
        %527 = vmatpush.msra.mxu0 0.0
        %528 = vmatpush.msra.mxu0 0.0
        %529 = vmatpush.msra.mxu0 0.0
        %530 = vmatpush.msra.mxu0 0.0
        %531 = vmatpush.msra.mxu0 0.0
        %532 = vmatpush.msra.mxu0 0.0
        %533 = vmatpush.msra.mxu0 0.0
        %534 = vmatpush.msra.mxu0 0.0
        %535 = vmatpush.msra.mxu0 0.0
        %536 = vmatpush.msra.mxu0 0.0
        %537 = vmatpush.msra.mxu0 0.0
        %538 = vmatpush.msra.mxu0 0.0
        %539 = vmatpush.msra.mxu0 %v343
        %540 = vmatpush.msra.mxu0 %v283
        %541 = vmatpush.msra.mxu0 %v275
        %542 = vmatpush.msra.mxu0 %v267
        %543 = vmatmul.f32.gmra.mxu0 %v312
        %v544 = vpop.f32.mrf.mxu0
        %v545 = vadd.f32 %v298, %v544
        %546 = vmatmul.f32.gmra.mxu0 %v315
        %v547 = vpop.f32.mrf.mxu0
        %v548 = vadd.f32 %v303, %v547
        %549 = vmatmul.f32.gmra.mxu0 %v318
        %v550 = vpop.f32.mrf.mxu0
        %v551 = vadd.f32 %v308, %v550
        %552 = vdwg.mxu0
        %s553 = sld [smem:[#allocation4]]
        %v554 = vstv %s553
        %v555 = vmul.f32 %v363, %v554
        %v556 = vmul.f32 %v389, %v554
        %v557 = vmul.f32 %v415, %v554
        %v558 = vmul.f32 %v441, %v554
        %v559 = vmul.f32 %v467, %v554
        %v560 = vmul.f32 %v493, %v554
        %v561 = vmul.f32 %v519, %v554
        %v562 = vmul.f32 %v545, %v554
        %v563 = vmul.f32 %v366, %v554
        %v564 = vmul.f32 %v392, %v554
        %v565 = vmul.f32 %v418, %v554
        %v566 = vmul.f32 %v444, %v554
        %v567 = vmul.f32 %v470, %v554
        %v568 = vmul.f32 %v496, %v554
        %v569 = vmul.f32 %v522, %v554
        %v570 = vmul.f32 %v548, %v554
        %v571 = vmul.f32 %v369, %v554
        %v572 = vmul.f32 %v395, %v554
        %v573 = vmul.f32 %v421, %v554
        %v574 = vmul.f32 %v447, %v554
        %v575 = vmul.f32 %v473, %v554
        %v576 = vmul.f32 %v499, %v554
        %v577 = vmul.f32 %v525, %v554
        %v578 = vmul.f32 %v551, %v554
        %v579 = vmax.f32 %v555, 0.0
        %v580 = vmax.f32 %v556, 0.0
        %v581 = vmax.f32 %v557, 0.0
        %v582 = vmax.f32 %v558, 0.0
        %v583 = vmax.f32 %v559, 0.0
        %v584 = vmax.f32 %v560, 0.0
        %v585 = vmax.f32 %v561, 0.0
        %v586 = vmax.f32 %v562, 0.0
        %v587 = vmax.f32 %v563, 0.0
        %v588 = vmax.f32 %v564, 0.0
        %v589 = vmax.f32 %v565, 0.0
        %v590 = vmax.f32 %v566, 0.0
        %v591 = vmax.f32 %v567, 0.0
        %v592 = vmax.f32 %v568, 0.0
        %v593 = vmax.f32 %v569, 0.0
        %v594 = vmax.f32 %v570, 0.0
        %v595 = vmax.f32 %v571, 0.0
        %v596 = vmax.f32 %v572, 0.0
        %v597 = vmax.f32 %v573, 0.0
        %v598 = vmax.f32 %v574, 0.0
        %v599 = vmax.f32 %v575, 0.0
        %v600 = vmax.f32 %v576, 0.0
        %v601 = vmax.f32 %v577, 0.0
        %v602 = vmax.f32 %v578, 0.0
        %603 = vst [vmem:[%s256] sm:$0xff] %v579
        %604 = vst [vmem:[%s256 + $0x8] sm:$0xff] %v580
        %605 = vst [vmem:[%s256 + $0x10] sm:$0xff] %v581
        %606 = vst [vmem:[%s256 + $0x18] sm:$0xff] %v582
        %607 = vst [vmem:[%s256 + $0x20] sm:$0xff] %v583
        %608 = vst [vmem:[%s256 + $0x28] sm:$0xff] %v584
        %609 = vst [vmem:[%s256 + $0x30] sm:$0xff] %v585
        %610 = vst [vmem:[%s256 + $0x38] sm:$0xff] %v586
        %611 = vst [vmem:[%s256 + $0x40] sm:$0xff] %v587
        %612 = vst [vmem:[%s256 + $0x48] sm:$0xff] %v588
        %613 = vst [vmem:[%s256 + $0x50] sm:$0xff] %v589
        %614 = vst [vmem:[%s256 + $0x58] sm:$0xff] %v590
        %615 = vst [vmem:[%s256 + $0x60] sm:$0xff] %v591
        %616 = vst [vmem:[%s256 + $0x68] sm:$0xff] %v592
        %617 = vst [vmem:[%s256 + $0x70] sm:$0xff] %v593
        %618 = vst [vmem:[%s256 + $0x78] sm:$0xff] %v594
        %619 = vst [vmem:[%s256 + $0x80] sm:$0xff] %v595
        %620 = vst [vmem:[%s256 + $0x88] sm:$0xff] %v596
        %621 = vst [vmem:[%s256 + $0x90] sm:$0xff] %v597
        %622 = vst [vmem:[%s256 + $0x98] sm:$0xff] %v598
        %623 = vst [vmem:[%s256 + $0xa0] sm:$0xff] %v599
        %624 = vst [vmem:[%s256 + $0xa8] sm:$0xff] %v600
        %625 = vst [vmem:[%s256 + $0xb0] sm:$0xff] %v601
        %626 = vst [vmem:[%s256 + $0xb8] sm:$0xff] %v602
        %p627 = scmp.lt.s32.totalorder %s19, 1
        %s628 = scalar_select %p627, %s19, 1
        %s629 = smul.addr %s628, 24
        %s630 = smul.addr %s629, 8
        %s631 = scalar_lea.vmem %s5, %s630
        // Predicated region
        $region41: #{routed_cnn_forward.4} parent=35 // pred_check
          %p632 = pneg %p140
        $region42: #{routed_cnn_forward.4} parent=35 // pred_check_branch
          %634 = sbr.rel (%p632) target = $region44
        $region43: #{routed_cnn_forward.4} parent=35 // pred_region
          _
        $region44: #{routed_cnn_forward.4} parent=35 // pred_fallthru
          _
      $region36: #{routed_cnn_forward.4} parent=5 // pred_fallthru
        _
      %p635 = scmp.le.s32.totalorder 2, %s14
      // Predicated region
      $region45: #{routed_cnn_forward.4} parent=5 // pred_check
        %p636 = pneg %p635
      $region46: #{routed_cnn_forward.4} parent=5 // pred_check_branch
        %638 = sbr.rel (%p636) target = $region48
      $region47: #{routed_cnn_forward.4} parent=5 // pred_region
        %s639 = ssub.s32 %s14, 2
        // Predicated region
        $region49: #{routed_cnn_forward.4} parent=47 // pred_check
          %p640 = pneg %p146
        $region50: #{routed_cnn_forward.4} parent=47 // pred_check_branch
          %642 = sbr.rel (%p640) target = $region52
        $region51: #{routed_cnn_forward.4} parent=47 // pred_region
          %p643 = scmp.lt.s32.totalorder %s20, 1
          %s644 = scalar_select %p643, %s20, 1
          %s645 = smul.addr %s644, 24
          %s646 = smul.addr %s645, 8
          %s647 = scalar_lea.vmem %s5, %s646
        $region52: #{routed_cnn_forward.4} parent=47 // pred_fallthru
          _
      $region48: #{routed_cnn_forward.4} parent=5 // pred_fallthru
        _
    $region6: #{routed_cnn_forward.4} parent=1 // loop_footer
      %s18 = sadd.s32 1, %s14
    $region7: #{routed_cnn_forward.4} parent=1 // loop_footer_branch
      %13 = sbr.rel target = $region3
    $region8: #{routed_cnn_forward.4} parent=1 // loop_exit
      _
    %648 = vsyncpa [#allocation6], 1
    %s649 = scalar_lea.sflag [#allocation6], 1
    %650 = vsyncpa %s649, 1

// kernel: routed_cnn_forward.3
$region0: #{routed_cnn_forward.3}
  #allocation0 [shape = 'u32[]', space=smem, size = 0x4, offset = 0x4, fixed_abs, tag = 'smem constant byte address 0x4 - core index']
  #allocation1 [shape = 'u32[72,128]{1,0:T(1,128)}', space=vmem, size = 0x9000, scoped, tag = 'internal scratch']
  %s0 = inlined_call_operand.vmem [shape: f32[2,3072], index: 0, kind: input, shape index: {}]
  %s1 = inlined_call_operand.hbm [shape: f32[10,3072], index: 1, kind: input, shape index: {}]
  %s2 = inlined_call_operand.hbm [shape: s32[1], index: 2, kind: output, shape index: {0}]
  %s3 = inlined_call_operand.hbm [shape: f32[1,1], index: 3, kind: output, shape index: {1}]
  %s4 = inlined_call_operand.hbm [shape: f32[1,1], index: 4, kind: output, shape index: {2}]
  %5 = xla_tuple %s2, %s3, %s4
  %s6 = sld [smem:[#allocation0]]
  $region38: #{routed_cnn_forward.3} parent=0
    _
  %s8 = ssub.s32 1, %s6
  %s9 = scalar_select 0, %s8, %s6
  $region1: #{routed_cnn_forward.3} parent=0
    #allocation2 [shape = 'u8[196608]{0}', space=vmem, size = 0x30000, scoped, tag = 'input window, operand 1, single buffered']
    #allocation3 [shape = 's32[1]{0}', space=sflag, size = 0x4, scoped, tag = 'scoped memory for routed_cnn_forward.3']
    #allocation4 [shape = 's32[1]{0}', space=sflag, size = 0x4, scoped, tag = 'scoped memory for routed_cnn_forward.3']
    #allocation5 [shape = 'u8[512]{0}', space=smem, size = 0x200, scoped, tag = 'output window, operand 0, single buffered']
    #allocation6 [shape = 'u8[512]{0}', space=smem, size = 0x200, scoped, tag = 'output window, operand 1, single buffered']
    #allocation7 [shape = 's32[1]{0}', space=sflag, size = 0x4, scoped, tag = 'scoped memory for routed_cnn_forward.3']
    #allocation8 [shape = 'u8[512]{0}', space=smem, size = 0x200, scoped, tag = 'output window, operand 2, single buffered']
    %10 = vsyncpa [#allocation3], 0
    %11 = vsyncpa [#allocation4], 0
    %12 = vsyncpa [#allocation7], 0
    // Predicated region
    $region2: #{routed_cnn_forward.3} parent=1 // pred_check
      _
    $region3: #{routed_cnn_forward.3} parent=1 // pred_check_branch
      %14 = sbr.rel (0) target = $region5
    $region4: #{routed_cnn_forward.3} parent=1 // pred_region
      _
    $region5: #{routed_cnn_forward.3} parent=1 // pred_fallthru
      _
    // Predicated region
    $region6: #{routed_cnn_forward.3} parent=1 // pred_check
      _
    $region7: #{routed_cnn_forward.3} parent=1 // pred_check_branch
      %16 = sbr.rel (0) target = $region9
    $region8: #{routed_cnn_forward.3} parent=1 // pred_region
      %18 = vsyncadd [#allocation3], 0
      %s19 = sshll.u32 %s1, 4
      %s20 = int_to_ptr.hbm [resolvable:$true] %s19
      %s21 = sshll.u32 [#allocation2], 4
      %s22 = int_to_ptr.vmem [resolvable:$true] %s21
      %27 = dma.hbm_to_vmem [thread:$0]  %s20, 6144, %s22, [#allocation3], 3072, 3072, 192
    $region9: #{routed_cnn_forward.3} parent=1 // pred_fallthru
      _
    // Predicated region
    $region10: #{routed_cnn_forward.3} parent=1 // pred_check
      _
    $region11: #{routed_cnn_forward.3} parent=1 // pred_check_branch
      %29 = sbr.rel (0) target = $region13
    $region12: #{routed_cnn_forward.3} parent=1 // pred_region
      %31 = dma.done [#allocation3], 6144
    $region13: #{routed_cnn_forward.3} parent=1 // pred_fallthru
      _
    %v32 = vld [vmem:[%s0] sm:$0xff]
    %v33 = vld [vmem:[%s0 + $0x8] sm:$0xff]
    %v34 = vld [vmem:[%s0 + $0x10] sm:$0xff]
    %v35 = vld [vmem:[%s0 + $0x18] sm:$0xff]
    %v36 = vld [vmem:[%s0 + $0x20] sm:$0xff]
    %v37 = vld [vmem:[%s0 + $0x28] sm:$0xff]
    %v38 = vld [vmem:[#allocation2] sm:$0xff]
    %v39 = vld [vmem:[#allocation2 + $0x8] sm:$0xff]
    %v40 = vld [vmem:[#allocation2 + $0x10] sm:$0xff]
    %v41 = vld [vmem:[#allocation2 + $0x18] sm:$0xff]
    %v42 = vld [vmem:[#allocation2 + $0x20] sm:$0xff]
    %v43 = vld [vmem:[#allocation2 + $0x28] sm:$0xff]
    %v44 = vld [vmem:[#allocation2 + $0x30] sm:$0xff]
    %v45 = vld [vmem:[#allocation2 + $0x38] sm:$0xff]
    %v46 = vld [vmem:[#allocation2 + $0x40] sm:$0xff]
    %v47 = vld [vmem:[#allocation2 + $0x48] sm:$0xff]
    %v48 = vld [vmem:[#allocation2 + $0x50] sm:$0xff]
    %v49 = vld [vmem:[#allocation2 + $0x58] sm:$0xff]
    %v50 = vld [vmem:[#allocation2 + $0x60] sm:$0xff]
    %v51 = vld [vmem:[#allocation2 + $0x68] sm:$0xff]
    %v52 = vld [vmem:[#allocation2 + $0x70] sm:$0xff]
    %v53 = vld [vmem:[#allocation2 + $0x78] sm:$0xff]
    %v54 = vld [vmem:[#allocation2 + $0x80] sm:$0xff]
    %v55 = vld [vmem:[#allocation2 + $0x88] sm:$0xff]
    %v56 = vld [vmem:[#allocation2 + $0x90] sm:$0xff]
    %v57 = vld [vmem:[#allocation2 + $0x98] sm:$0xff]
    %v58 = vld [vmem:[#allocation2 + $0xa0] sm:$0xff]
    %v59 = vld [vmem:[#allocation2 + $0xa8] sm:$0xff]
    %v60 = vld [vmem:[#allocation2 + $0xb0] sm:$0xff]
    %v61 = vld [vmem:[#allocation2 + $0xb8] sm:$0xff]
    %v62 = vld [vmem:[#allocation2 + $0xc0] sm:$0x3]
    %v63 = vld [vmem:[#allocation2 + $0xc8] sm:$0x3]
    %v64 = vld [vmem:[#allocation2 + $0xd0] sm:$0x3]
    %v65 = vld [vmem:[#allocation2 + $0xd8] sm:$0x3]
    %v66 = vld [vmem:[#allocation2 + $0xe0] sm:$0x3]
    %v67 = vld [vmem:[#allocation2 + $0xe8] sm:$0x3]
    %v68 = vld [vmem:[#allocation2 + $0xf0] sm:$0x3]
    %v69 = vld [vmem:[#allocation2 + $0xf8] sm:$0x3]
    %v70 = vld [vmem:[#allocation2 + $0x100] sm:$0x3]
    %v71 = vld [vmem:[#allocation2 + $0x108] sm:$0x3]
    %v72 = vld [vmem:[#allocation2 + $0x110] sm:$0x3]
    %v73 = vld [vmem:[#allocation2 + $0x118] sm:$0x3]
    %v74 = vld [vmem:[#allocation2 + $0x120] sm:$0x3]
    %v75 = vld [vmem:[#allocation2 + $0x128] sm:$0x3]
    %v76 = vld [vmem:[#allocation2 + $0x130] sm:$0x3]
    %v77 = vld [vmem:[#allocation2 + $0x138] sm:$0x3]
    %v78 = vld [vmem:[#allocation2 + $0x140] sm:$0x3]
    %v79 = vld [vmem:[#allocation2 + $0x148] sm:$0x3]
    %v80 = vld [vmem:[#allocation2 + $0x150] sm:$0x3]
    %v81 = vld [vmem:[#allocation2 + $0x158] sm:$0x3]
    %v82 = vld [vmem:[#allocation2 + $0x160] sm:$0x3]
    %v83 = vld [vmem:[#allocation2 + $0x168] sm:$0x3]
    %v84 = vld [vmem:[#allocation2 + $0x170] sm:$0x3]
    %v85 = vld [vmem:[#allocation2 + $0x178] sm:$0x3]
    %92 = vst [vmem:[#allocation1] ss:$4 sm:$0xff] %v32
    %s93 = scalar_lea.vmem [#allocation1], 32
    %94 = vst [vmem:[%s93] ss:$4 sm:$0xff] %v33
    %v95 = vld.sshfl [vmem:[#allocation1] sm:$0xff pattern:$0x73625140]
    %v96 = vld.sshfl [vmem:[#allocation1 + $0x8] sm:$0xff pattern:$0x73625140]
    %v97 = vld.sshfl [vmem:[#allocation1 + $0x10] sm:$0xff pattern:$0x73625140]
    %v98 = vld.sshfl [vmem:[#allocation1 + $0x18] sm:$0xff pattern:$0x73625140]
    %v99 = vld.sshfl [vmem:[#allocation1 + $0x20] sm:$0xff pattern:$0x73625140]
    %v100 = vld.sshfl [vmem:[#allocation1 + $0x28] sm:$0xff pattern:$0x73625140]
    %v101 = vld.sshfl [vmem:[#allocation1 + $0x30] sm:$0xff pattern:$0x73625140]
    %v102 = vld.sshfl [vmem:[#allocation1 + $0x38] sm:$0xff pattern:$0x73625140]
    %103 = vst [vmem:[#allocation1] ss:$4 sm:$0xff] %v34
    %104 = vst [vmem:[%s93] ss:$4 sm:$0xff] %v35
    %v105 = vld.sshfl [vmem:[#allocation1] sm:$0xff pattern:$0x73625140]
    %v106 = vld.sshfl [vmem:[#allocation1 + $0x8] sm:$0xff pattern:$0x73625140]
    %v107 = vld.sshfl [vmem:[#allocation1 + $0x10] sm:$0xff pattern:$0x73625140]
    %v108 = vld.sshfl [vmem:[#allocation1 + $0x18] sm:$0xff pattern:$0x73625140]
    %v109 = vld.sshfl [vmem:[#allocation1 + $0x20] sm:$0xff pattern:$0x73625140]
    %v110 = vld.sshfl [vmem:[#allocation1 + $0x28] sm:$0xff pattern:$0x73625140]
    %v111 = vld.sshfl [vmem:[#allocation1 + $0x30] sm:$0xff pattern:$0x73625140]
    %v112 = vld.sshfl [vmem:[#allocation1 + $0x38] sm:$0xff pattern:$0x73625140]
    %113 = vst [vmem:[#allocation1] ss:$4 sm:$0xff] %v36
    %114 = vst [vmem:[%s93] ss:$4 sm:$0xff] %v37
    %v115 = vld.sshfl [vmem:[#allocation1] sm:$0xff pattern:$0x73625140]
    %v116 = vld.sshfl [vmem:[#allocation1 + $0x8] sm:$0xff pattern:$0x73625140]
    %v117 = vld.sshfl [vmem:[#allocation1 + $0x10] sm:$0xff pattern:$0x73625140]
    %v118 = vld.sshfl [vmem:[#allocation1 + $0x18] sm:$0xff pattern:$0x73625140]
    %v119 = vld.sshfl [vmem:[#allocation1 + $0x20] sm:$0xff pattern:$0x73625140]
    %v120 = vld.sshfl [vmem:[#allocation1 + $0x28] sm:$0xff pattern:$0x73625140]
    %v121 = vld.sshfl [vmem:[#allocation1 + $0x30] sm:$0xff pattern:$0x73625140]
    %v122 = vld.sshfl [vmem:[#allocation1 + $0x38] sm:$0xff pattern:$0x73625140]
    %147 = vmatpush.xpose.msra.mxu0 0.0
    %148 = vmatpush.xpose.msra.mxu0 0.0
    %149 = vmatpush.xpose.msra.mxu0 0.0
    %150 = vmatpush.xpose.msra.mxu0 0.0
    %151 = vmatpush.xpose.msra.mxu0 0.0
    %152 = vmatpush.xpose.msra.mxu0 0.0
    %153 = vmatpush.xpose.msra.mxu0 0.0
    %154 = vmatpush.xpose.msra.mxu0 0.0
    %155 = vmatpush.xpose.msra.mxu0 0.0
    %156 = vmatpush.xpose.msra.mxu0 0.0
    %157 = vmatpush.xpose.msra.mxu0 0.0
    %158 = vmatpush.xpose.msra.mxu0 0.0
    %159 = vmatpush.xpose.msra.mxu0 0.0
    %160 = vmatpush.xpose.msra.mxu0 0.0
    %161 = vmatpush.xpose.msra.mxu0 %v62
    %162 = vmatpush.xpose.msra.mxu0 %v38
    %163 = vmatmul.f32.gmra.mxu0 %v95
    %v164 = vpop.f32.mrf.mxu0
    %v165 = vadd.f32 0.0, %v164
    %166 = vdwg.mxu0
    %167 = vmatpush.xpose.msra.mxu0 0.0
    %168 = vmatpush.xpose.msra.mxu0 0.0
    %169 = vmatpush.xpose.msra.mxu0 0.0
    %170 = vmatpush.xpose.msra.mxu0 0.0
    %171 = vmatpush.xpose.msra.mxu0 0.0
    %172 = vmatpush.xpose.msra.mxu0 0.0
    %173 = vmatpush.xpose.msra.mxu0 0.0
    %174 = vmatpush.xpose.msra.mxu0 0.0
    %175 = vmatpush.xpose.msra.mxu0 0.0
    %176 = vmatpush.xpose.msra.mxu0 0.0
    %177 = vmatpush.xpose.msra.mxu0 0.0
    %178 = vmatpush.xpose.msra.mxu0 0.0
    %179 = vmatpush.xpose.msra.mxu0 0.0
    %180 = vmatpush.xpose.msra.mxu0 0.0
    %181 = vmatpush.xpose.msra.mxu0 %v63
    %182 = vmatpush.xpose.msra.mxu0 %v39
    %183 = vmatmul.f32.gmra.mxu0 %v96
    %v184 = vpop.f32.mrf.mxu0
    %v185 = vadd.f32 %v165, %v184
    %186 = vdwg.mxu0
    %187 = vmatpush.xpose.msra.mxu0 0.0
    %188 = vmatpush.xpose.msra.mxu0 0.0
    %189 = vmatpush.xpose.msra.mxu0 0.0
    %190 = vmatpush.xpose.msra.mxu0 0.0
    %191 = vmatpush.xpose.msra.mxu0 0.0
    %192 = vmatpush.xpose.msra.mxu0 0.0
    %193 = vmatpush.xpose.msra.mxu0 0.0
    %194 = vmatpush.xpose.msra.mxu0 0.0
    %195 = vmatpush.xpose.msra.mxu0 0.0
    %196 = vmatpush.xpose.msra.mxu0 0.0
    %197 = vmatpush.xpose.msra.mxu0 0.0
    %198 = vmatpush.xpose.msra.mxu0 0.0
    %199 = vmatpush.xpose.msra.mxu0 0.0
    %200 = vmatpush.xpose.msra.mxu0 0.0
    %201 = vmatpush.xpose.msra.mxu0 %v64
    %202 = vmatpush.xpose.msra.mxu0 %v40
    %203 = vmatmul.f32.gmra.mxu0 %v97
    %v204 = vpop.f32.mrf.mxu0
    %v205 = vadd.f32 %v185, %v204
    %206 = vdwg.mxu0
    %207 = vmatpush.xpose.msra.mxu0 0.0
    %208 = vmatpush.xpose.msra.mxu0 0.0
    %209 = vmatpush.xpose.msra.mxu0 0.0
    %210 = vmatpush.xpose.msra.mxu0 0.0
    %211 = vmatpush.xpose.msra.mxu0 0.0
    %212 = vmatpush.xpose.msra.mxu0 0.0
    %213 = vmatpush.xpose.msra.mxu0 0.0
    %214 = vmatpush.xpose.msra.mxu0 0.0
    %215 = vmatpush.xpose.msra.mxu0 0.0
    %216 = vmatpush.xpose.msra.mxu0 0.0
    %217 = vmatpush.xpose.msra.mxu0 0.0
    %218 = vmatpush.xpose.msra.mxu0 0.0
    %219 = vmatpush.xpose.msra.mxu0 0.0
    %220 = vmatpush.xpose.msra.mxu0 0.0
    %221 = vmatpush.xpose.msra.mxu0 %v65
    %222 = vmatpush.xpose.msra.mxu0 %v41
    %223 = vmatmul.f32.gmra.mxu0 %v98
    %v224 = vpop.f32.mrf.mxu0
    %v225 = vadd.f32 %v205, %v224
    %226 = vdwg.mxu0
    %227 = vmatpush.xpose.msra.mxu0 0.0
    %228 = vmatpush.xpose.msra.mxu0 0.0
    %229 = vmatpush.xpose.msra.mxu0 0.0
    %230 = vmatpush.xpose.msra.mxu0 0.0
    %231 = vmatpush.xpose.msra.mxu0 0.0
    %232 = vmatpush.xpose.msra.mxu0 0.0
    %233 = vmatpush.xpose.msra.mxu0 0.0
    %234 = vmatpush.xpose.msra.mxu0 0.0
    %235 = vmatpush.xpose.msra.mxu0 0.0
    %236 = vmatpush.xpose.msra.mxu0 0.0
    %237 = vmatpush.xpose.msra.mxu0 0.0
    %238 = vmatpush.xpose.msra.mxu0 0.0
    %239 = vmatpush.xpose.msra.mxu0 0.0
    %240 = vmatpush.xpose.msra.mxu0 0.0
    %241 = vmatpush.xpose.msra.mxu0 %v66
    %242 = vmatpush.xpose.msra.mxu0 %v42
    %243 = vmatmul.f32.gmra.mxu0 %v99
    %v244 = vpop.f32.mrf.mxu0
    %v245 = vadd.f32 %v225, %v244
    %246 = vdwg.mxu0
    %247 = vmatpush.xpose.msra.mxu0 0.0
    %248 = vmatpush.xpose.msra.mxu0 0.0
    %249 = vmatpush.xpose.msra.mxu0 0.0
    %250 = vmatpush.xpose.msra.mxu0 0.0
    %251 = vmatpush.xpose.msra.mxu0 0.0
    %252 = vmatpush.xpose.msra.mxu0 0.0
    %253 = vmatpush.xpose.msra.mxu0 0.0
    %254 = vmatpush.xpose.msra.mxu0 0.0
    %255 = vmatpush.xpose.msra.mxu0 0.0
    %256 = vmatpush.xpose.msra.mxu0 0.0
    %257 = vmatpush.xpose.msra.mxu0 0.0
    %258 = vmatpush.xpose.msra.mxu0 0.0
    %259 = vmatpush.xpose.msra.mxu0 0.0
    %260 = vmatpush.xpose.msra.mxu0 0.0
    %261 = vmatpush.xpose.msra.mxu0 %v67
    %262 = vmatpush.xpose.msra.mxu0 %v43
    %263 = vmatmul.f32.gmra.mxu0 %v100
    %v264 = vpop.f32.mrf.mxu0
    %v265 = vadd.f32 %v245, %v264
    %266 = vdwg.mxu0
    %267 = vmatpush.xpose.msra.mxu0 0.0
    %268 = vmatpush.xpose.msra.mxu0 0.0
    %269 = vmatpush.xpose.msra.mxu0 0.0
    %270 = vmatpush.xpose.msra.mxu0 0.0
    %271 = vmatpush.xpose.msra.mxu0 0.0
    %272 = vmatpush.xpose.msra.mxu0 0.0
    %273 = vmatpush.xpose.msra.mxu0 0.0
    %274 = vmatpush.xpose.msra.mxu0 0.0
    %275 = vmatpush.xpose.msra.mxu0 0.0
    %276 = vmatpush.xpose.msra.mxu0 0.0
    %277 = vmatpush.xpose.msra.mxu0 0.0
    %278 = vmatpush.xpose.msra.mxu0 0.0
    %279 = vmatpush.xpose.msra.mxu0 0.0
    %280 = vmatpush.xpose.msra.mxu0 0.0
    %281 = vmatpush.xpose.msra.mxu0 %v68
    %282 = vmatpush.xpose.msra.mxu0 %v44
    %283 = vmatmul.f32.gmra.mxu0 %v101
    %v284 = vpop.f32.mrf.mxu0
    %v285 = vadd.f32 %v265, %v284
    %286 = vdwg.mxu0
    %287 = vmatpush.xpose.msra.mxu0 0.0
    %288 = vmatpush.xpose.msra.mxu0 0.0
    %289 = vmatpush.xpose.msra.mxu0 0.0
    %290 = vmatpush.xpose.msra.mxu0 0.0
    %291 = vmatpush.xpose.msra.mxu0 0.0
    %292 = vmatpush.xpose.msra.mxu0 0.0
    %293 = vmatpush.xpose.msra.mxu0 0.0
    %294 = vmatpush.xpose.msra.mxu0 0.0
    %295 = vmatpush.xpose.msra.mxu0 0.0
    %296 = vmatpush.xpose.msra.mxu0 0.0
    %297 = vmatpush.xpose.msra.mxu0 0.0
    %298 = vmatpush.xpose.msra.mxu0 0.0
    %299 = vmatpush.xpose.msra.mxu0 0.0
    %300 = vmatpush.xpose.msra.mxu0 0.0
    %301 = vmatpush.xpose.msra.mxu0 %v69
    %302 = vmatpush.xpose.msra.mxu0 %v45
    %303 = vmatmul.f32.gmra.mxu0 %v102
    %v304 = vpop.f32.mrf.mxu0
    %v305 = vadd.f32 %v285, %v304
    %306 = vdwg.mxu0
    %307 = vmatpush.xpose.msra.mxu0 0.0
    %308 = vmatpush.xpose.msra.mxu0 0.0
    %309 = vmatpush.xpose.msra.mxu0 0.0
    %310 = vmatpush.xpose.msra.mxu0 0.0
    %311 = vmatpush.xpose.msra.mxu0 0.0
    %312 = vmatpush.xpose.msra.mxu0 0.0
    %313 = vmatpush.xpose.msra.mxu0 0.0
    %314 = vmatpush.xpose.msra.mxu0 0.0
    %315 = vmatpush.xpose.msra.mxu0 0.0
    %316 = vmatpush.xpose.msra.mxu0 0.0
    %317 = vmatpush.xpose.msra.mxu0 0.0
    %318 = vmatpush.xpose.msra.mxu0 0.0
    %319 = vmatpush.xpose.msra.mxu0 0.0
    %320 = vmatpush.xpose.msra.mxu0 0.0
    %321 = vmatpush.xpose.msra.mxu0 %v70
    %322 = vmatpush.xpose.msra.mxu0 %v46
    %323 = vmatmul.f32.gmra.mxu0 %v105
    %v324 = vpop.f32.mrf.mxu0
    %v325 = vadd.f32 %v305, %v324
    %326 = vdwg.mxu0
    %327 = vmatpush.xpose.msra.mxu0 0.0
    %328 = vmatpush.xpose.msra.mxu0 0.0
    %329 = vmatpush.xpose.msra.mxu0 0.0
    %330 = vmatpush.xpose.msra.mxu0 0.0
    %331 = vmatpush.xpose.msra.mxu0 0.0
    %332 = vmatpush.xpose.msra.mxu0 0.0
    %333 = vmatpush.xpose.msra.mxu0 0.0
    %334 = vmatpush.xpose.msra.mxu0 0.0
    %335 = vmatpush.xpose.msra.mxu0 0.0
    %336 = vmatpush.xpose.msra.mxu0 0.0
    %337 = vmatpush.xpose.msra.mxu0 0.0
    %338 = vmatpush.xpose.msra.mxu0 0.0
    %339 = vmatpush.xpose.msra.mxu0 0.0
    %340 = vmatpush.xpose.msra.mxu0 0.0
    %341 = vmatpush.xpose.msra.mxu0 %v71
    %342 = vmatpush.xpose.msra.mxu0 %v47
    %343 = vmatmul.f32.gmra.mxu0 %v106
    %v344 = vpop.f32.mrf.mxu0
    %v345 = vadd.f32 %v325, %v344
    %346 = vdwg.mxu0
    %347 = vmatpush.xpose.msra.mxu0 0.0
    %348 = vmatpush.xpose.msra.mxu0 0.0
    %349 = vmatpush.xpose.msra.mxu0 0.0
    %350 = vmatpush.xpose.msra.mxu0 0.0
    %351 = vmatpush.xpose.msra.mxu0 0.0
    %352 = vmatpush.xpose.msra.mxu0 0.0
    %353 = vmatpush.xpose.msra.mxu0 0.0
    %354 = vmatpush.xpose.msra.mxu0 0.0
    %355 = vmatpush.xpose.msra.mxu0 0.0
    %356 = vmatpush.xpose.msra.mxu0 0.0
    %357 = vmatpush.xpose.msra.mxu0 0.0
    %358 = vmatpush.xpose.msra.mxu0 0.0
    %359 = vmatpush.xpose.msra.mxu0 0.0
    %360 = vmatpush.xpose.msra.mxu0 0.0
    %361 = vmatpush.xpose.msra.mxu0 %v72
    %362 = vmatpush.xpose.msra.mxu0 %v48
    %363 = vmatmul.f32.gmra.mxu0 %v107
    %v364 = vpop.f32.mrf.mxu0
    %v365 = vadd.f32 %v345, %v364
    %366 = vdwg.mxu0
    %367 = vmatpush.xpose.msra.mxu0 0.0
    %368 = vmatpush.xpose.msra.mxu0 0.0
    %369 = vmatpush.xpose.msra.mxu0 0.0
    %370 = vmatpush.xpose.msra.mxu0 0.0
    %371 = vmatpush.xpose.msra.mxu0 0.0
    %372 = vmatpush.xpose.msra.mxu0 0.0
    %373 = vmatpush.xpose.msra.mxu0 0.0
    %374 = vmatpush.xpose.msra.mxu0 0.0
    %375 = vmatpush.xpose.msra.mxu0 0.0
    %376 = vmatpush.xpose.msra.mxu0 0.0
    %377 = vmatpush.xpose.msra.mxu0 0.0
    %378 = vmatpush.xpose.msra.mxu0 0.0
    %379 = vmatpush.xpose.msra.mxu0 0.0
    %380 = vmatpush.xpose.msra.mxu0 0.0
    %381 = vmatpush.xpose.msra.mxu0 %v73
    %382 = vmatpush.xpose.msra.mxu0 %v49
    %383 = vmatmul.f32.gmra.mxu0 %v108
    %v384 = vpop.f32.mrf.mxu0
    %v385 = vadd.f32 %v365, %v384
    %386 = vdwg.mxu0
    %387 = vmatpush.xpose.msra.mxu0 0.0
    %388 = vmatpush.xpose.msra.mxu0 0.0
    %389 = vmatpush.xpose.msra.mxu0 0.0
    %390 = vmatpush.xpose.msra.mxu0 0.0
    %391 = vmatpush.xpose.msra.mxu0 0.0
    %392 = vmatpush.xpose.msra.mxu0 0.0
    %393 = vmatpush.xpose.msra.mxu0 0.0
    %394 = vmatpush.xpose.msra.mxu0 0.0
    %395 = vmatpush.xpose.msra.mxu0 0.0
    %396 = vmatpush.xpose.msra.mxu0 0.0
    %397 = vmatpush.xpose.msra.mxu0 0.0
    %398 = vmatpush.xpose.msra.mxu0 0.0
    %399 = vmatpush.xpose.msra.mxu0 0.0
    %400 = vmatpush.xpose.msra.mxu0 0.0
    %401 = vmatpush.xpose.msra.mxu0 %v74
    %402 = vmatpush.xpose.msra.mxu0 %v50
    %403 = vmatmul.f32.gmra.mxu0 %v109
    %v404 = vpop.f32.mrf.mxu0
    %v405 = vadd.f32 %v385, %v404
    %406 = vdwg.mxu0
    %407 = vmatpush.xpose.msra.mxu0 0.0
    %408 = vmatpush.xpose.msra.mxu0 0.0
    %409 = vmatpush.xpose.msra.mxu0 0.0
    %410 = vmatpush.xpose.msra.mxu0 0.0
    %411 = vmatpush.xpose.msra.mxu0 0.0
    %412 = vmatpush.xpose.msra.mxu0 0.0
    %413 = vmatpush.xpose.msra.mxu0 0.0
    %414 = vmatpush.xpose.msra.mxu0 0.0
    %415 = vmatpush.xpose.msra.mxu0 0.0
    %416 = vmatpush.xpose.msra.mxu0 0.0
    %417 = vmatpush.xpose.msra.mxu0 0.0
    %418 = vmatpush.xpose.msra.mxu0 0.0
    %419 = vmatpush.xpose.msra.mxu0 0.0
    %420 = vmatpush.xpose.msra.mxu0 0.0
    %421 = vmatpush.xpose.msra.mxu0 %v75
    %422 = vmatpush.xpose.msra.mxu0 %v51
    %423 = vmatmul.f32.gmra.mxu0 %v110
    %v424 = vpop.f32.mrf.mxu0
    %v425 = vadd.f32 %v405, %v424
    %426 = vdwg.mxu0
    %427 = vmatpush.xpose.msra.mxu0 0.0
    %428 = vmatpush.xpose.msra.mxu0 0.0
    %429 = vmatpush.xpose.msra.mxu0 0.0
    %430 = vmatpush.xpose.msra.mxu0 0.0
    %431 = vmatpush.xpose.msra.mxu0 0.0
    %432 = vmatpush.xpose.msra.mxu0 0.0
    %433 = vmatpush.xpose.msra.mxu0 0.0
    %434 = vmatpush.xpose.msra.mxu0 0.0
    %435 = vmatpush.xpose.msra.mxu0 0.0
    %436 = vmatpush.xpose.msra.mxu0 0.0
    %437 = vmatpush.xpose.msra.mxu0 0.0
    %438 = vmatpush.xpose.msra.mxu0 0.0
    %439 = vmatpush.xpose.msra.mxu0 0.0
    %440 = vmatpush.xpose.msra.mxu0 0.0
    %441 = vmatpush.xpose.msra.mxu0 %v76
    %442 = vmatpush.xpose.msra.mxu0 %v52
    %443 = vmatmul.f32.gmra.mxu0 %v111
    %v444 = vpop.f32.mrf.mxu0
    %v445 = vadd.f32 %v425, %v444
    %446 = vdwg.mxu0
    %447 = vmatpush.xpose.msra.mxu0 0.0
    %448 = vmatpush.xpose.msra.mxu0 0.0
    %449 = vmatpush.xpose.msra.mxu0 0.0
    %450 = vmatpush.xpose.msra.mxu0 0.0
    %451 = vmatpush.xpose.msra.mxu0 0.0
    %452 = vmatpush.xpose.msra.mxu0 0.0
    %453 = vmatpush.xpose.msra.mxu0 0.0
    %454 = vmatpush.xpose.msra.mxu0 0.0
    %455 = vmatpush.xpose.msra.mxu0 0.0
    %456 = vmatpush.xpose.msra.mxu0 0.0
    %457 = vmatpush.xpose.msra.mxu0 0.0
    %458 = vmatpush.xpose.msra.mxu0 0.0
    %459 = vmatpush.xpose.msra.mxu0 0.0
    %460 = vmatpush.xpose.msra.mxu0 0.0
    %461 = vmatpush.xpose.msra.mxu0 %v77
    %462 = vmatpush.xpose.msra.mxu0 %v53
    %463 = vmatmul.f32.gmra.mxu0 %v112
    %v464 = vpop.f32.mrf.mxu0
    %v465 = vadd.f32 %v445, %v464
    %466 = vdwg.mxu0
    %467 = vmatpush.xpose.msra.mxu0 0.0
    %468 = vmatpush.xpose.msra.mxu0 0.0
    %469 = vmatpush.xpose.msra.mxu0 0.0
    %470 = vmatpush.xpose.msra.mxu0 0.0
    %471 = vmatpush.xpose.msra.mxu0 0.0
    %472 = vmatpush.xpose.msra.mxu0 0.0
    %473 = vmatpush.xpose.msra.mxu0 0.0
    %474 = vmatpush.xpose.msra.mxu0 0.0
    %475 = vmatpush.xpose.msra.mxu0 0.0
    %476 = vmatpush.xpose.msra.mxu0 0.0
    %477 = vmatpush.xpose.msra.mxu0 0.0
    %478 = vmatpush.xpose.msra.mxu0 0.0
    %479 = vmatpush.xpose.msra.mxu0 0.0
    %480 = vmatpush.xpose.msra.mxu0 0.0
    %481 = vmatpush.xpose.msra.mxu0 %v78
    %482 = vmatpush.xpose.msra.mxu0 %v54
    %483 = vmatmul.f32.gmra.mxu0 %v115
    %v484 = vpop.f32.mrf.mxu0
    %v485 = vadd.f32 %v465, %v484
    %486 = vdwg.mxu0
    %487 = vmatpush.xpose.msra.mxu0 0.0
    %488 = vmatpush.xpose.msra.mxu0 0.0
    %489 = vmatpush.xpose.msra.mxu0 0.0
    %490 = vmatpush.xpose.msra.mxu0 0.0
    %491 = vmatpush.xpose.msra.mxu0 0.0
    %492 = vmatpush.xpose.msra.mxu0 0.0
    %493 = vmatpush.xpose.msra.mxu0 0.0
    %494 = vmatpush.xpose.msra.mxu0 0.0
    %495 = vmatpush.xpose.msra.mxu0 0.0
    %496 = vmatpush.xpose.msra.mxu0 0.0
    %497 = vmatpush.xpose.msra.mxu0 0.0
    %498 = vmatpush.xpose.msra.mxu0 0.0
    %499 = vmatpush.xpose.msra.mxu0 0.0
    %500 = vmatpush.xpose.msra.mxu0 0.0
    %501 = vmatpush.xpose.msra.mxu0 %v79
    %502 = vmatpush.xpose.msra.mxu0 %v55
    %503 = vmatmul.f32.gmra.mxu0 %v116
    %v504 = vpop.f32.mrf.mxu0
    %v505 = vadd.f32 %v485, %v504
    %506 = vdwg.mxu0
    %507 = vmatpush.xpose.msra.mxu0 0.0
    %508 = vmatpush.xpose.msra.mxu0 0.0
    %509 = vmatpush.xpose.msra.mxu0 0.0
    %510 = vmatpush.xpose.msra.mxu0 0.0
    %511 = vmatpush.xpose.msra.mxu0 0.0
    %512 = vmatpush.xpose.msra.mxu0 0.0
    %513 = vmatpush.xpose.msra.mxu0 0.0
    %514 = vmatpush.xpose.msra.mxu0 0.0
    %515 = vmatpush.xpose.msra.mxu0 0.0
    %516 = vmatpush.xpose.msra.mxu0 0.0
    %517 = vmatpush.xpose.msra.mxu0 0.0
    %518 = vmatpush.xpose.msra.mxu0 0.0
    %519 = vmatpush.xpose.msra.mxu0 0.0
    %520 = vmatpush.xpose.msra.mxu0 0.0
    %521 = vmatpush.xpose.msra.mxu0 %v80
    %522 = vmatpush.xpose.msra.mxu0 %v56
    %523 = vmatmul.f32.gmra.mxu0 %v117
    %v524 = vpop.f32.mrf.mxu0
    %v525 = vadd.f32 %v505, %v524
    %526 = vdwg.mxu0
    %527 = vmatpush.xpose.msra.mxu0 0.0
    %528 = vmatpush.xpose.msra.mxu0 0.0
    %529 = vmatpush.xpose.msra.mxu0 0.0
    %530 = vmatpush.xpose.msra.mxu0 0.0
    %531 = vmatpush.xpose.msra.mxu0 0.0
    %532 = vmatpush.xpose.msra.mxu0 0.0
    %533 = vmatpush.xpose.msra.mxu0 0.0
    %534 = vmatpush.xpose.msra.mxu0 0.0
    %535 = vmatpush.xpose.msra.mxu0 0.0
    %536 = vmatpush.xpose.msra.mxu0 0.0
    %537 = vmatpush.xpose.msra.mxu0 0.0
    %538 = vmatpush.xpose.msra.mxu0 0.0
    %539 = vmatpush.xpose.msra.mxu0 0.0
    %540 = vmatpush.xpose.msra.mxu0 0.0
    %541 = vmatpush.xpose.msra.mxu0 %v81
    %542 = vmatpush.xpose.msra.mxu0 %v57
    %543 = vmatmul.f32.gmra.mxu0 %v118
    %v544 = vpop.f32.mrf.mxu0
    %v545 = vadd.f32 %v525, %v544
    %546 = vdwg.mxu0
    %547 = vmatpush.xpose.msra.mxu0 0.0
    %548 = vmatpush.xpose.msra.mxu0 0.0
    %549 = vmatpush.xpose.msra.mxu0 0.0
    %550 = vmatpush.xpose.msra.mxu0 0.0
    %551 = vmatpush.xpose.msra.mxu0 0.0
    %552 = vmatpush.xpose.msra.mxu0 0.0
    %553 = vmatpush.xpose.msra.mxu0 0.0
    %554 = vmatpush.xpose.msra.mxu0 0.0
    %555 = vmatpush.xpose.msra.mxu0 0.0
    %556 = vmatpush.xpose.msra.mxu0 0.0
    %557 = vmatpush.xpose.msra.mxu0 0.0
    %558 = vmatpush.xpose.msra.mxu0 0.0
    %559 = vmatpush.xpose.msra.mxu0 0.0
    %560 = vmatpush.xpose.msra.mxu0 0.0
    %561 = vmatpush.xpose.msra.mxu0 %v82
    %562 = vmatpush.xpose.msra.mxu0 %v58
    %563 = vmatmul.f32.gmra.mxu0 %v119
    %v564 = vpop.f32.mrf.mxu0
    %v565 = vadd.f32 %v545, %v564
    %566 = vdwg.mxu0
    %567 = vmatpush.xpose.msra.mxu0 0.0
    %568 = vmatpush.xpose.msra.mxu0 0.0
    %569 = vmatpush.xpose.msra.mxu0 0.0
    %570 = vmatpush.xpose.msra.mxu0 0.0
    %571 = vmatpush.xpose.msra.mxu0 0.0
    %572 = vmatpush.xpose.msra.mxu0 0.0
    %573 = vmatpush.xpose.msra.mxu0 0.0
    %574 = vmatpush.xpose.msra.mxu0 0.0
    %575 = vmatpush.xpose.msra.mxu0 0.0
    %576 = vmatpush.xpose.msra.mxu0 0.0
    %577 = vmatpush.xpose.msra.mxu0 0.0
    %578 = vmatpush.xpose.msra.mxu0 0.0
    %579 = vmatpush.xpose.msra.mxu0 0.0
    %580 = vmatpush.xpose.msra.mxu0 0.0
    %581 = vmatpush.xpose.msra.mxu0 %v83
    %582 = vmatpush.xpose.msra.mxu0 %v59
    %583 = vmatmul.f32.gmra.mxu0 %v120
    %v584 = vpop.f32.mrf.mxu0
    %v585 = vadd.f32 %v565, %v584
    %586 = vdwg.mxu0
    %587 = vmatpush.xpose.msra.mxu0 0.0
    %588 = vmatpush.xpose.msra.mxu0 0.0
    %589 = vmatpush.xpose.msra.mxu0 0.0
    %590 = vmatpush.xpose.msra.mxu0 0.0
    %591 = vmatpush.xpose.msra.mxu0 0.0
    %592 = vmatpush.xpose.msra.mxu0 0.0
    %593 = vmatpush.xpose.msra.mxu0 0.0
    %594 = vmatpush.xpose.msra.mxu0 0.0
    %595 = vmatpush.xpose.msra.mxu0 0.0
    %596 = vmatpush.xpose.msra.mxu0 0.0
    %597 = vmatpush.xpose.msra.mxu0 0.0
    %598 = vmatpush.xpose.msra.mxu0 0.0
    %599 = vmatpush.xpose.msra.mxu0 0.0
    %600 = vmatpush.xpose.msra.mxu0 0.0
    %601 = vmatpush.xpose.msra.mxu0 %v84
    %602 = vmatpush.xpose.msra.mxu0 %v60
    %603 = vmatmul.f32.gmra.mxu0 %v121
    %v604 = vpop.f32.mrf.mxu0
    %v605 = vadd.f32 %v585, %v604
    %606 = vdwg.mxu0
    %607 = vmatpush.xpose.msra.mxu0 0.0
    %608 = vmatpush.xpose.msra.mxu0 0.0
    %609 = vmatpush.xpose.msra.mxu0 0.0
    %610 = vmatpush.xpose.msra.mxu0 0.0
    %611 = vmatpush.xpose.msra.mxu0 0.0
    %612 = vmatpush.xpose.msra.mxu0 0.0
    %613 = vmatpush.xpose.msra.mxu0 0.0
    %614 = vmatpush.xpose.msra.mxu0 0.0
    %615 = vmatpush.xpose.msra.mxu0 0.0
    %616 = vmatpush.xpose.msra.mxu0 0.0
    %617 = vmatpush.xpose.msra.mxu0 0.0
    %618 = vmatpush.xpose.msra.mxu0 0.0
    %619 = vmatpush.xpose.msra.mxu0 0.0
    %620 = vmatpush.xpose.msra.mxu0 0.0
    %621 = vmatpush.xpose.msra.mxu0 %v85
    %622 = vmatpush.xpose.msra.mxu0 %v61
    %623 = vmatmul.f32.gmra.mxu0 %v122
    %v624 = vpop.f32.mrf.mxu0
    %v625 = vadd.f32 %v605, %v624
    %626 = vdwg.mxu0
    %vm627 = vcmask 74752
    %v628 = vsel %vm627, %v625, -inf
    %629 = vmax.xlane.f32.xlu0 %v628
    %v630 = vpop.xlane.xlu0 %629
    %v631 = vsub.f32 %v625, %v630
    %v632 = vmul.f32 %v631, 1.442695
    %v633 = vpow.pop %v632
    %v634 = vsel %vm627, %v633, 0.0
    %635 = vadd.xlane.f32.xlu0 %v634
    %v636 = vpop.xlane.xlu0 %635
    %v637 = vrcp.pop %v636
    %v638 = vmul.f32 %v636, %v637
    %v639 = vsub.f32 1.0, %v638
    %v640 = vmul.f32 %v637, %v639
    %v641 = vadd.f32 %v637, %v640
    %vm642 = vweird.f32 %v636
    %vm643 = vweird.f32 %v637
    %vm644 = vmor %vm642, %vm643
    %v645 = vsel %vm644, %v637, %v641
    %v646 = vand.u32 2147483647, %v636
    %vm647 = vcmp.eq.f32.partialorder %v646, 8.507059e+37
    %v648 = vand.u32 %v636, 2147483648
    %v649 = vor.u32 1.1754944e-38, %v648
    %v650 = vsel %vm647, %v649, %v645
    %v651 = vmul.f32 %v633, %v650
    %v652 = vsel %vm627, %v651, 0.0
    %v653 = vrot.slane %v652, 4
    %v654 = vadd.f32 %v652, %v653
    %v655 = vrot.slane %v654, 2
    %v656 = vadd.f32 %v654, %v655
    %v657 = vrot.slane %v656, 1
    %v658 = vadd.f32 %v656, %v657
    %v659 = vrcp.pop 2.0
    %v660 = vmul.f32 2.0, %v659
    %v661 = vsub.f32 1.0, %v660
    %v662 = vmul.f32 %v659, %v661
    %v663 = vadd.f32 %v659, %v662
    %vm664 = vweird.f32 %v659
    %v665 = vsel %vm664, %v659, %v663
    %v666 = vmul.f32 %v658, %v665
    %v667 = vsub.f32 %v666, 0.1
    %v668 = vmul.f32 %v667, %v667
    %vm669 = vcmask 73728
    %v670 = vsel %vm669, %v668, 0.0
    %671 = vadd.xlane.f32.xlu0 %v670
    %v672 = vpop.xlane.xlu0 %671
    %v673 = vrot.slane %v672, 4
    %v674 = vadd.f32 %v672, %v673
    %v675 = vrot.slane %v674, 2
    %v676 = vadd.f32 %v674, %v675
    %v677 = vrot.slane %v676, 1
    %v678 = vadd.f32 %v676, %v677
    %s679 = vtos %v678
    %v680 = vrcp.pop 10.0
    %v681 = vmul.f32 10.0, %v680
    %v682 = vsub.f32 1.0, %v681
    %v683 = vmul.f32 %v680, %v682
    %v684 = vadd.f32 %v680, %v683
    %vm685 = vweird.f32 %v680
    %v686 = vsel %vm685, %v680, %v684
    %s687 = vtos %v686
    %s688 = smul.f32 %s679, %s687
    %s689 = scalar_lea.smem [#allocation8], 0
    %690 = sst [smem:[%s689]] %s688
    %v691 = vsel %vm669, %v651, -inf
    %692 = vmax.xlane.f32.xlu0 %v691
    %v693 = vpop.xlane.xlu0 %692
    %v694 = vrot.slane %v693, 4
    %v695 = vmax.f32 %v693, %v694
    %v696 = vrot.slane %v695, 2
    %v697 = vmax.f32 %v695, %v696
    %v698 = vrot.slane %v697, 1
    %v699 = vmax.f32 %v697, %v698
    %s700 = vtos %v699
    %s701 = scalar_lea.smem [#allocation6], 0
    %702 = sst [smem:[%s701]] %s700
    %v703 = vlaneseq
    %v704 = vand.u32 %v703, 127
    %v705 = vstv %s700
    %vm706 = vcmp.eq.f32.partialorder %v651, %v705
    %v707 = vsel %vm706, %v704, 10
    %v708 = vsel %vm669, %v707, 2147483647
    %v709 = vand.u32 %v708, 65535
    %v710 = vshra.s32 %v708, 16
    %v711 = vcvt.s32.f32 %v709
    %v712 = vcvt.s32.f32 %v710
    %713 = vmin.xlane.f32.xlu0 %v712
    %v714 = vpop.xlane.xlu0 %713
    %vm715 = vcmp.eq.f32.partialorder %v712, %v714
    %v716 = vsel %vm715, %v711, inf
    %717 = vmin.xlane.f32.xlu0 %v716
    %v718 = vpop.xlane.xlu0 %717
    %v719 = vcvt.f32.s32 %v718
    %v720 = vcvt.f32.s32 %v714
    %v721 = vshll.u32 %v720, 16
    %v722 = vadd.s32 %v721, %v719
    %v723 = vrot.slane %v722, 4
    %vm724 = vcmp.lt.s32.totalorder %v722, %v723
    %v725 = vsel %vm724, %v722, %v723
    %v726 = vrot.slane %v725, 2
    %vm727 = vcmp.lt.s32.totalorder %v725, %v726
    %v728 = vsel %vm727, %v725, %v726
    %v729 = vrot.slane %v728, 1
    %vm730 = vcmp.lt.s32.totalorder %v728, %v729
    %v731 = vsel %vm730, %v728, %v729
    %s732 = vtos %v731
    %s733 = scalar_lea.smem [#allocation5], 0
    %734 = sst [smem:[%s733]] %s732
    // Predicated region
    $region14: #{routed_cnn_forward.3} parent=1 // pred_check
      _
    $region15: #{routed_cnn_forward.3} parent=1 // pred_check_branch
      %736 = sbr.rel (0) target = $region17
    $region16: #{routed_cnn_forward.3} parent=1 // pred_region
      %738 = vsyncadd [#allocation4], 0
      %s740 = sshll.u32 %s2, 4
      %s741 = int_to_ptr.hbm [resolvable:$true] %s740
      %743 = dma.smem_to_hbm [#allocation5], 16, %s741, [#allocation4]
    $region17: #{routed_cnn_forward.3} parent=1 // pred_fallthru
      _
    // Predicated region
    $region18: #{routed_cnn_forward.3} parent=1 // pred_check
      _
    $region19: #{routed_cnn_forward.3} parent=1 // pred_check_branch
      %745 = sbr.rel (0) target = $region21
    $region20: #{routed_cnn_forward.3} parent=1 // pred_region
      %747 = vsyncadd [#allocation7], 0
      %s749 = sshll.u32 %s3, 4
      %s750 = int_to_ptr.hbm [resolvable:$true] %s749
      %752 = dma.smem_to_hbm [#allocation6], 16, %s750, [#allocation7]
    $region21: #{routed_cnn_forward.3} parent=1 // pred_fallthru
      _
    // Predicated region
    $region22: #{routed_cnn_forward.3} parent=1 // pred_check
      _
    $region23: #{routed_cnn_forward.3} parent=1 // pred_check_branch
      %754 = sbr.rel (0) target = $region25
    $region24: #{routed_cnn_forward.3} parent=1 // pred_region
      %756 = vsyncadd [#allocation7], 0
      %s758 = sshll.u32 %s4, 4
      %s759 = int_to_ptr.hbm [resolvable:$true] %s758
      %761 = dma.smem_to_hbm [#allocation8], 16, %s759, [#allocation7]
    $region25: #{routed_cnn_forward.3} parent=1 // pred_fallthru
      _
    // Predicated region
    $region26: #{routed_cnn_forward.3} parent=1 // pred_check
      _
    $region27: #{routed_cnn_forward.3} parent=1 // pred_check_branch
      %763 = sbr.rel (0) target = $region29
    $region28: #{routed_cnn_forward.3} parent=1 // pred_region
      %765 = dma.done [#allocation4], 16
    $region29: #{routed_cnn_forward.3} parent=1 // pred_fallthru
      _
    // Predicated region
    $region30: #{routed_cnn_forward.3} parent=1 // pred_check
      _
    $region31: #{routed_cnn_forward.3} parent=1 // pred_check_branch
      %767 = sbr.rel (0) target = $region33
    $region32: #{routed_cnn_forward.3} parent=1 // pred_region
      %769 = dma.done [#allocation7], 16
    $region33: #{routed_cnn_forward.3} parent=1 // pred_fallthru
      _
    // Predicated region
    $region34: #{routed_cnn_forward.3} parent=1 // pred_check
      _
    $region35: #{routed_cnn_forward.3} parent=1 // pred_check_branch
      %771 = sbr.rel (0) target = $region37
    $region36: #{routed_cnn_forward.3} parent=1 // pred_region
      %773 = dma.done [#allocation7], 16
    $region37: #{routed_cnn_forward.3} parent=1 // pred_fallthru
      _
    %774 = sfence
    %775 = vsyncpa [#allocation3], 1
    %776 = vsyncpa [#allocation4], 1
    %777 = vsyncpa [#allocation7], 1

// kernel: routed_cnn_forward.5
$region0: #{routed_cnn_forward.5}
  #allocation0 [shape = 'u32[]', space=smem, size = 0x4, offset = 0x4, fixed_abs, tag = 'smem constant byte address 0x4 - core index']
  #allocation1 [shape = 'u32[72,128]{1,0:T(1,128)}', space=vmem, size = 0x9000, scoped, tag = 'internal scratch']
  #allocation2 [shape = 'f32[2,128]{1,0:T(2,128)}', space=vmem, size = 0x400, scoped, tag = 'scratch operand']
  %s0 = inlined_call_operand.vmem [shape: f32[2,24576], index: 0, kind: input, shape index: {}]
  %s1 = inlined_call_operand.hbm [shape: bf16[24576,128], index: 1, kind: input, shape index: {}]
  %s2 = inlined_call_operand.hbm [shape: f32[1,128], index: 2, kind: input, shape index: {}]
  %s3 = inlined_call_operand.vmem [shape: f32[128,10], index: 3, kind: input, shape index: {}]
  %s4 = inlined_call_operand.hbm [shape: f32[1,10], index: 4, kind: input, shape index: {}]
  %s5 = inlined_call_operand.hbm [shape: f32[2,10], index: 5, kind: output, shape index: {}]
  %s6 = sld [smem:[#allocation0]]
  $region73: #{routed_cnn_forward.5} parent=0
    _
  %s8 = ssub.s32 1, %s6
  %s9 = scalar_select 0, %s8, %s6
  $region1: #{routed_cnn_forward.5} parent=0
    #allocation3 [shape = 'u8[4194304]{0}', space=vmem, size = 0x400000, scoped, tag = 'input window, operand 1']
    #allocation4 [shape = 's32[2]{0}', space=sflag, size = 0x8, scoped, tag = 'scoped memory for routed_cnn_forward.5']
    #allocation5 [shape = 's32[2]{0}', space=sflag, size = 0x8, scoped, tag = 'scoped memory for routed_cnn_forward.5']
    #allocation6 [shape = 'u8[512]{0}', space=vmem, size = 0x400, scoped, tag = 'input window, operand 2, single buffered']
    #allocation7 [shape = 's32[1]{0}', space=sflag, size = 0x4, scoped, tag = 'scoped memory for routed_cnn_forward.5']
    #allocation8 [shape = 'u8[512]{0}', space=vmem, size = 0x400, scoped, tag = 'input window, operand 4, single buffered']
    #allocation9 [shape = 'u8[1024]{0}', space=vmem, size = 0x400, scoped, tag = 'output window, operand 0, single buffered']
    %10 = vsyncpa [#allocation4], 0
    %s11 = scalar_lea.sflag [#allocation4], 1
    %12 = vsyncpa %s11, 0
    %13 = vsyncpa [#allocation7], 0
    %14 = vsyncpa [#allocation5], 0
    loop: start=0, step=1, limit=5
    $region2: #{routed_cnn_forward.5} parent=1 // loop_pre_header
      _
    $region3: #{routed_cnn_forward.5} parent=1 // loop_header
      %s16 = sphi 0, %s20
      %p17 = scmp.ge.s32.totalorder %s16, 5
      %s26 = sphi 0, %s28
      %s29 = sphi 0, %s26
      %s30 = sphi 0, %s29
      %s46 = sphi 0, %s30
      %s52 = sphi 0, %s54
      %s55 = sphi 0, %s52
      %s56 = sphi 0, %s55
      %s72 = sphi 0, %s56
      %s76 = sphi 0, %s76
      %s78 = sphi 0, %s76
      %s79 = sphi 0, %s78
      %s93 = sphi 0, %s79
      %s97 = sphi 0, %s97
      %s99 = sphi 0, %s97
      %s100 = sphi 0, %s99
      %s114 = sphi 0, %s100
      %s118 = sphi 0, %s118
      %s120 = sphi 0, %s118
      %s121 = sphi 0, %s120
      %s135 = sphi 0, %s121
      %s139 = sphi 0, %s139
      %s141 = sphi 0, %s139
      %s142 = sphi 0, %s141
      %s156 = sphi 0, %s142
    $region4: #{routed_cnn_forward.5} parent=1 // loop_header_branch
      %19 = sbr.rel (%p17) target = $region8
    $region5: #{routed_cnn_forward.5} parent=1 // loop_body
      %s21 = ssub.s32 %s16, 1
      %s22 = ssub.s32 %s16, 2
      %s23 = sadd.s32 %s16, 1
      %s24 = ssub.s32 %s16, %s23
      %p25 = scmp.eq.s32.totalorder %s24, 0
      %s27 = sadd.s32 %s26, 1
      %s28 = scalar_select %p25, %s26, %s27
      %p31 = pneg %p25
      %p32 = scmp.eq.s32.totalorder %s16, 2
      %p33 = por %p31, %p32
      %p34 = scmp.ne.s32.totalorder %s26, %s29
      %p35 = scmp.eq.s32.totalorder %s16, 0
      %p36 = por %p34, %p35
      %p37 = scmp.ne.s32.totalorder %s26, %s29
      %p38 = scmp.eq.s32.totalorder %s21, 2
      %p39 = por %p37, %p38
      %p40 = scmp.ne.s32.totalorder %s29, %s30
      %p41 = scmp.eq.s32.totalorder %s21, 0
      %p42 = por %p40, %p41
      %p43 = scmp.ne.s32.totalorder %s29, %s30
      %p44 = scmp.eq.s32.totalorder %s22, 2
      %p45 = por %p43, %p44
      %p47 = scmp.ne.s32.totalorder %s30, %s46
      %p48 = scmp.eq.s32.totalorder %s22, 0
      %p49 = por %p47, %p48
      %s50 = ssub.s32 %s16, %s23
      %p51 = scmp.eq.s32.totalorder %s50, 0
      %s53 = sadd.s32 %s52, 1
      %s54 = scalar_select %p51, %s52, %s53
      %p57 = pneg %p51
      %p58 = scmp.eq.s32.totalorder %s16, 2
      %p59 = por %p57, %p58
      %p60 = scmp.ne.s32.totalorder %s52, %s55
      %p61 = scmp.eq.s32.totalorder %s16, 0
      %p62 = por %p60, %p61
      %p63 = scmp.ne.s32.totalorder %s52, %s55
      %p64 = scmp.eq.s32.totalorder %s21, 2
      %p65 = por %p63, %p64
      %p66 = scmp.ne.s32.totalorder %s55, %s56
      %p67 = scmp.eq.s32.totalorder %s21, 0
      %p68 = por %p66, %p67
      %p69 = scmp.ne.s32.totalorder %s55, %s56
      %p70 = scmp.eq.s32.totalorder %s22, 2
      %p71 = por %p69, %p70
      %p73 = scmp.ne.s32.totalorder %s56, %s72
      %p74 = scmp.eq.s32.totalorder %s22, 0
      %p75 = por %p73, %p74
      %s77 = sadd.s32 %s76, 1
      %p80 = scmp.eq.s32.totalorder %s16, 2
      %p81 = scmp.ne.s32.totalorder %s76, %s78
      %p82 = scmp.eq.s32.totalorder %s16, 0
      %p83 = por %p81, %p82
      %p84 = scmp.ne.s32.totalorder %s76, %s78
      %p85 = scmp.eq.s32.totalorder %s21, 2
      %p86 = por %p84, %p85
      %p87 = scmp.ne.s32.totalorder %s78, %s79
      %p88 = scmp.eq.s32.totalorder %s21, 0
      %p89 = por %p87, %p88
      %p90 = scmp.ne.s32.totalorder %s78, %s79
      %p91 = scmp.eq.s32.totalorder %s22, 2
      %p92 = por %p90, %p91
      %p94 = scmp.ne.s32.totalorder %s79, %s93
      %p95 = scmp.eq.s32.totalorder %s22, 0
      %p96 = por %p94, %p95
      %s98 = sadd.s32 %s97, 1
      %p101 = scmp.eq.s32.totalorder %s16, 2
      %p102 = scmp.ne.s32.totalorder %s97, %s99
      %p103 = scmp.eq.s32.totalorder %s16, 0
      %p104 = por %p102, %p103
      %p105 = scmp.ne.s32.totalorder %s97, %s99
      %p106 = scmp.eq.s32.totalorder %s21, 2
      %p107 = por %p105, %p106
      %p108 = scmp.ne.s32.totalorder %s99, %s100
      %p109 = scmp.eq.s32.totalorder %s21, 0
      %p110 = por %p108, %p109
      %p111 = scmp.ne.s32.totalorder %s99, %s100
      %p112 = scmp.eq.s32.totalorder %s22, 2
      %p113 = por %p111, %p112
      %p115 = scmp.ne.s32.totalorder %s100, %s114
      %p116 = scmp.eq.s32.totalorder %s22, 0
      %p117 = por %p115, %p116
      %s119 = sadd.s32 %s118, 1
      %p122 = scmp.eq.s32.totalorder %s16, 2
      %p123 = scmp.ne.s32.totalorder %s118, %s120
      %p124 = scmp.eq.s32.totalorder %s16, 0
      %p125 = por %p123, %p124
      %p126 = scmp.ne.s32.totalorder %s118, %s120
      %p127 = scmp.eq.s32.totalorder %s21, 2
      %p128 = por %p126, %p127
      %p129 = scmp.ne.s32.totalorder %s120, %s121
      %p130 = scmp.eq.s32.totalorder %s21, 0
      %p131 = por %p129, %p130
      %p132 = scmp.ne.s32.totalorder %s120, %s121
      %p133 = scmp.eq.s32.totalorder %s22, 2
      %p134 = por %p132, %p133
      %p136 = scmp.ne.s32.totalorder %s121, %s135
      %p137 = scmp.eq.s32.totalorder %s22, 0
      %p138 = por %p136, %p137
      %s140 = sadd.s32 %s139, 1
      %p143 = scmp.eq.s32.totalorder %s16, 2
      %p144 = scmp.ne.s32.totalorder %s139, %s141
      %p145 = scmp.eq.s32.totalorder %s16, 0
      %p146 = por %p144, %p145
      %p147 = scmp.ne.s32.totalorder %s139, %s141
      %p148 = scmp.eq.s32.totalorder %s21, 2
      %p149 = por %p147, %p148
      %p150 = scmp.ne.s32.totalorder %s141, %s142
      %p151 = scmp.eq.s32.totalorder %s21, 0
      %p152 = por %p150, %p151
      %p153 = scmp.ne.s32.totalorder %s141, %s142
      %p154 = scmp.eq.s32.totalorder %s22, 2
      %p155 = por %p153, %p154
      %p157 = scmp.ne.s32.totalorder %s142, %s156
      %p158 = scmp.eq.s32.totalorder %s22, 0
      %p159 = por %p157, %p158
      %p160 = scmp.le.s32.totalorder 1, %s16
      %p161 = scmp.lt.s32.totalorder %s16, 4
      %p162 = pnand %p160, %p161
      %p163 = pneg %p162
      // Predicated region
      $region9: #{routed_cnn_forward.5} parent=5 // pred_check
        _
      $region10: #{routed_cnn_forward.5} parent=5 // pred_check_branch
        %165 = sbr.rel (%p162) target = $region12
      $region11: #{routed_cnn_forward.5} parent=5 // pred_region
        %s166 = ssub.s32 %s16, 1
        // Predicated region
        $region13: #{routed_cnn_forward.5} parent=11 // pred_check
          %p167 = pneg %p89
        $region14: #{routed_cnn_forward.5} parent=11 // pred_check_branch
          %169 = sbr.rel (%p167) target = $region16
        $region15: #{routed_cnn_forward.5} parent=11 // pred_region
          %171 = vsyncadd [#allocation7], 0
          %s173 = sshll.u32 %s2, 4
          %s174 = int_to_ptr.hbm [resolvable:$true] %s173
          %s175 = sshll.u32 [#allocation6], 4
          %s176 = int_to_ptr.vmem [resolvable:$true] %s175
          %178 = dma.hbm_to_vmem [thread:$0]  %s174, 16, %s176, [#allocation7]
        $region16: #{routed_cnn_forward.5} parent=11 // pred_fallthru
          _
        // Predicated region
        $region17: #{routed_cnn_forward.5} parent=11 // pred_check
          %p179 = pneg %p110
        $region18: #{routed_cnn_forward.5} parent=11 // pred_check_branch
          %181 = sbr.rel (%p179) target = $region20
        $region19: #{routed_cnn_forward.5} parent=11 // pred_region
          _
        $region20: #{routed_cnn_forward.5} parent=11 // pred_fallthru
          _
        // Predicated region
        $region21: #{routed_cnn_forward.5} parent=11 // pred_check
          %p182 = pneg %p131
        $region22: #{routed_cnn_forward.5} parent=11 // pred_check_branch
          %184 = sbr.rel (%p182) target = $region24
        $region23: #{routed_cnn_forward.5} parent=11 // pred_region
          %186 = vsyncadd [#allocation7], 0
          %s188 = sshll.u32 %s4, 4
          %s189 = int_to_ptr.hbm [resolvable:$true] %s188
          %s190 = sshll.u32 [#allocation8], 4
          %s191 = int_to_ptr.vmem [resolvable:$true] %s190
          %193 = dma.hbm_to_vmem [thread:$0]  %s189, 16, %s191, [#allocation7]
        $region24: #{routed_cnn_forward.5} parent=11 // pred_fallthru
          _
      $region12: #{routed_cnn_forward.5} parent=5 // pred_fallthru
        _
      %p194 = scmp.lt.s32.totalorder %s16, 3
      // Predicated region
      $region25: #{routed_cnn_forward.5} parent=5 // pred_check
        %p195 = pneg %p194
      $region26: #{routed_cnn_forward.5} parent=5 // pred_check_branch
        %197 = sbr.rel (%p195) target = $region28
      $region27: #{routed_cnn_forward.5} parent=5 // pred_region
        // Predicated region
        $region29: #{routed_cnn_forward.5} parent=27 // pred_check
          %p198 = pneg %p36
        $region30: #{routed_cnn_forward.5} parent=27 // pred_check_branch
          %200 = sbr.rel (%p198) target = $region32
        $region31: #{routed_cnn_forward.5} parent=27 // pred_region
          %s201 = smul.u32 64, %s16
          %p202 = scmp.lt.s32.totalorder %s201, 191
          %s203 = scalar_select %p202, %s201, 191
          %s204 = smul.addr %s203, 2
          %s205 = scalar_lea.vmem %s0, %s204
          %s206 = smul.u32 64, %s16
        $region32: #{routed_cnn_forward.5} parent=27 // pred_fallthru
          _
        // Predicated region
        $region33: #{routed_cnn_forward.5} parent=27 // pred_check
          %p207 = pneg %p62
        $region34: #{routed_cnn_forward.5} parent=27 // pred_check_branch
          %209 = sbr.rel (%p207) target = $region36
        $region35: #{routed_cnn_forward.5} parent=27 // pred_region
          %s210 = sand.u32 %s52, 1
          %s211 = scalar_lea.sflag [#allocation4], %s210
          %s212 = sand.u32 %s52, 1
          %s213 = smul.addr %s212, 4096
          %s214 = scalar_lea.vmem [#allocation3], %s213
          %s215 = smul.u32 1024, %s16
          %217 = vsyncadd %s211, 0
          %s218 = smul.addr %s215, 4
          %s219 = scalar_lea.hbm %s1, %s218
          %s220 = sshll.u32 %s219, 4
          %s221 = int_to_ptr.hbm [resolvable:$true] %s220
          %s222 = sshll.u32 %s214, 4
          %s223 = int_to_ptr.vmem [resolvable:$true] %s222
          %228 = dma.hbm_to_vmem [thread:$0]  %s221, 65536, %s223, %s211, 64, 64, 4
        $region36: #{routed_cnn_forward.5} parent=27 // pred_fallthru
          _
      $region28: #{routed_cnn_forward.5} parent=5 // pred_fallthru
        _
      %p229 = scmp.le.s32.totalorder 1, %s16
      %p230 = scmp.lt.s32.totalorder %s16, 4
      %p231 = pnand %p229, %p230
      %p232 = pneg %p231
      // Predicated region
      $region37: #{routed_cnn_forward.5} parent=5 // pred_check
        _
      $region38: #{routed_cnn_forward.5} parent=5 // pred_check_branch
        %234 = sbr.rel (%p231) target = $region40
      $region39: #{routed_cnn_forward.5} parent=5 // pred_region
        %s235 = ssub.s32 %s16, 1
        %s236 = sand.u32 %s55, 1
        %s237 = scalar_lea.sflag [#allocation4], %s236
        %s238 = sand.u32 %s55, 1
        %s239 = smul.addr %s238, 4096
        %s240 = scalar_lea.vmem [#allocation3], %s239
        // Predicated region
        $region41: #{routed_cnn_forward.5} parent=39 // pred_check
          %p241 = pneg %p68
        $region42: #{routed_cnn_forward.5} parent=39 // pred_check_branch
          %243 = sbr.rel (%p241) target = $region44
        $region43: #{routed_cnn_forward.5} parent=39 // pred_region
          %245 = dma.done %s237, 65536
        $region44: #{routed_cnn_forward.5} parent=39 // pred_fallthru
          _
        // Predicated region
        $region45: #{routed_cnn_forward.5} parent=39 // pred_check
          %p246 = pneg %p89
        $region46: #{routed_cnn_forward.5} parent=39 // pred_check_branch
          %248 = sbr.rel (%p246) target = $region48
        $region47: #{routed_cnn_forward.5} parent=39 // pred_region
          %250 = dma.done [#allocation7], 16
        $region48: #{routed_cnn_forward.5} parent=39 // pred_fallthru
          _
        // Predicated region
        $region49: #{routed_cnn_forward.5} parent=39 // pred_check
          %p251 = pneg %p131
        $region50: #{routed_cnn_forward.5} parent=39 // pred_check_branch
          %253 = sbr.rel (%p251) target = $region52
        $region51: #{routed_cnn_forward.5} parent=39 // pred_region
          %255 = dma.done [#allocation7], 16
        $region52: #{routed_cnn_forward.5} parent=39 // pred_fallthru
          _
        %s256 = smul.u32 64, %s21
        %p257 = scmp.lt.s32.totalorder %s256, 191
        %s258 = scalar_select %p257, %s256, 191
        %s259 = smul.addr %s258, 2
        %s260 = scalar_lea.vmem %s0, %s259
        %p261 = pneg %p42
        %p262 = pneg %p39
        %s263 = sand.u32 %s55, 1
        %s264 = scalar_lea.sflag [#allocation4], %s263
        %s265 = sand.u32 %s55, 1
        %s266 = smul.addr %s265, 4096
        %s267 = scalar_lea.vmem [#allocation3], %s266
        %p268 = pneg %p68
        %p269 = pneg %p65
        %p270 = pneg %p89
        %p271 = pneg %p86
        %p272 = pneg %p110
        %p273 = pneg %p107
        %p274 = pneg %p131
        %p275 = pneg %p128
        %p276 = pneg %p152
        %p277 = pneg %p149
        %s278 = smul.u32 64, %s21
        %p279 = scmp.lt.s32.totalorder %s278, 191
        %s280 = scalar_select %p279, %s278, 191
        %s281 = smul.addr %s280, 2
        %s282 = scalar_lea.vmem %s0, %s281
        %s283 = smul.u32 64, %s21
        %s284 = smul.u32 1024, %s21
        %p285 = scmp.eq.s32.totalorder %s21, 0
        // Predicated region
        $region53: #{routed_cnn_forward.5} parent=39 // pred_check
          %p286 = pneg %p285
        $region54: #{routed_cnn_forward.5} parent=39 // pred_check_branch
          %288 = sbr.rel (%p286) target = $region56
        $region55: #{routed_cnn_forward.5} parent=39 // pred_region
          %289 = vst [vmem:[#allocation2] sm:$0x3] 0.0
        $region56: #{routed_cnn_forward.5} parent=39 // pred_fallthru
          _
        %v290 = vld [vmem:[#allocation2] sm:$0x3]
        %v291 = vld [vmem:[%s282] sm:$0xff]
        %v292 = vld [vmem:[%s282 + $0x8] sm:$0xff]
        %v293 = vld [vmem:[%s282 + $0x10] sm:$0xff]
        %v294 = vld [vmem:[%s282 + $0x18] sm:$0xff]
        %v295 = vld [vmem:[%s282 + $0x20] sm:$0xff]
        %v296 = vld [vmem:[%s282 + $0x28] sm:$0xff]
        %v297 = vld [vmem:[%s282 + $0x30] sm:$0xff]
        %v298 = vld [vmem:[%s282 + $0x38] sm:$0xff]
        %v299 = vld [vmem:[%s282 + $0x40] sm:$0xff]
        %v300 = vld [vmem:[%s282 + $0x48] sm:$0xff]
        %v301 = vld [vmem:[%s282 + $0x50] sm:$0xff]
        %v302 = vld [vmem:[%s282 + $0x58] sm:$0xff]
        %v303 = vld [vmem:[%s282 + $0x60] sm:$0xff]
        %v304 = vld [vmem:[%s282 + $0x68] sm:$0xff]
        %v305 = vld [vmem:[%s282 + $0x70] sm:$0xff]
        %v306 = vld [vmem:[%s282 + $0x78] sm:$0xff]
        %323 = vst [vmem:[#allocation1] ss:$4 sm:$0xff] %v291
        %s324 = scalar_lea.vmem [#allocation1], 32
        %325 = vst [vmem:[%s324] ss:$4 sm:$0xff] %v292
        %v326 = vld.sshfl [vmem:[#allocation1] sm:$0xff pattern:$0x73625140]
        %v327 = vld.sshfl [vmem:[#allocation1 + $0x8] sm:$0xff pattern:$0x73625140]
        %v328 = vld.sshfl [vmem:[#allocation1 + $0x10] sm:$0xff pattern:$0x73625140]
        %v329 = vld.sshfl [vmem:[#allocation1 + $0x18] sm:$0xff pattern:$0x73625140]
        %v330 = vld.sshfl [vmem:[#allocation1 + $0x20] sm:$0xff pattern:$0x73625140]
        %v331 = vld.sshfl [vmem:[#allocation1 + $0x28] sm:$0xff pattern:$0x73625140]
        %v332 = vld.sshfl [vmem:[#allocation1 + $0x30] sm:$0xff pattern:$0x73625140]
        %v333 = vld.sshfl [vmem:[#allocation1 + $0x38] sm:$0xff pattern:$0x73625140]
        %334 = vst [vmem:[#allocation1] ss:$4 sm:$0xff] %v293
        %335 = vst [vmem:[%s324] ss:$4 sm:$0xff] %v294
        %v336 = vld.sshfl [vmem:[#allocation1] sm:$0xff pattern:$0x73625140]
        %v337 = vld.sshfl [vmem:[#allocation1 + $0x8] sm:$0xff pattern:$0x73625140]
        %v338 = vld.sshfl [vmem:[#allocation1 + $0x10] sm:$0xff pattern:$0x73625140]
        %v339 = vld.sshfl [vmem:[#allocation1 + $0x18] sm:$0xff pattern:$0x73625140]
        %v340 = vld.sshfl [vmem:[#allocation1 + $0x20] sm:$0xff pattern:$0x73625140]
        %v341 = vld.sshfl [vmem:[#allocation1 + $0x28] sm:$0xff pattern:$0x73625140]
        %v342 = vld.sshfl [vmem:[#allocation1 + $0x30] sm:$0xff pattern:$0x73625140]
        %v343 = vld.sshfl [vmem:[#allocation1 + $0x38] sm:$0xff pattern:$0x73625140]
        %344 = vst [vmem:[#allocation1] ss:$4 sm:$0xff] %v295
        %345 = vst [vmem:[%s324] ss:$4 sm:$0xff] %v296
        %v346 = vld.sshfl [vmem:[#allocation1] sm:$0xff pattern:$0x73625140]
        %v347 = vld.sshfl [vmem:[#allocation1 + $0x8] sm:$0xff pattern:$0x73625140]
        %v348 = vld.sshfl [vmem:[#allocation1 + $0x10] sm:$0xff pattern:$0x73625140]
        %v349 = vld.sshfl [vmem:[#allocation1 + $0x18] sm:$0xff pattern:$0x73625140]
        %v350 = vld.sshfl [vmem:[#allocation1 + $0x20] sm:$0xff pattern:$0x73625140]
        %v351 = vld.sshfl [vmem:[#allocation1 + $0x28] sm:$0xff pattern:$0x73625140]
        %v352 = vld.sshfl [vmem:[#allocation1 + $0x30] sm:$0xff pattern:$0x73625140]
        %v353 = vld.sshfl [vmem:[#allocation1 + $0x38] sm:$0xff pattern:$0x73625140]
        %354 = vst [vmem:[#allocation1] ss:$4 sm:$0xff] %v297
        %355 = vst [vmem:[%s324] ss:$4 sm:$0xff] %v298
        %v356 = vld.sshfl [vmem:[#allocation1] sm:$0xff pattern:$0x73625140]
        %v357 = vld.sshfl [vmem:[#allocation1 + $0x8] sm:$0xff pattern:$0x73625140]
        %v358 = vld.sshfl [vmem:[#allocation1 + $0x10] sm:$0xff pattern:$0x73625140]
        %v359 = vld.sshfl [vmem:[#allocation1 + $0x18] sm:$0xff pattern:$0x73625140]
        %v360 = vld.sshfl [vmem:[#allocation1 + $0x20] sm:$0xff pattern:$0x73625140]
        %v361 = vld.sshfl [vmem:[#allocation1 + $0x28] sm:$0xff pattern:$0x73625140]
        %v362 = vld.sshfl [vmem:[#allocation1 + $0x30] sm:$0xff pattern:$0x73625140]
        %v363 = vld.sshfl [vmem:[#allocation1 + $0x38] sm:$0xff pattern:$0x73625140]
        %364 = vst [vmem:[#allocation1] ss:$4 sm:$0xff] %v299
        %365 = vst [vmem:[%s324] ss:$4 sm:$0xff] %v300
        %v366 = vld.sshfl [vmem:[#allocation1] sm:$0xff pattern:$0x73625140]
        %v367 = vld.sshfl [vmem:[#allocation1 + $0x8] sm:$0xff pattern:$0x73625140]
        %v368 = vld.sshfl [vmem:[#allocation1 + $0x10] sm:$0xff pattern:$0x73625140]
        %v369 = vld.sshfl [vmem:[#allocation1 + $0x18] sm:$0xff pattern:$0x73625140]
        %v370 = vld.sshfl [vmem:[#allocation1 + $0x20] sm:$0xff pattern:$0x73625140]
        %v371 = vld.sshfl [vmem:[#allocation1 + $0x28] sm:$0xff pattern:$0x73625140]
        %v372 = vld.sshfl [vmem:[#allocation1 + $0x30] sm:$0xff pattern:$0x73625140]
        %v373 = vld.sshfl [vmem:[#allocation1 + $0x38] sm:$0xff pattern:$0x73625140]
        %374 = vst [vmem:[#allocation1] ss:$4 sm:$0xff] %v301
        %375 = vst [vmem:[%s324] ss:$4 sm:$0xff] %v302
        %v376 = vld.sshfl [vmem:[#allocation1] sm:$0xff pattern:$0x73625140]
        %v377 = vld.sshfl [vmem:[#allocation1 + $0x8] sm:$0xff pattern:$0x73625140]
        %v378 = vld.sshfl [vmem:[#allocation1 + $0x10] sm:$0xff pattern:$0x73625140]
        %v379 = vld.sshfl [vmem:[#allocation1 + $0x18] sm:$0xff pattern:$0x73625140]
        %v380 = vld.sshfl [vmem:[#allocation1 + $0x20] sm:$0xff pattern:$0x73625140]
        %v381 = vld.sshfl [vmem:[#allocation1 + $0x28] sm:$0xff pattern:$0x73625140]
        %v382 = vld.sshfl [vmem:[#allocation1 + $0x30] sm:$0xff pattern:$0x73625140]
        %v383 = vld.sshfl [vmem:[#allocation1 + $0x38] sm:$0xff pattern:$0x73625140]
        %384 = vst [vmem:[#allocation1] ss:$4 sm:$0xff] %v303
        %385 = vst [vmem:[%s324] ss:$4 sm:$0xff] %v304
        %v386 = vld.sshfl [vmem:[#allocation1] sm:$0xff pattern:$0x73625140]
        %v387 = vld.sshfl [vmem:[#allocation1 + $0x8] sm:$0xff pattern:$0x73625140]
        %v388 = vld.sshfl [vmem:[#allocation1 + $0x10] sm:$0xff pattern:$0x73625140]
        %v389 = vld.sshfl [vmem:[#allocation1 + $0x18] sm:$0xff pattern:$0x73625140]
        %v390 = vld.sshfl [vmem:[#allocation1 + $0x20] sm:$0xff pattern:$0x73625140]
        %v391 = vld.sshfl [vmem:[#allocation1 + $0x28] sm:$0xff pattern:$0x73625140]
        %v392 = vld.sshfl [vmem:[#allocation1 + $0x30] sm:$0xff pattern:$0x73625140]
        %v393 = vld.sshfl [vmem:[#allocation1 + $0x38] sm:$0xff pattern:$0x73625140]
        %394 = vst [vmem:[#allocation1] ss:$4 sm:$0xff] %v305
        %395 = vst [vmem:[%s324] ss:$4 sm:$0xff] %v306
        %v396 = vld.sshfl [vmem:[#allocation1] sm:$0xff pattern:$0x73625140]
        %v397 = vld.sshfl [vmem:[#allocation1 + $0x8] sm:$0xff pattern:$0x73625140]
        %v398 = vld.sshfl [vmem:[#allocation1 + $0x10] sm:$0xff pattern:$0x73625140]
        %v399 = vld.sshfl [vmem:[#allocation1 + $0x18] sm:$0xff pattern:$0x73625140]
        %v400 = vld.sshfl [vmem:[#allocation1 + $0x20] sm:$0xff pattern:$0x73625140]
        %v401 = vld.sshfl [vmem:[#allocation1 + $0x28] sm:$0xff pattern:$0x73625140]
        %v402 = vld.sshfl [vmem:[#allocation1 + $0x30] sm:$0xff pattern:$0x73625140]
        %v403 = vld.sshfl [vmem:[#allocation1 + $0x38] sm:$0xff pattern:$0x73625140]
        %v468 = vpack.c.bf16 %v326, %v326
        %v469 = vpack.c.bf16 %v327, %v327
        %v470 = vpack.c.bf16 %v328, %v328
        %v471 = vpack.c.bf16 %v329, %v329
        %v472 = vpack.c.bf16 %v330, %v330
        %v473 = vpack.c.bf16 %v331, %v331
        %v474 = vpack.c.bf16 %v332, %v332
        %v475 = vpack.c.bf16 %v333, %v333
        %v476 = vpack.c.bf16 %v336, %v336
        %v477 = vpack.c.bf16 %v337, %v337
        %v478 = vpack.c.bf16 %v338, %v338
        %v479 = vpack.c.bf16 %v339, %v339
        %v480 = vpack.c.bf16 %v340, %v340
        %v481 = vpack.c.bf16 %v341, %v341
        %v482 = vpack.c.bf16 %v342, %v342
        %v483 = vpack.c.bf16 %v343, %v343
        %v484 = vpack.c.bf16 %v346, %v346
        %v485 = vpack.c.bf16 %v347, %v347
        %v486 = vpack.c.bf16 %v348, %v348
        %v487 = vpack.c.bf16 %v349, %v349
        %v488 = vpack.c.bf16 %v350, %v350
        %v489 = vpack.c.bf16 %v351, %v351
        %v490 = vpack.c.bf16 %v352, %v352
        %v491 = vpack.c.bf16 %v353, %v353
        %v492 = vpack.c.bf16 %v356, %v356
        %v493 = vpack.c.bf16 %v357, %v357
        %v494 = vpack.c.bf16 %v358, %v358
        %v495 = vpack.c.bf16 %v359, %v359
        %v496 = vpack.c.bf16 %v360, %v360
        %v497 = vpack.c.bf16 %v361, %v361
        %v498 = vpack.c.bf16 %v362, %v362
        %v499 = vpack.c.bf16 %v363, %v363
        %v500 = vpack.c.bf16 %v366, %v366
        %v501 = vpack.c.bf16 %v367, %v367
        %v502 = vpack.c.bf16 %v368, %v368
        %v503 = vpack.c.bf16 %v369, %v369
        %v504 = vpack.c.bf16 %v370, %v370
        %v505 = vpack.c.bf16 %v371, %v371
        %v506 = vpack.c.bf16 %v372, %v372
        %v507 = vpack.c.bf16 %v373, %v373
        %v508 = vpack.c.bf16 %v376, %v376
        %v509 = vpack.c.bf16 %v377, %v377
        %v510 = vpack.c.bf16 %v378, %v378
        %v511 = vpack.c.bf16 %v379, %v379
        %v512 = vpack.c.bf16 %v380, %v380
        %v513 = vpack.c.bf16 %v381, %v381
        %v514 = vpack.c.bf16 %v382, %v382
        %v515 = vpack.c.bf16 %v383, %v383
        %v516 = vpack.c.bf16 %v386, %v386
        %v517 = vpack.c.bf16 %v387, %v387
        %v518 = vpack.c.bf16 %v388, %v388
        %v519 = vpack.c.bf16 %v389, %v389
        %v520 = vpack.c.bf16 %v390, %v390
        %v521 = vpack.c.bf16 %v391, %v391
        %v522 = vpack.c.bf16 %v392, %v392
        %v523 = vpack.c.bf16 %v393, %v393
        %v524 = vpack.c.bf16 %v396, %v396
        %v525 = vpack.c.bf16 %v397, %v397
        %v526 = vpack.c.bf16 %v398, %v398
        %v527 = vpack.c.bf16 %v399, %v399
        %v528 = vpack.c.bf16 %v400, %v400
        %v529 = vpack.c.bf16 %v401, %v401
        %v530 = vpack.c.bf16 %v402, %v402
        %v531 = vpack.c.bf16 %v403, %v403
        %v532 = vld [vmem:[%s240] sm:$0xf]
        %v533 = vld [vmem:[%s240 + $0x4] sm:$0xf]
        %v534 = vld [vmem:[%s240 + $0x8] sm:$0xf]
        %v535 = vld [vmem:[%s240 + $0xc] sm:$0xf]
        %v536 = vld [vmem:[%s240 + $0x10] sm:$0xf]
        %v537 = vld [vmem:[%s240 + $0x14] sm:$0xf]
        %v538 = vld [vmem:[%s240 + $0x18] sm:$0xf]
        %v539 = vld [vmem:[%s240 + $0x1c] sm:$0xf]
        %v540 = vld [vmem:[%s240 + $0x20] sm:$0xf]
        %v541 = vld [vmem:[%s240 + $0x24] sm:$0xf]
        %v542 = vld [vmem:[%s240 + $0x28] sm:$0xf]
        %v543 = vld [vmem:[%s240 + $0x2c] sm:$0xf]
        %v544 = vld [vmem:[%s240 + $0x30] sm:$0xf]
        %v545 = vld [vmem:[%s240 + $0x34] sm:$0xf]
        %v546 = vld [vmem:[%s240 + $0x38] sm:$0xf]
        %v547 = vld [vmem:[%s240 + $0x3c] sm:$0xf]
        %v548 = vld [vmem:[%s240 + $0x40] sm:$0xf]
        %v549 = vld [vmem:[%s240 + $0x44] sm:$0xf]
        %v550 = vld [vmem:[%s240 + $0x48] sm:$0xf]
        %v551 = vld [vmem:[%s240 + $0x4c] sm:$0xf]
        %v552 = vld [vmem:[%s240 + $0x50] sm:$0xf]
        %v553 = vld [vmem:[%s240 + $0x54] sm:$0xf]
        %v554 = vld [vmem:[%s240 + $0x58] sm:$0xf]
        %v555 = vld [vmem:[%s240 + $0x5c] sm:$0xf]
        %v556 = vld [vmem:[%s240 + $0x60] sm:$0xf]
        %v557 = vld [vmem:[%s240 + $0x64] sm:$0xf]
        %v558 = vld [vmem:[%s240 + $0x68] sm:$0xf]
        %v559 = vld [vmem:[%s240 + $0x6c] sm:$0xf]
        %v560 = vld [vmem:[%s240 + $0x70] sm:$0xf]
        %v561 = vld [vmem:[%s240 + $0x74] sm:$0xf]
        %v562 = vld [vmem:[%s240 + $0x78] sm:$0xf]
        %v563 = vld [vmem:[%s240 + $0x7c] sm:$0xf]
        %v564 = vld [vmem:[%s240 + $0x80] sm:$0xf]
        %v565 = vld [vmem:[%s240 + $0x84] sm:$0xf]
        %v566 = vld [vmem:[%s240 + $0x88] sm:$0xf]
        %v567 = vld [vmem:[%s240 + $0x8c] sm:$0xf]
        %v568 = vld [vmem:[%s240 + $0x90] sm:$0xf]
        %v569 = vld [vmem:[%s240 + $0x94] sm:$0xf]
        %v570 = vld [vmem:[%s240 + $0x98] sm:$0xf]
        %v571 = vld [vmem:[%s240 + $0x9c] sm:$0xf]
        %v572 = vld [vmem:[%s240 + $0xa0] sm:$0xf]
        %v573 = vld [vmem:[%s240 + $0xa4] sm:$0xf]
        %v574 = vld [vmem:[%s240 + $0xa8] sm:$0xf]
        %v575 = vld [vmem:[%s240 + $0xac] sm:$0xf]
        %v576 = vld [vmem:[%s240 + $0xb0] sm:$0xf]
        %v577 = vld [vmem:[%s240 + $0xb4] sm:$0xf]
        %v578 = vld [vmem:[%s240 + $0xb8] sm:$0xf]
        %v579 = vld [vmem:[%s240 + $0xbc] sm:$0xf]
        %v580 = vld [vmem:[%s240 + $0xc0] sm:$0xf]
        %v581 = vld [vmem:[%s240 + $0xc4] sm:$0xf]
        %v582 = vld [vmem:[%s240 + $0xc8] sm:$0xf]
        %v583 = vld [vmem:[%s240 + $0xcc] sm:$0xf]
        %v584 = vld [vmem:[%s240 + $0xd0] sm:$0xf]
        %v585 = vld [vmem:[%s240 + $0xd4] sm:$0xf]
        %v586 = vld [vmem:[%s240 + $0xd8] sm:$0xf]
        %v587 = vld [vmem:[%s240 + $0xdc] sm:$0xf]
        %v588 = vld [vmem:[%s240 + $0xe0] sm:$0xf]
        %v589 = vld [vmem:[%s240 + $0xe4] sm:$0xf]
        %v590 = vld [vmem:[%s240 + $0xe8] sm:$0xf]
        %v591 = vld [vmem:[%s240 + $0xec] sm:$0xf]
        %v592 = vld [vmem:[%s240 + $0xf0] sm:$0xf]
        %v593 = vld [vmem:[%s240 + $0xf4] sm:$0xf]
        %v594 = vld [vmem:[%s240 + $0xf8] sm:$0xf]
        %v595 = vld [vmem:[%s240 + $0xfc] sm:$0xf]
        %v596 = vld [vmem:[%s240 + $0x100] sm:$0xf]
        %v597 = vld [vmem:[%s240 + $0x104] sm:$0xf]
        %v598 = vld [vmem:[%s240 + $0x108] sm:$0xf]
        %v599 = vld [vmem:[%s240 + $0x10c] sm:$0xf]
        %v600 = vld [vmem:[%s240 + $0x110] sm:$0xf]
        %v601 = vld [vmem:[%s240 + $0x114] sm:$0xf]
        %v602 = vld [vmem:[%s240 + $0x118] sm:$0xf]
        %v603 = vld [vmem:[%s240 + $0x11c] sm:$0xf]
        %v604 = vld [vmem:[%s240 + $0x120] sm:$0xf]
        %v605 = vld [vmem:[%s240 + $0x124] sm:$0xf]
        %v606 = vld [vmem:[%s240 + $0x128] sm:$0xf]
        %v607 = vld [vmem:[%s240 + $0x12c] sm:$0xf]
        %v608 = vld [vmem:[%s240 + $0x130] sm:$0xf]
        %v609 = vld [vmem:[%s240 + $0x134] sm:$0xf]
        %v610 = vld [vmem:[%s240 + $0x138] sm:$0xf]
        %v611 = vld [vmem:[%s240 + $0x13c] sm:$0xf]
        %v612 = vld [vmem:[%s240 + $0x140] sm:$0xf]
        %v613 = vld [vmem:[%s240 + $0x144] sm:$0xf]
        %v614 = vld [vmem:[%s240 + $0x148] sm:$0xf]
        %v615 = vld [vmem:[%s240 + $0x14c] sm:$0xf]
        %v616 = vld [vmem:[%s240 + $0x150] sm:$0xf]
        %v617 = vld [vmem:[%s240 + $0x154] sm:$0xf]
        %v618 = vld [vmem:[%s240 + $0x158] sm:$0xf]
        %v619 = vld [vmem:[%s240 + $0x15c] sm:$0xf]
        %v620 = vld [vmem:[%s240 + $0x160] sm:$0xf]
        %v621 = vld [vmem:[%s240 + $0x164] sm:$0xf]
        %v622 = vld [vmem:[%s240 + $0x168] sm:$0xf]
        %v623 = vld [vmem:[%s240 + $0x16c] sm:$0xf]
        %v624 = vld [vmem:[%s240 + $0x170] sm:$0xf]
        %v625 = vld [vmem:[%s240 + $0x174] sm:$0xf]
        %v626 = vld [vmem:[%s240 + $0x178] sm:$0xf]
        %v627 = vld [vmem:[%s240 + $0x17c] sm:$0xf]
        %v628 = vld [vmem:[%s240 + $0x180] sm:$0xf]
        %v629 = vld [vmem:[%s240 + $0x184] sm:$0xf]
        %v630 = vld [vmem:[%s240 + $0x188] sm:$0xf]
        %v631 = vld [vmem:[%s240 + $0x18c] sm:$0xf]
        %v632 = vld [vmem:[%s240 + $0x190] sm:$0xf]
        %v633 = vld [vmem:[%s240 + $0x194] sm:$0xf]
        %v634 = vld [vmem:[%s240 + $0x198] sm:$0xf]
        %v635 = vld [vmem:[%s240 + $0x19c] sm:$0xf]
        %v636 = vld [vmem:[%s240 + $0x1a0] sm:$0xf]
        %v637 = vld [vmem:[%s240 + $0x1a4] sm:$0xf]
        %v638 = vld [vmem:[%s240 + $0x1a8] sm:$0xf]
        %v639 = vld [vmem:[%s240 + $0x1ac] sm:$0xf]
        %v640 = vld [vmem:[%s240 + $0x1b0] sm:$0xf]
        %v641 = vld [vmem:[%s240 + $0x1b4] sm:$0xf]
        %v642 = vld [vmem:[%s240 + $0x1b8] sm:$0xf]
        %v643 = vld [vmem:[%s240 + $0x1bc] sm:$0xf]
        %v644 = vld [vmem:[%s240 + $0x1c0] sm:$0xf]
        %v645 = vld [vmem:[%s240 + $0x1c4] sm:$0xf]
        %v646 = vld [vmem:[%s240 + $0x1c8] sm:$0xf]
        %v647 = vld [vmem:[%s240 + $0x1cc] sm:$0xf]
        %v648 = vld [vmem:[%s240 + $0x1d0] sm:$0xf]
        %v649 = vld [vmem:[%s240 + $0x1d4] sm:$0xf]
        %v650 = vld [vmem:[%s240 + $0x1d8] sm:$0xf]
        %v651 = vld [vmem:[%s240 + $0x1dc] sm:$0xf]
        %v652 = vld [vmem:[%s240 + $0x1e0] sm:$0xf]
        %v653 = vld [vmem:[%s240 + $0x1e4] sm:$0xf]
        %v654 = vld [vmem:[%s240 + $0x1e8] sm:$0xf]
        %v655 = vld [vmem:[%s240 + $0x1ec] sm:$0xf]
        %v656 = vld [vmem:[%s240 + $0x1f0] sm:$0xf]
        %v657 = vld [vmem:[%s240 + $0x1f4] sm:$0xf]
        %v658 = vld [vmem:[%s240 + $0x1f8] sm:$0xf]
        %v659 = vld [vmem:[%s240 + $0x1fc] sm:$0xf]
        %v660 = vld [vmem:[%s240 + $0x200] sm:$0xf]
        %v661 = vld [vmem:[%s240 + $0x204] sm:$0xf]
        %v662 = vld [vmem:[%s240 + $0x208] sm:$0xf]
        %v663 = vld [vmem:[%s240 + $0x20c] sm:$0xf]
        %v664 = vld [vmem:[%s240 + $0x210] sm:$0xf]
        %v665 = vld [vmem:[%s240 + $0x214] sm:$0xf]
        %v666 = vld [vmem:[%s240 + $0x218] sm:$0xf]
        %v667 = vld [vmem:[%s240 + $0x21c] sm:$0xf]
        %v668 = vld [vmem:[%s240 + $0x220] sm:$0xf]
        %v669 = vld [vmem:[%s240 + $0x224] sm:$0xf]
        %v670 = vld [vmem:[%s240 + $0x228] sm:$0xf]
        %v671 = vld [vmem:[%s240 + $0x22c] sm:$0xf]
        %v672 = vld [vmem:[%s240 + $0x230] sm:$0xf]
        %v673 = vld [vmem:[%s240 + $0x234] sm:$0xf]
        %v674 = vld [vmem:[%s240 + $0x238] sm:$0xf]
        %v675 = vld [vmem:[%s240 + $0x23c] sm:$0xf]
        %v676 = vld [vmem:[%s240 + $0x240] sm:$0xf]
        %v677 = vld [vmem:[%s240 + $0x244] sm:$0xf]
        %v678 = vld [vmem:[%s240 + $0x248] sm:$0xf]
        %v679 = vld [vmem:[%s240 + $0x24c] sm:$0xf]
        %v680 = vld [vmem:[%s240 + $0x250] sm:$0xf]
        %v681 = vld [vmem:[%s240 + $0x254] sm:$0xf]
        %v682 = vld [vmem:[%s240 + $0x258] sm:$0xf]
        %v683 = vld [vmem:[%s240 + $0x25c] sm:$0xf]
        %v684 = vld [vmem:[%s240 + $0x260] sm:$0xf]
        %v685 = vld [vmem:[%s240 + $0x264] sm:$0xf]
        %v686 = vld [vmem:[%s240 + $0x268] sm:$0xf]
        %v687 = vld [vmem:[%s240 + $0x26c] sm:$0xf]
        %v688 = vld [vmem:[%s240 + $0x270] sm:$0xf]
        %v689 = vld [vmem:[%s240 + $0x274] sm:$0xf]
        %v690 = vld [vmem:[%s240 + $0x278] sm:$0xf]
        %v691 = vld [vmem:[%s240 + $0x27c] sm:$0xf]
        %v692 = vld [vmem:[%s240 + $0x280] sm:$0xf]
        %v693 = vld [vmem:[%s240 + $0x284] sm:$0xf]
        %v694 = vld [vmem:[%s240 + $0x288] sm:$0xf]
        %v695 = vld [vmem:[%s240 + $0x28c] sm:$0xf]
        %v696 = vld [vmem:[%s240 + $0x290] sm:$0xf]
        %v697 = vld [vmem:[%s240 + $0x294] sm:$0xf]
        %v698 = vld [vmem:[%s240 + $0x298] sm:$0xf]
        %v699 = vld [vmem:[%s240 + $0x29c] sm:$0xf]
        %v700 = vld [vmem:[%s240 + $0x2a0] sm:$0xf]
        %v701 = vld [vmem:[%s240 + $0x2a4] sm:$0xf]
        %v702 = vld [vmem:[%s240 + $0x2a8] sm:$0xf]
        %v703 = vld [vmem:[%s240 + $0x2ac] sm:$0xf]
        %v704 = vld [vmem:[%s240 + $0x2b0] sm:$0xf]
        %v705 = vld [vmem:[%s240 + $0x2b4] sm:$0xf]
        %v706 = vld [vmem:[%s240 + $0x2b8] sm:$0xf]
        %v707 = vld [vmem:[%s240 + $0x2bc] sm:$0xf]
        %v708 = vld [vmem:[%s240 + $0x2c0] sm:$0xf]
        %v709 = vld [vmem:[%s240 + $0x2c4] sm:$0xf]
        %v710 = vld [vmem:[%s240 + $0x2c8] sm:$0xf]
        %v711 = vld [vmem:[%s240 + $0x2cc] sm:$0xf]
        %v712 = vld [vmem:[%s240 + $0x2d0] sm:$0xf]
        %v713 = vld [vmem:[%s240 + $0x2d4] sm:$0xf]
        %v714 = vld [vmem:[%s240 + $0x2d8] sm:$0xf]
        %v715 = vld [vmem:[%s240 + $0x2dc] sm:$0xf]
        %v716 = vld [vmem:[%s240 + $0x2e0] sm:$0xf]
        %v717 = vld [vmem:[%s240 + $0x2e4] sm:$0xf]
        %v718 = vld [vmem:[%s240 + $0x2e8] sm:$0xf]
        %v719 = vld [vmem:[%s240 + $0x2ec] sm:$0xf]
        %v720 = vld [vmem:[%s240 + $0x2f0] sm:$0xf]
        %v721 = vld [vmem:[%s240 + $0x2f4] sm:$0xf]
        %v722 = vld [vmem:[%s240 + $0x2f8] sm:$0xf]
        %v723 = vld [vmem:[%s240 + $0x2fc] sm:$0xf]
        %v724 = vld [vmem:[%s240 + $0x300] sm:$0xf]
        %v725 = vld [vmem:[%s240 + $0x304] sm:$0xf]
        %v726 = vld [vmem:[%s240 + $0x308] sm:$0xf]
        %v727 = vld [vmem:[%s240 + $0x30c] sm:$0xf]
        %v728 = vld [vmem:[%s240 + $0x310] sm:$0xf]
        %v729 = vld [vmem:[%s240 + $0x314] sm:$0xf]
        %v730 = vld [vmem:[%s240 + $0x318] sm:$0xf]
        %v731 = vld [vmem:[%s240 + $0x31c] sm:$0xf]
        %v732 = vld [vmem:[%s240 + $0x320] sm:$0xf]
        %v733 = vld [vmem:[%s240 + $0x324] sm:$0xf]
        %v734 = vld [vmem:[%s240 + $0x328] sm:$0xf]
        %v735 = vld [vmem:[%s240 + $0x32c] sm:$0xf]
        %v736 = vld [vmem:[%s240 + $0x330] sm:$0xf]
        %v737 = vld [vmem:[%s240 + $0x334] sm:$0xf]
        %v738 = vld [vmem:[%s240 + $0x338] sm:$0xf]
        %v739 = vld [vmem:[%s240 + $0x33c] sm:$0xf]
        %v740 = vld [vmem:[%s240 + $0x340] sm:$0xf]
        %v741 = vld [vmem:[%s240 + $0x344] sm:$0xf]
        %v742 = vld [vmem:[%s240 + $0x348] sm:$0xf]
        %v743 = vld [vmem:[%s240 + $0x34c] sm:$0xf]
        %v744 = vld [vmem:[%s240 + $0x350] sm:$0xf]
        %v745 = vld [vmem:[%s240 + $0x354] sm:$0xf]
        %v746 = vld [vmem:[%s240 + $0x358] sm:$0xf]
        %v747 = vld [vmem:[%s240 + $0x35c] sm:$0xf]
        %v748 = vld [vmem:[%s240 + $0x360] sm:$0xf]
        %v749 = vld [vmem:[%s240 + $0x364] sm:$0xf]
        %v750 = vld [vmem:[%s240 + $0x368] sm:$0xf]
        %v751 = vld [vmem:[%s240 + $0x36c] sm:$0xf]
        %v752 = vld [vmem:[%s240 + $0x370] sm:$0xf]
        %v753 = vld [vmem:[%s240 + $0x374] sm:$0xf]
        %v754 = vld [vmem:[%s240 + $0x378] sm:$0xf]
        %v755 = vld [vmem:[%s240 + $0x37c] sm:$0xf]
        %v756 = vld [vmem:[%s240 + $0x380] sm:$0xf]
        %v757 = vld [vmem:[%s240 + $0x384] sm:$0xf]
        %v758 = vld [vmem:[%s240 + $0x388] sm:$0xf]
        %v759 = vld [vmem:[%s240 + $0x38c] sm:$0xf]
        %v760 = vld [vmem:[%s240 + $0x390] sm:$0xf]
        %v761 = vld [vmem:[%s240 + $0x394] sm:$0xf]
        %v762 = vld [vmem:[%s240 + $0x398] sm:$0xf]
        %v763 = vld [vmem:[%s240 + $0x39c] sm:$0xf]
        %v764 = vld [vmem:[%s240 + $0x3a0] sm:$0xf]
        %v765 = vld [vmem:[%s240 + $0x3a4] sm:$0xf]
        %v766 = vld [vmem:[%s240 + $0x3a8] sm:$0xf]
        %v767 = vld [vmem:[%s240 + $0x3ac] sm:$0xf]
        %v768 = vld [vmem:[%s240 + $0x3b0] sm:$0xf]
        %v769 = vld [vmem:[%s240 + $0x3b4] sm:$0xf]
        %v770 = vld [vmem:[%s240 + $0x3b8] sm:$0xf]
        %v771 = vld [vmem:[%s240 + $0x3bc] sm:$0xf]
        %v772 = vld [vmem:[%s240 + $0x3c0] sm:$0xf]
        %v773 = vld [vmem:[%s240 + $0x3c4] sm:$0xf]
        %v774 = vld [vmem:[%s240 + $0x3c8] sm:$0xf]
        %v775 = vld [vmem:[%s240 + $0x3cc] sm:$0xf]
        %v776 = vld [vmem:[%s240 + $0x3d0] sm:$0xf]
        %v777 = vld [vmem:[%s240 + $0x3d4] sm:$0xf]
        %v778 = vld [vmem:[%s240 + $0x3d8] sm:$0xf]
        %v779 = vld [vmem:[%s240 + $0x3dc] sm:$0xf]
        %v780 = vld [vmem:[%s240 + $0x3e0] sm:$0xf]
        %v781 = vld [vmem:[%s240 + $0x3e4] sm:$0xf]
        %v782 = vld [vmem:[%s240 + $0x3e8] sm:$0xf]
        %v783 = vld [vmem:[%s240 + $0x3ec] sm:$0xf]
        %v784 = vld [vmem:[%s240 + $0x3f0] sm:$0xf]
        %v785 = vld [vmem:[%s240 + $0x3f4] sm:$0xf]
        %v786 = vld [vmem:[%s240 + $0x3f8] sm:$0xf]
        %v787 = vld [vmem:[%s240 + $0x3fc] sm:$0xf]
        %v788 = vld [vmem:[%s240 + $0x400] sm:$0xf]
        %v789 = vld [vmem:[%s240 + $0x404] sm:$0xf]
        %v790 = vld [vmem:[%s240 + $0x408] sm:$0xf]
        %v791 = vld [vmem:[%s240 + $0x40c] sm:$0xf]
        %v792 = vld [vmem:[%s240 + $0x410] sm:$0xf]
        %v793 = vld [vmem:[%s240 + $0x414] sm:$0xf]
        %v794 = vld [vmem:[%s240 + $0x418] sm:$0xf]
        %v795 = vld [vmem:[%s240 + $0x41c] sm:$0xf]
        %v796 = vld [vmem:[%s240 + $0x420] sm:$0xf]
        %v797 = vld [vmem:[%s240 + $0x424] sm:$0xf]
        %v798 = vld [vmem:[%s240 + $0x428] sm:$0xf]
        %v799 = vld [vmem:[%s240 + $0x42c] sm:$0xf]
        %v800 = vld [vmem:[%s240 + $0x430] sm:$0xf]
        %v801 = vld [vmem:[%s240 + $0x434] sm:$0xf]
        %v802 = vld [vmem:[%s240 + $0x438] sm:$0xf]
        %v803 = vld [vmem:[%s240 + $0x43c] sm:$0xf]
        %v804 = vld [vmem:[%s240 + $0x440] sm:$0xf]
        %v805 = vld [vmem:[%s240 + $0x444] sm:$0xf]
        %v806 = vld [vmem:[%s240 + $0x448] sm:$0xf]
        %v807 = vld [vmem:[%s240 + $0x44c] sm:$0xf]
        %v808 = vld [vmem:[%s240 + $0x450] sm:$0xf]
        %v809 = vld [vmem:[%s240 + $0x454] sm:$0xf]
        %v810 = vld [vmem:[%s240 + $0x458] sm:$0xf]
        %v811 = vld [vmem:[%s240 + $0x45c] sm:$0xf]
        %v812 = vld [vmem:[%s240 + $0x460] sm:$0xf]
        %v813 = vld [vmem:[%s240 + $0x464] sm:$0xf]
        %v814 = vld [vmem:[%s240 + $0x468] sm:$0xf]
        %v815 = vld [vmem:[%s240 + $0x46c] sm:$0xf]
        %v816 = vld [vmem:[%s240 + $0x470] sm:$0xf]
        %v817 = vld [vmem:[%s240 + $0x474] sm:$0xf]
        %v818 = vld [vmem:[%s240 + $0x478] sm:$0xf]
        %v819 = vld [vmem:[%s240 + $0x47c] sm:$0xf]
        %v820 = vld [vmem:[%s240 + $0x480] sm:$0xf]
        %v821 = vld [vmem:[%s240 + $0x484] sm:$0xf]
        %v822 = vld [vmem:[%s240 + $0x488] sm:$0xf]
        %v823 = vld [vmem:[%s240 + $0x48c] sm:$0xf]
        %v824 = vld [vmem:[%s240 + $0x490] sm:$0xf]
        %v825 = vld [vmem:[%s240 + $0x494] sm:$0xf]
        %v826 = vld [vmem:[%s240 + $0x498] sm:$0xf]
        %v827 = vld [vmem:[%s240 + $0x49c] sm:$0xf]
        %v828 = vld [vmem:[%s240 + $0x4a0] sm:$0xf]
        %v829 = vld [vmem:[%s240 + $0x4a4] sm:$0xf]
        %v830 = vld [vmem:[%s240 + $0x4a8] sm:$0xf]
        %v831 = vld [vmem:[%s240 + $0x4ac] sm:$0xf]
        %v832 = vld [vmem:[%s240 + $0x4b0] sm:$0xf]
        %v833 = vld [vmem:[%s240 + $0x4b4] sm:$0xf]
        %v834 = vld [vmem:[%s240 + $0x4b8] sm:$0xf]
        %v835 = vld [vmem:[%s240 + $0x4bc] sm:$0xf]
        %v836 = vld [vmem:[%s240 + $0x4c0] sm:$0xf]
        %v837 = vld [vmem:[%s240 + $0x4c4] sm:$0xf]
        %v838 = vld [vmem:[%s240 + $0x4c8] sm:$0xf]
        %v839 = vld [vmem:[%s240 + $0x4cc] sm:$0xf]
        %v840 = vld [vmem:[%s240 + $0x4d0] sm:$0xf]
        %v841 = vld [vmem:[%s240 + $0x4d4] sm:$0xf]
        %v842 = vld [vmem:[%s240 + $0x4d8] sm:$0xf]
        %v843 = vld [vmem:[%s240 + $0x4dc] sm:$0xf]
        %v844 = vld [vmem:[%s240 + $0x4e0] sm:$0xf]
        %v845 = vld [vmem:[%s240 + $0x4e4] sm:$0xf]
        %v846 = vld [vmem:[%s240 + $0x4e8] sm:$0xf]
        %v847 = vld [vmem:[%s240 + $0x4ec] sm:$0xf]
        %v848 = vld [vmem:[%s240 + $0x4f0] sm:$0xf]
        %v849 = vld [vmem:[%s240 + $0x4f4] sm:$0xf]
        %v850 = vld [vmem:[%s240 + $0x4f8] sm:$0xf]
        %v851 = vld [vmem:[%s240 + $0x4fc] sm:$0xf]
        %v852 = vld [vmem:[%s240 + $0x500] sm:$0xf]
        %v853 = vld [vmem:[%s240 + $0x504] sm:$0xf]
        %v854 = vld [vmem:[%s240 + $0x508] sm:$0xf]
        %v855 = vld [vmem:[%s240 + $0x50c] sm:$0xf]
        %v856 = vld [vmem:[%s240 + $0x510] sm:$0xf]
        %v857 = vld [vmem:[%s240 + $0x514] sm:$0xf]
        %v858 = vld [vmem:[%s240 + $0x518] sm:$0xf]
        %v859 = vld [vmem:[%s240 + $0x51c] sm:$0xf]
        %v860 = vld [vmem:[%s240 + $0x520] sm:$0xf]
        %v861 = vld [vmem:[%s240 + $0x524] sm:$0xf]
        %v862 = vld [vmem:[%s240 + $0x528] sm:$0xf]
        %v863 = vld [vmem:[%s240 + $0x52c] sm:$0xf]
        %v864 = vld [vmem:[%s240 + $0x530] sm:$0xf]
        %v865 = vld [vmem:[%s240 + $0x534] sm:$0xf]
        %v866 = vld [vmem:[%s240 + $0x538] sm:$0xf]
        %v867 = vld [vmem:[%s240 + $0x53c] sm:$0xf]
        %v868 = vld [vmem:[%s240 + $0x540] sm:$0xf]
        %v869 = vld [vmem:[%s240 + $0x544] sm:$0xf]
        %v870 = vld [vmem:[%s240 + $0x548] sm:$0xf]
        %v871 = vld [vmem:[%s240 + $0x54c] sm:$0xf]
        %v872 = vld [vmem:[%s240 + $0x550] sm:$0xf]
        %v873 = vld [vmem:[%s240 + $0x554] sm:$0xf]
        %v874 = vld [vmem:[%s240 + $0x558] sm:$0xf]
        %v875 = vld [vmem:[%s240 + $0x55c] sm:$0xf]
        %v876 = vld [vmem:[%s240 + $0x560] sm:$0xf]
        %v877 = vld [vmem:[%s240 + $0x564] sm:$0xf]
        %v878 = vld [vmem:[%s240 + $0x568] sm:$0xf]
        %v879 = vld [vmem:[%s240 + $0x56c] sm:$0xf]
        %v880 = vld [vmem:[%s240 + $0x570] sm:$0xf]
        %v881 = vld [vmem:[%s240 + $0x574] sm:$0xf]
        %v882 = vld [vmem:[%s240 + $0x578] sm:$0xf]
        %v883 = vld [vmem:[%s240 + $0x57c] sm:$0xf]
        %v884 = vld [vmem:[%s240 + $0x580] sm:$0xf]
        %v885 = vld [vmem:[%s240 + $0x584] sm:$0xf]
        %v886 = vld [vmem:[%s240 + $0x588] sm:$0xf]
        %v887 = vld [vmem:[%s240 + $0x58c] sm:$0xf]
        %v888 = vld [vmem:[%s240 + $0x590] sm:$0xf]
        %v889 = vld [vmem:[%s240 + $0x594] sm:$0xf]
        %v890 = vld [vmem:[%s240 + $0x598] sm:$0xf]
        %v891 = vld [vmem:[%s240 + $0x59c] sm:$0xf]
        %v892 = vld [vmem:[%s240 + $0x5a0] sm:$0xf]
        %v893 = vld [vmem:[%s240 + $0x5a4] sm:$0xf]
        %v894 = vld [vmem:[%s240 + $0x5a8] sm:$0xf]
        %v895 = vld [vmem:[%s240 + $0x5ac] sm:$0xf]
        %v896 = vld [vmem:[%s240 + $0x5b0] sm:$0xf]
        %v897 = vld [vmem:[%s240 + $0x5b4] sm:$0xf]
        %v898 = vld [vmem:[%s240 + $0x5b8] sm:$0xf]
        %v899 = vld [vmem:[%s240 + $0x5bc] sm:$0xf]
        %v900 = vld [vmem:[%s240 + $0x5c0] sm:$0xf]
        %v901 = vld [vmem:[%s240 + $0x5c4] sm:$0xf]
        %v902 = vld [vmem:[%s240 + $0x5c8] sm:$0xf]
        %v903 = vld [vmem:[%s240 + $0x5cc] sm:$0xf]
        %v904 = vld [vmem:[%s240 + $0x5d0] sm:$0xf]
        %v905 = vld [vmem:[%s240 + $0x5d4] sm:$0xf]
        %v906 = vld [vmem:[%s240 + $0x5d8] sm:$0xf]
        %v907 = vld [vmem:[%s240 + $0x5dc] sm:$0xf]
        %v908 = vld [vmem:[%s240 + $0x5e0] sm:$0xf]
        %v909 = vld [vmem:[%s240 + $0x5e4] sm:$0xf]
        %v910 = vld [vmem:[%s240 + $0x5e8] sm:$0xf]
        %v911 = vld [vmem:[%s240 + $0x5ec] sm:$0xf]
        %v912 = vld [vmem:[%s240 + $0x5f0] sm:$0xf]
        %v913 = vld [vmem:[%s240 + $0x5f4] sm:$0xf]
        %v914 = vld [vmem:[%s240 + $0x5f8] sm:$0xf]
        %v915 = vld [vmem:[%s240 + $0x5fc] sm:$0xf]
        %v916 = vld [vmem:[%s240 + $0x600] sm:$0xf]
        %v917 = vld [vmem:[%s240 + $0x604] sm:$0xf]
        %v918 = vld [vmem:[%s240 + $0x608] sm:$0xf]
        %v919 = vld [vmem:[%s240 + $0x60c] sm:$0xf]
        %v920 = vld [vmem:[%s240 + $0x610] sm:$0xf]
        %v921 = vld [vmem:[%s240 + $0x614] sm:$0xf]
        %v922 = vld [vmem:[%s240 + $0x618] sm:$0xf]
        %v923 = vld [vmem:[%s240 + $0x61c] sm:$0xf]
        %v924 = vld [vmem:[%s240 + $0x620] sm:$0xf]
        %v925 = vld [vmem:[%s240 + $0x624] sm:$0xf]
        %v926 = vld [vmem:[%s240 + $0x628] sm:$0xf]
        %v927 = vld [vmem:[%s240 + $0x62c] sm:$0xf]
        %v928 = vld [vmem:[%s240 + $0x630] sm:$0xf]
        %v929 = vld [vmem:[%s240 + $0x634] sm:$0xf]
        %v930 = vld [vmem:[%s240 + $0x638] sm:$0xf]
        %v931 = vld [vmem:[%s240 + $0x63c] sm:$0xf]
        %v932 = vld [vmem:[%s240 + $0x640] sm:$0xf]
        %v933 = vld [vmem:[%s240 + $0x644] sm:$0xf]
        %v934 = vld [vmem:[%s240 + $0x648] sm:$0xf]
        %v935 = vld [vmem:[%s240 + $0x64c] sm:$0xf]
        %v936 = vld [vmem:[%s240 + $0x650] sm:$0xf]
        %v937 = vld [vmem:[%s240 + $0x654] sm:$0xf]
        %v938 = vld [vmem:[%s240 + $0x658] sm:$0xf]
        %v939 = vld [vmem:[%s240 + $0x65c] sm:$0xf]
        %v940 = vld [vmem:[%s240 + $0x660] sm:$0xf]
        %v941 = vld [vmem:[%s240 + $0x664] sm:$0xf]
        %v942 = vld [vmem:[%s240 + $0x668] sm:$0xf]
        %v943 = vld [vmem:[%s240 + $0x66c] sm:$0xf]
        %v944 = vld [vmem:[%s240 + $0x670] sm:$0xf]
        %v945 = vld [vmem:[%s240 + $0x674] sm:$0xf]
        %v946 = vld [vmem:[%s240 + $0x678] sm:$0xf]
        %v947 = vld [vmem:[%s240 + $0x67c] sm:$0xf]
        %v948 = vld [vmem:[%s240 + $0x680] sm:$0xf]
        %v949 = vld [vmem:[%s240 + $0x684] sm:$0xf]
        %v950 = vld [vmem:[%s240 + $0x688] sm:$0xf]
        %v951 = vld [vmem:[%s240 + $0x68c] sm:$0xf]
        %v952 = vld [vmem:[%s240 + $0x690] sm:$0xf]
        %v953 = vld [vmem:[%s240 + $0x694] sm:$0xf]
        %v954 = vld [vmem:[%s240 + $0x698] sm:$0xf]
        %v955 = vld [vmem:[%s240 + $0x69c] sm:$0xf]
        %v956 = vld [vmem:[%s240 + $0x6a0] sm:$0xf]
        %v957 = vld [vmem:[%s240 + $0x6a4] sm:$0xf]
        %v958 = vld [vmem:[%s240 + $0x6a8] sm:$0xf]
        %v959 = vld [vmem:[%s240 + $0x6ac] sm:$0xf]
        %v960 = vld [vmem:[%s240 + $0x6b0] sm:$0xf]
        %v961 = vld [vmem:[%s240 + $0x6b4] sm:$0xf]
        %v962 = vld [vmem:[%s240 + $0x6b8] sm:$0xf]
        %v963 = vld [vmem:[%s240 + $0x6bc] sm:$0xf]
        %v964 = vld [vmem:[%s240 + $0x6c0] sm:$0xf]
        %v965 = vld [vmem:[%s240 + $0x6c4] sm:$0xf]
        %v966 = vld [vmem:[%s240 + $0x6c8] sm:$0xf]
        %v967 = vld [vmem:[%s240 + $0x6cc] sm:$0xf]
        %v968 = vld [vmem:[%s240 + $0x6d0] sm:$0xf]
        %v969 = vld [vmem:[%s240 + $0x6d4] sm:$0xf]
        %v970 = vld [vmem:[%s240 + $0x6d8] sm:$0xf]
        %v971 = vld [vmem:[%s240 + $0x6dc] sm:$0xf]
        %v972 = vld [vmem:[%s240 + $0x6e0] sm:$0xf]
        %v973 = vld [vmem:[%s240 + $0x6e4] sm:$0xf]
        %v974 = vld [vmem:[%s240 + $0x6e8] sm:$0xf]
        %v975 = vld [vmem:[%s240 + $0x6ec] sm:$0xf]
        %v976 = vld [vmem:[%s240 + $0x6f0] sm:$0xf]
        %v977 = vld [vmem:[%s240 + $0x6f4] sm:$0xf]
        %v978 = vld [vmem:[%s240 + $0x6f8] sm:$0xf]
        %v979 = vld [vmem:[%s240 + $0x6fc] sm:$0xf]
        %v980 = vld [vmem:[%s240 + $0x700] sm:$0xf]
        %v981 = vld [vmem:[%s240 + $0x704] sm:$0xf]
        %v982 = vld [vmem:[%s240 + $0x708] sm:$0xf]
        %v983 = vld [vmem:[%s240 + $0x70c] sm:$0xf]
        %v984 = vld [vmem:[%s240 + $0x710] sm:$0xf]
        %v985 = vld [vmem:[%s240 + $0x714] sm:$0xf]
        %v986 = vld [vmem:[%s240 + $0x718] sm:$0xf]
        %v987 = vld [vmem:[%s240 + $0x71c] sm:$0xf]
        %v988 = vld [vmem:[%s240 + $0x720] sm:$0xf]
        %v989 = vld [vmem:[%s240 + $0x724] sm:$0xf]
        %v990 = vld [vmem:[%s240 + $0x728] sm:$0xf]
        %v991 = vld [vmem:[%s240 + $0x72c] sm:$0xf]
        %v992 = vld [vmem:[%s240 + $0x730] sm:$0xf]
        %v993 = vld [vmem:[%s240 + $0x734] sm:$0xf]
        %v994 = vld [vmem:[%s240 + $0x738] sm:$0xf]
        %v995 = vld [vmem:[%s240 + $0x73c] sm:$0xf]
        %v996 = vld [vmem:[%s240 + $0x740] sm:$0xf]
        %v997 = vld [vmem:[%s240 + $0x744] sm:$0xf]
        %v998 = vld [vmem:[%s240 + $0x748] sm:$0xf]
        %v999 = vld [vmem:[%s240 + $0x74c] sm:$0xf]
        %v1000 = vld [vmem:[%s240 + $0x750] sm:$0xf]
        %v1001 = vld [vmem:[%s240 + $0x754] sm:$0xf]
        %v1002 = vld [vmem:[%s240 + $0x758] sm:$0xf]
        %v1003 = vld [vmem:[%s240 + $0x75c] sm:$0xf]
        %v1004 = vld [vmem:[%s240 + $0x760] sm:$0xf]
        %v1005 = vld [vmem:[%s240 + $0x764] sm:$0xf]
        %v1006 = vld [vmem:[%s240 + $0x768] sm:$0xf]
        %v1007 = vld [vmem:[%s240 + $0x76c] sm:$0xf]
        %v1008 = vld [vmem:[%s240 + $0x770] sm:$0xf]
        %v1009 = vld [vmem:[%s240 + $0x774] sm:$0xf]
        %v1010 = vld [vmem:[%s240 + $0x778] sm:$0xf]
        %v1011 = vld [vmem:[%s240 + $0x77c] sm:$0xf]
        %v1012 = vld [vmem:[%s240 + $0x780] sm:$0xf]
        %v1013 = vld [vmem:[%s240 + $0x784] sm:$0xf]
        %v1014 = vld [vmem:[%s240 + $0x788] sm:$0xf]
        %v1015 = vld [vmem:[%s240 + $0x78c] sm:$0xf]
        %v1016 = vld [vmem:[%s240 + $0x790] sm:$0xf]
        %v1017 = vld [vmem:[%s240 + $0x794] sm:$0xf]
        %v1018 = vld [vmem:[%s240 + $0x798] sm:$0xf]
        %v1019 = vld [vmem:[%s240 + $0x79c] sm:$0xf]
        %v1020 = vld [vmem:[%s240 + $0x7a0] sm:$0xf]
        %v1021 = vld [vmem:[%s240 + $0x7a4] sm:$0xf]
        %v1022 = vld [vmem:[%s240 + $0x7a8] sm:$0xf]
        %v1023 = vld [vmem:[%s240 + $0x7ac] sm:$0xf]
        %v1024 = vld [vmem:[%s240 + $0x7b0] sm:$0xf]
        %v1025 = vld [vmem:[%s240 + $0x7b4] sm:$0xf]
        %v1026 = vld [vmem:[%s240 + $0x7b8] sm:$0xf]
        %v1027 = vld [vmem:[%s240 + $0x7bc] sm:$0xf]
        %v1028 = vld [vmem:[%s240 + $0x7c0] sm:$0xf]
        %v1029 = vld [vmem:[%s240 + $0x7c4] sm:$0xf]
        %v1030 = vld [vmem:[%s240 + $0x7c8] sm:$0xf]
        %v1031 = vld [vmem:[%s240 + $0x7cc] sm:$0xf]
        %v1032 = vld [vmem:[%s240 + $0x7d0] sm:$0xf]
        %v1033 = vld [vmem:[%s240 + $0x7d4] sm:$0xf]
        %v1034 = vld [vmem:[%s240 + $0x7d8] sm:$0xf]
        %v1035 = vld [vmem:[%s240 + $0x7dc] sm:$0xf]
        %v1036 = vld [vmem:[%s240 + $0x7e0] sm:$0xf]
        %v1037 = vld [vmem:[%s240 + $0x7e4] sm:$0xf]
        %v1038 = vld [vmem:[%s240 + $0x7e8] sm:$0xf]
        %v1039 = vld [vmem:[%s240 + $0x7ec] sm:$0xf]
        %v1040 = vld [vmem:[%s240 + $0x7f0] sm:$0xf]
        %v1041 = vld [vmem:[%s240 + $0x7f4] sm:$0xf]
        %v1042 = vld [vmem:[%s240 + $0x7f8] sm:$0xf]
        %v1043 = vld [vmem:[%s240 + $0x7fc] sm:$0xf]
        %v1044 = vld [vmem:[%s240 + $0x800] sm:$0xf]
        %v1045 = vld [vmem:[%s240 + $0x804] sm:$0xf]
        %v1046 = vld [vmem:[%s240 + $0x808] sm:$0xf]
        %v1047 = vld [vmem:[%s240 + $0x80c] sm:$0xf]
        %v1048 = vld [vmem:[%s240 + $0x810] sm:$0xf]
        %v1049 = vld [vmem:[%s240 + $0x814] sm:$0xf]
        %v1050 = vld [vmem:[%s240 + $0x818] sm:$0xf]
        %v1051 = vld [vmem:[%s240 + $0x81c] sm:$0xf]
        %v1052 = vld [vmem:[%s240 + $0x820] sm:$0xf]
        %v1053 = vld [vmem:[%s240 + $0x824] sm:$0xf]
        %v1054 = vld [vmem:[%s240 + $0x828] sm:$0xf]
        %v1055 = vld [vmem:[%s240 + $0x82c] sm:$0xf]
        %v1056 = vld [vmem:[%s240 + $0x830] sm:$0xf]
        %v1057 = vld [vmem:[%s240 + $0x834] sm:$0xf]
        %v1058 = vld [vmem:[%s240 + $0x838] sm:$0xf]
        %v1059 = vld [vmem:[%s240 + $0x83c] sm:$0xf]
        %v1060 = vld [vmem:[%s240 + $0x840] sm:$0xf]
        %v1061 = vld [vmem:[%s240 + $0x844] sm:$0xf]
        %v1062 = vld [vmem:[%s240 + $0x848] sm:$0xf]
        %v1063 = vld [vmem:[%s240 + $0x84c] sm:$0xf]
        %v1064 = vld [vmem:[%s240 + $0x850] sm:$0xf]
        %v1065 = vld [vmem:[%s240 + $0x854] sm:$0xf]
        %v1066 = vld [vmem:[%s240 + $0x858] sm:$0xf]
        %v1067 = vld [vmem:[%s240 + $0x85c] sm:$0xf]
        %v1068 = vld [vmem:[%s240 + $0x860] sm:$0xf]
        %v1069 = vld [vmem:[%s240 + $0x864] sm:$0xf]
        %v1070 = vld [vmem:[%s240 + $0x868] sm:$0xf]
        %v1071 = vld [vmem:[%s240 + $0x86c] sm:$0xf]
        %v1072 = vld [vmem:[%s240 + $0x870] sm:$0xf]
        %v1073 = vld [vmem:[%s240 + $0x874] sm:$0xf]
        %v1074 = vld [vmem:[%s240 + $0x878] sm:$0xf]
        %v1075 = vld [vmem:[%s240 + $0x87c] sm:$0xf]
        %v1076 = vld [vmem:[%s240 + $0x880] sm:$0xf]
        %v1077 = vld [vmem:[%s240 + $0x884] sm:$0xf]
        %v1078 = vld [vmem:[%s240 + $0x888] sm:$0xf]
        %v1079 = vld [vmem:[%s240 + $0x88c] sm:$0xf]
        %v1080 = vld [vmem:[%s240 + $0x890] sm:$0xf]
        %v1081 = vld [vmem:[%s240 + $0x894] sm:$0xf]
        %v1082 = vld [vmem:[%s240 + $0x898] sm:$0xf]
        %v1083 = vld [vmem:[%s240 + $0x89c] sm:$0xf]
        %v1084 = vld [vmem:[%s240 + $0x8a0] sm:$0xf]
        %v1085 = vld [vmem:[%s240 + $0x8a4] sm:$0xf]
        %v1086 = vld [vmem:[%s240 + $0x8a8] sm:$0xf]
        %v1087 = vld [vmem:[%s240 + $0x8ac] sm:$0xf]
        %v1088 = vld [vmem:[%s240 + $0x8b0] sm:$0xf]
        %v1089 = vld [vmem:[%s240 + $0x8b4] sm:$0xf]
        %v1090 = vld [vmem:[%s240 + $0x8b8] sm:$0xf]
        %v1091 = vld [vmem:[%s240 + $0x8bc] sm:$0xf]
        %v1092 = vld [vmem:[%s240 + $0x8c0] sm:$0xf]
        %v1093 = vld [vmem:[%s240 + $0x8c4] sm:$0xf]
        %v1094 = vld [vmem:[%s240 + $0x8c8] sm:$0xf]
        %v1095 = vld [vmem:[%s240 + $0x8cc] sm:$0xf]
        %v1096 = vld [vmem:[%s240 + $0x8d0] sm:$0xf]
        %v1097 = vld [vmem:[%s240 + $0x8d4] sm:$0xf]
        %v1098 = vld [vmem:[%s240 + $0x8d8] sm:$0xf]
        %v1099 = vld [vmem:[%s240 + $0x8dc] sm:$0xf]
        %v1100 = vld [vmem:[%s240 + $0x8e0] sm:$0xf]
        %v1101 = vld [vmem:[%s240 + $0x8e4] sm:$0xf]
        %v1102 = vld [vmem:[%s240 + $0x8e8] sm:$0xf]
        %v1103 = vld [vmem:[%s240 + $0x8ec] sm:$0xf]
        %v1104 = vld [vmem:[%s240 + $0x8f0] sm:$0xf]
        %v1105 = vld [vmem:[%s240 + $0x8f4] sm:$0xf]
        %v1106 = vld [vmem:[%s240 + $0x8f8] sm:$0xf]
        %v1107 = vld [vmem:[%s240 + $0x8fc] sm:$0xf]
        %v1108 = vld [vmem:[%s240 + $0x900] sm:$0xf]
        %v1109 = vld [vmem:[%s240 + $0x904] sm:$0xf]
        %v1110 = vld [vmem:[%s240 + $0x908] sm:$0xf]
        %v1111 = vld [vmem:[%s240 + $0x90c] sm:$0xf]
        %v1112 = vld [vmem:[%s240 + $0x910] sm:$0xf]
        %v1113 = vld [vmem:[%s240 + $0x914] sm:$0xf]
        %v1114 = vld [vmem:[%s240 + $0x918] sm:$0xf]
        %v1115 = vld [vmem:[%s240 + $0x91c] sm:$0xf]
        %v1116 = vld [vmem:[%s240 + $0x920] sm:$0xf]
        %v1117 = vld [vmem:[%s240 + $0x924] sm:$0xf]
        %v1118 = vld [vmem:[%s240 + $0x928] sm:$0xf]
        %v1119 = vld [vmem:[%s240 + $0x92c] sm:$0xf]
        %v1120 = vld [vmem:[%s240 + $0x930] sm:$0xf]
        %v1121 = vld [vmem:[%s240 + $0x934] sm:$0xf]
        %v1122 = vld [vmem:[%s240 + $0x938] sm:$0xf]
        %v1123 = vld [vmem:[%s240 + $0x93c] sm:$0xf]
        %v1124 = vld [vmem:[%s240 + $0x940] sm:$0xf]
        %v1125 = vld [vmem:[%s240 + $0x944] sm:$0xf]
        %v1126 = vld [vmem:[%s240 + $0x948] sm:$0xf]
        %v1127 = vld [vmem:[%s240 + $0x94c] sm:$0xf]
        %v1128 = vld [vmem:[%s240 + $0x950] sm:$0xf]
        %v1129 = vld [vmem:[%s240 + $0x954] sm:$0xf]
        %v1130 = vld [vmem:[%s240 + $0x958] sm:$0xf]
        %v1131 = vld [vmem:[%s240 + $0x95c] sm:$0xf]
        %v1132 = vld [vmem:[%s240 + $0x960] sm:$0xf]
        %v1133 = vld [vmem:[%s240 + $0x964] sm:$0xf]
        %v1134 = vld [vmem:[%s240 + $0x968] sm:$0xf]
        %v1135 = vld [vmem:[%s240 + $0x96c] sm:$0xf]
        %v1136 = vld [vmem:[%s240 + $0x970] sm:$0xf]
        %v1137 = vld [vmem:[%s240 + $0x974] sm:$0xf]
        %v1138 = vld [vmem:[%s240 + $0x978] sm:$0xf]
        %v1139 = vld [vmem:[%s240 + $0x97c] sm:$0xf]
        %v1140 = vld [vmem:[%s240 + $0x980] sm:$0xf]
        %v1141 = vld [vmem:[%s240 + $0x984] sm:$0xf]
        %v1142 = vld [vmem:[%s240 + $0x988] sm:$0xf]
        %v1143 = vld [vmem:[%s240 + $0x98c] sm:$0xf]
        %v1144 = vld [vmem:[%s240 + $0x990] sm:$0xf]
        %v1145 = vld [vmem:[%s240 + $0x994] sm:$0xf]
        %v1146 = vld [vmem:[%s240 + $0x998] sm:$0xf]
        %v1147 = vld [vmem:[%s240 + $0x99c] sm:$0xf]
        %v1148 = vld [vmem:[%s240 + $0x9a0] sm:$0xf]
        %v1149 = vld [vmem:[%s240 + $0x9a4] sm:$0xf]
        %v1150 = vld [vmem:[%s240 + $0x9a8] sm:$0xf]
        %v1151 = vld [vmem:[%s240 + $0x9ac] sm:$0xf]
        %v1152 = vld [vmem:[%s240 + $0x9b0] sm:$0xf]
        %v1153 = vld [vmem:[%s240 + $0x9b4] sm:$0xf]
        %v1154 = vld [vmem:[%s240 + $0x9b8] sm:$0xf]
        %v1155 = vld [vmem:[%s240 + $0x9bc] sm:$0xf]
        %v1156 = vld [vmem:[%s240 + $0x9c0] sm:$0xf]
        %v1157 = vld [vmem:[%s240 + $0x9c4] sm:$0xf]
        %v1158 = vld [vmem:[%s240 + $0x9c8] sm:$0xf]
        %v1159 = vld [vmem:[%s240 + $0x9cc] sm:$0xf]
        %v1160 = vld [vmem:[%s240 + $0x9d0] sm:$0xf]
        %v1161 = vld [vmem:[%s240 + $0x9d4] sm:$0xf]
        %v1162 = vld [vmem:[%s240 + $0x9d8] sm:$0xf]
        %v1163 = vld [vmem:[%s240 + $0x9dc] sm:$0xf]
        %v1164 = vld [vmem:[%s240 + $0x9e0] sm:$0xf]
        %v1165 = vld [vmem:[%s240 + $0x9e4] sm:$0xf]
        %v1166 = vld [vmem:[%s240 + $0x9e8] sm:$0xf]
        %v1167 = vld [vmem:[%s240 + $0x9ec] sm:$0xf]
        %v1168 = vld [vmem:[%s240 + $0x9f0] sm:$0xf]
        %v1169 = vld [vmem:[%s240 + $0x9f4] sm:$0xf]
        %v1170 = vld [vmem:[%s240 + $0x9f8] sm:$0xf]
        %v1171 = vld [vmem:[%s240 + $0x9fc] sm:$0xf]
        %v1172 = vld [vmem:[%s240 + $0xa00] sm:$0xf]
        %v1173 = vld [vmem:[%s240 + $0xa04] sm:$0xf]
        %v1174 = vld [vmem:[%s240 + $0xa08] sm:$0xf]
        %v1175 = vld [vmem:[%s240 + $0xa0c] sm:$0xf]
        %v1176 = vld [vmem:[%s240 + $0xa10] sm:$0xf]
        %v1177 = vld [vmem:[%s240 + $0xa14] sm:$0xf]
        %v1178 = vld [vmem:[%s240 + $0xa18] sm:$0xf]
        %v1179 = vld [vmem:[%s240 + $0xa1c] sm:$0xf]
        %v1180 = vld [vmem:[%s240 + $0xa20] sm:$0xf]
        %v1181 = vld [vmem:[%s240 + $0xa24] sm:$0xf]
        %v1182 = vld [vmem:[%s240 + $0xa28] sm:$0xf]
        %v1183 = vld [vmem:[%s240 + $0xa2c] sm:$0xf]
        %v1184 = vld [vmem:[%s240 + $0xa30] sm:$0xf]
        %v1185 = vld [vmem:[%s240 + $0xa34] sm:$0xf]
        %v1186 = vld [vmem:[%s240 + $0xa38] sm:$0xf]
        %v1187 = vld [vmem:[%s240 + $0xa3c] sm:$0xf]
        %v1188 = vld [vmem:[%s240 + $0xa40] sm:$0xf]
        %v1189 = vld [vmem:[%s240 + $0xa44] sm:$0xf]
        %v1190 = vld [vmem:[%s240 + $0xa48] sm:$0xf]
        %v1191 = vld [vmem:[%s240 + $0xa4c] sm:$0xf]
        %v1192 = vld [vmem:[%s240 + $0xa50] sm:$0xf]
        %v1193 = vld [vmem:[%s240 + $0xa54] sm:$0xf]
        %v1194 = vld [vmem:[%s240 + $0xa58] sm:$0xf]
        %v1195 = vld [vmem:[%s240 + $0xa5c] sm:$0xf]
        %v1196 = vld [vmem:[%s240 + $0xa60] sm:$0xf]
        %v1197 = vld [vmem:[%s240 + $0xa64] sm:$0xf]
        %v1198 = vld [vmem:[%s240 + $0xa68] sm:$0xf]
        %v1199 = vld [vmem:[%s240 + $0xa6c] sm:$0xf]
        %v1200 = vld [vmem:[%s240 + $0xa70] sm:$0xf]
        %v1201 = vld [vmem:[%s240 + $0xa74] sm:$0xf]
        %v1202 = vld [vmem:[%s240 + $0xa78] sm:$0xf]
        %v1203 = vld [vmem:[%s240 + $0xa7c] sm:$0xf]
        %v1204 = vld [vmem:[%s240 + $0xa80] sm:$0xf]
        %v1205 = vld [vmem:[%s240 + $0xa84] sm:$0xf]
        %v1206 = vld [vmem:[%s240 + $0xa88] sm:$0xf]
        %v1207 = vld [vmem:[%s240 + $0xa8c] sm:$0xf]
        %v1208 = vld [vmem:[%s240 + $0xa90] sm:$0xf]
        %v1209 = vld [vmem:[%s240 + $0xa94] sm:$0xf]
        %v1210 = vld [vmem:[%s240 + $0xa98] sm:$0xf]
        %v1211 = vld [vmem:[%s240 + $0xa9c] sm:$0xf]
        %v1212 = vld [vmem:[%s240 + $0xaa0] sm:$0xf]
        %v1213 = vld [vmem:[%s240 + $0xaa4] sm:$0xf]
        %v1214 = vld [vmem:[%s240 + $0xaa8] sm:$0xf]
        %v1215 = vld [vmem:[%s240 + $0xaac] sm:$0xf]
        %v1216 = vld [vmem:[%s240 + $0xab0] sm:$0xf]
        %v1217 = vld [vmem:[%s240 + $0xab4] sm:$0xf]
        %v1218 = vld [vmem:[%s240 + $0xab8] sm:$0xf]
        %v1219 = vld [vmem:[%s240 + $0xabc] sm:$0xf]
        %v1220 = vld [vmem:[%s240 + $0xac0] sm:$0xf]
        %v1221 = vld [vmem:[%s240 + $0xac4] sm:$0xf]
        %v1222 = vld [vmem:[%s240 + $0xac8] sm:$0xf]
        %v1223 = vld [vmem:[%s240 + $0xacc] sm:$0xf]
        %v1224 = vld [vmem:[%s240 + $0xad0] sm:$0xf]
        %v1225 = vld [vmem:[%s240 + $0xad4] sm:$0xf]
        %v1226 = vld [vmem:[%s240 + $0xad8] sm:$0xf]
        %v1227 = vld [vmem:[%s240 + $0xadc] sm:$0xf]
        %v1228 = vld [vmem:[%s240 + $0xae0] sm:$0xf]
        %v1229 = vld [vmem:[%s240 + $0xae4] sm:$0xf]
        %v1230 = vld [vmem:[%s240 + $0xae8] sm:$0xf]
        %v1231 = vld [vmem:[%s240 + $0xaec] sm:$0xf]
        %v1232 = vld [vmem:[%s240 + $0xaf0] sm:$0xf]
        %v1233 = vld [vmem:[%s240 + $0xaf4] sm:$0xf]
        %v1234 = vld [vmem:[%s240 + $0xaf8] sm:$0xf]
        %v1235 = vld [vmem:[%s240 + $0xafc] sm:$0xf]
        %v1236 = vld [vmem:[%s240 + $0xb00] sm:$0xf]
        %v1237 = vld [vmem:[%s240 + $0xb04] sm:$0xf]
        %v1238 = vld [vmem:[%s240 + $0xb08] sm:$0xf]
        %v1239 = vld [vmem:[%s240 + $0xb0c] sm:$0xf]
        %v1240 = vld [vmem:[%s240 + $0xb10] sm:$0xf]
        %v1241 = vld [vmem:[%s240 + $0xb14] sm:$0xf]
        %v1242 = vld [vmem:[%s240 + $0xb18] sm:$0xf]
        %v1243 = vld [vmem:[%s240 + $0xb1c] sm:$0xf]
        %v1244 = vld [vmem:[%s240 + $0xb20] sm:$0xf]
        %v1245 = vld [vmem:[%s240 + $0xb24] sm:$0xf]
        %v1246 = vld [vmem:[%s240 + $0xb28] sm:$0xf]
        %v1247 = vld [vmem:[%s240 + $0xb2c] sm:$0xf]
        %v1248 = vld [vmem:[%s240 + $0xb30] sm:$0xf]
        %v1249 = vld [vmem:[%s240 + $0xb34] sm:$0xf]
        %v1250 = vld [vmem:[%s240 + $0xb38] sm:$0xf]
        %v1251 = vld [vmem:[%s240 + $0xb3c] sm:$0xf]
        %v1252 = vld [vmem:[%s240 + $0xb40] sm:$0xf]
        %v1253 = vld [vmem:[%s240 + $0xb44] sm:$0xf]
        %v1254 = vld [vmem:[%s240 + $0xb48] sm:$0xf]
        %v1255 = vld [vmem:[%s240 + $0xb4c] sm:$0xf]
        %v1256 = vld [vmem:[%s240 + $0xb50] sm:$0xf]
        %v1257 = vld [vmem:[%s240 + $0xb54] sm:$0xf]
        %v1258 = vld [vmem:[%s240 + $0xb58] sm:$0xf]
        %v1259 = vld [vmem:[%s240 + $0xb5c] sm:$0xf]
        %v1260 = vld [vmem:[%s240 + $0xb60] sm:$0xf]
        %v1261 = vld [vmem:[%s240 + $0xb64] sm:$0xf]
        %v1262 = vld [vmem:[%s240 + $0xb68] sm:$0xf]
        %v1263 = vld [vmem:[%s240 + $0xb6c] sm:$0xf]
        %v1264 = vld [vmem:[%s240 + $0xb70] sm:$0xf]
        %v1265 = vld [vmem:[%s240 + $0xb74] sm:$0xf]
        %v1266 = vld [vmem:[%s240 + $0xb78] sm:$0xf]
        %v1267 = vld [vmem:[%s240 + $0xb7c] sm:$0xf]
        %v1268 = vld [vmem:[%s240 + $0xb80] sm:$0xf]
        %v1269 = vld [vmem:[%s240 + $0xb84] sm:$0xf]
        %v1270 = vld [vmem:[%s240 + $0xb88] sm:$0xf]
        %v1271 = vld [vmem:[%s240 + $0xb8c] sm:$0xf]
        %v1272 = vld [vmem:[%s240 + $0xb90] sm:$0xf]
        %v1273 = vld [vmem:[%s240 + $0xb94] sm:$0xf]
        %v1274 = vld [vmem:[%s240 + $0xb98] sm:$0xf]
        %v1275 = vld [vmem:[%s240 + $0xb9c] sm:$0xf]
        %v1276 = vld [vmem:[%s240 + $0xba0] sm:$0xf]
        %v1277 = vld [vmem:[%s240 + $0xba4] sm:$0xf]
        %v1278 = vld [vmem:[%s240 + $0xba8] sm:$0xf]
        %v1279 = vld [vmem:[%s240 + $0xbac] sm:$0xf]
        %v1280 = vld [vmem:[%s240 + $0xbb0] sm:$0xf]
        %v1281 = vld [vmem:[%s240 + $0xbb4] sm:$0xf]
        %v1282 = vld [vmem:[%s240 + $0xbb8] sm:$0xf]
        %v1283 = vld [vmem:[%s240 + $0xbbc] sm:$0xf]
        %v1284 = vld [vmem:[%s240 + $0xbc0] sm:$0xf]
        %v1285 = vld [vmem:[%s240 + $0xbc4] sm:$0xf]
        %v1286 = vld [vmem:[%s240 + $0xbc8] sm:$0xf]
        %v1287 = vld [vmem:[%s240 + $0xbcc] sm:$0xf]
        %v1288 = vld [vmem:[%s240 + $0xbd0] sm:$0xf]
        %v1289 = vld [vmem:[%s240 + $0xbd4] sm:$0xf]
        %v1290 = vld [vmem:[%s240 + $0xbd8] sm:$0xf]
        %v1291 = vld [vmem:[%s240 + $0xbdc] sm:$0xf]
        %v1292 = vld [vmem:[%s240 + $0xbe0] sm:$0xf]
        %v1293 = vld [vmem:[%s240 + $0xbe4] sm:$0xf]
        %v1294 = vld [vmem:[%s240 + $0xbe8] sm:$0xf]
        %v1295 = vld [vmem:[%s240 + $0xbec] sm:$0xf]
        %v1296 = vld [vmem:[%s240 + $0xbf0] sm:$0xf]
        %v1297 = vld [vmem:[%s240 + $0xbf4] sm:$0xf]
        %v1298 = vld [vmem:[%s240 + $0xbf8] sm:$0xf]
        %v1299 = vld [vmem:[%s240 + $0xbfc] sm:$0xf]
        %v1300 = vld [vmem:[%s240 + $0xc00] sm:$0xf]
        %v1301 = vld [vmem:[%s240 + $0xc04] sm:$0xf]
        %v1302 = vld [vmem:[%s240 + $0xc08] sm:$0xf]
        %v1303 = vld [vmem:[%s240 + $0xc0c] sm:$0xf]
        %v1304 = vld [vmem:[%s240 + $0xc10] sm:$0xf]
        %v1305 = vld [vmem:[%s240 + $0xc14] sm:$0xf]
        %v1306 = vld [vmem:[%s240 + $0xc18] sm:$0xf]
        %v1307 = vld [vmem:[%s240 + $0xc1c] sm:$0xf]
        %v1308 = vld [vmem:[%s240 + $0xc20] sm:$0xf]
        %v1309 = vld [vmem:[%s240 + $0xc24] sm:$0xf]
        %v1310 = vld [vmem:[%s240 + $0xc28] sm:$0xf]
        %v1311 = vld [vmem:[%s240 + $0xc2c] sm:$0xf]
        %v1312 = vld [vmem:[%s240 + $0xc30] sm:$0xf]
        %v1313 = vld [vmem:[%s240 + $0xc34] sm:$0xf]
        %v1314 = vld [vmem:[%s240 + $0xc38] sm:$0xf]
        %v1315 = vld [vmem:[%s240 + $0xc3c] sm:$0xf]
        %v1316 = vld [vmem:[%s240 + $0xc40] sm:$0xf]
        %v1317 = vld [vmem:[%s240 + $0xc44] sm:$0xf]
        %v1318 = vld [vmem:[%s240 + $0xc48] sm:$0xf]
        %v1319 = vld [vmem:[%s240 + $0xc4c] sm:$0xf]
        %v1320 = vld [vmem:[%s240 + $0xc50] sm:$0xf]
        %v1321 = vld [vmem:[%s240 + $0xc54] sm:$0xf]
        %v1322 = vld [vmem:[%s240 + $0xc58] sm:$0xf]
        %v1323 = vld [vmem:[%s240 + $0xc5c] sm:$0xf]
        %v1324 = vld [vmem:[%s240 + $0xc60] sm:$0xf]
        %v1325 = vld [vmem:[%s240 + $0xc64] sm:$0xf]
        %v1326 = vld [vmem:[%s240 + $0xc68] sm:$0xf]
        %v1327 = vld [vmem:[%s240 + $0xc6c] sm:$0xf]
        %v1328 = vld [vmem:[%s240 + $0xc70] sm:$0xf]
        %v1329 = vld [vmem:[%s240 + $0xc74] sm:$0xf]
        %v1330 = vld [vmem:[%s240 + $0xc78] sm:$0xf]
        %v1331 = vld [vmem:[%s240 + $0xc7c] sm:$0xf]
        %v1332 = vld [vmem:[%s240 + $0xc80] sm:$0xf]
        %v1333 = vld [vmem:[%s240 + $0xc84] sm:$0xf]
        %v1334 = vld [vmem:[%s240 + $0xc88] sm:$0xf]
        %v1335 = vld [vmem:[%s240 + $0xc8c] sm:$0xf]
        %v1336 = vld [vmem:[%s240 + $0xc90] sm:$0xf]
        %v1337 = vld [vmem:[%s240 + $0xc94] sm:$0xf]
        %v1338 = vld [vmem:[%s240 + $0xc98] sm:$0xf]
        %v1339 = vld [vmem:[%s240 + $0xc9c] sm:$0xf]
        %v1340 = vld [vmem:[%s240 + $0xca0] sm:$0xf]
        %v1341 = vld [vmem:[%s240 + $0xca4] sm:$0xf]
        %v1342 = vld [vmem:[%s240 + $0xca8] sm:$0xf]
        %v1343 = vld [vmem:[%s240 + $0xcac] sm:$0xf]
        %v1344 = vld [vmem:[%s240 + $0xcb0] sm:$0xf]
        %v1345 = vld [vmem:[%s240 + $0xcb4] sm:$0xf]
        %v1346 = vld [vmem:[%s240 + $0xcb8] sm:$0xf]
        %v1347 = vld [vmem:[%s240 + $0xcbc] sm:$0xf]
        %v1348 = vld [vmem:[%s240 + $0xcc0] sm:$0xf]
        %v1349 = vld [vmem:[%s240 + $0xcc4] sm:$0xf]
        %v1350 = vld [vmem:[%s240 + $0xcc8] sm:$0xf]
        %v1351 = vld [vmem:[%s240 + $0xccc] sm:$0xf]
        %v1352 = vld [vmem:[%s240 + $0xcd0] sm:$0xf]
        %v1353 = vld [vmem:[%s240 + $0xcd4] sm:$0xf]
        %v1354 = vld [vmem:[%s240 + $0xcd8] sm:$0xf]
        %v1355 = vld [vmem:[%s240 + $0xcdc] sm:$0xf]
        %v1356 = vld [vmem:[%s240 + $0xce0] sm:$0xf]
        %v1357 = vld [vmem:[%s240 + $0xce4] sm:$0xf]
        %v1358 = vld [vmem:[%s240 + $0xce8] sm:$0xf]
        %v1359 = vld [vmem:[%s240 + $0xcec] sm:$0xf]
        %v1360 = vld [vmem:[%s240 + $0xcf0] sm:$0xf]
        %v1361 = vld [vmem:[%s240 + $0xcf4] sm:$0xf]
        %v1362 = vld [vmem:[%s240 + $0xcf8] sm:$0xf]
        %v1363 = vld [vmem:[%s240 + $0xcfc] sm:$0xf]
        %v1364 = vld [vmem:[%s240 + $0xd00] sm:$0xf]
        %v1365 = vld [vmem:[%s240 + $0xd04] sm:$0xf]
        %v1366 = vld [vmem:[%s240 + $0xd08] sm:$0xf]
        %v1367 = vld [vmem:[%s240 + $0xd0c] sm:$0xf]
        %v1368 = vld [vmem:[%s240 + $0xd10] sm:$0xf]
        %v1369 = vld [vmem:[%s240 + $0xd14] sm:$0xf]
        %v1370 = vld [vmem:[%s240 + $0xd18] sm:$0xf]
        %v1371 = vld [vmem:[%s240 + $0xd1c] sm:$0xf]
        %v1372 = vld [vmem:[%s240 + $0xd20] sm:$0xf]
        %v1373 = vld [vmem:[%s240 + $0xd24] sm:$0xf]
        %v1374 = vld [vmem:[%s240 + $0xd28] sm:$0xf]
        %v1375 = vld [vmem:[%s240 + $0xd2c] sm:$0xf]
        %v1376 = vld [vmem:[%s240 + $0xd30] sm:$0xf]
        %v1377 = vld [vmem:[%s240 + $0xd34] sm:$0xf]
        %v1378 = vld [vmem:[%s240 + $0xd38] sm:$0xf]
        %v1379 = vld [vmem:[%s240 + $0xd3c] sm:$0xf]
        %v1380 = vld [vmem:[%s240 + $0xd40] sm:$0xf]
        %v1381 = vld [vmem:[%s240 + $0xd44] sm:$0xf]
        %v1382 = vld [vmem:[%s240 + $0xd48] sm:$0xf]
        %v1383 = vld [vmem:[%s240 + $0xd4c] sm:$0xf]
        %v1384 = vld [vmem:[%s240 + $0xd50] sm:$0xf]
        %v1385 = vld [vmem:[%s240 + $0xd54] sm:$0xf]
        %v1386 = vld [vmem:[%s240 + $0xd58] sm:$0xf]
        %v1387 = vld [vmem:[%s240 + $0xd5c] sm:$0xf]
        %v1388 = vld [vmem:[%s240 + $0xd60] sm:$0xf]
        %v1389 = vld [vmem:[%s240 + $0xd64] sm:$0xf]
        %v1390 = vld [vmem:[%s240 + $0xd68] sm:$0xf]
        %v1391 = vld [vmem:[%s240 + $0xd6c] sm:$0xf]
        %v1392 = vld [vmem:[%s240 + $0xd70] sm:$0xf]
        %v1393 = vld [vmem:[%s240 + $0xd74] sm:$0xf]
        %v1394 = vld [vmem:[%s240 + $0xd78] sm:$0xf]
        %v1395 = vld [vmem:[%s240 + $0xd7c] sm:$0xf]
        %v1396 = vld [vmem:[%s240 + $0xd80] sm:$0xf]
        %v1397 = vld [vmem:[%s240 + $0xd84] sm:$0xf]
        %v1398 = vld [vmem:[%s240 + $0xd88] sm:$0xf]
        %v1399 = vld [vmem:[%s240 + $0xd8c] sm:$0xf]
        %v1400 = vld [vmem:[%s240 + $0xd90] sm:$0xf]
        %v1401 = vld [vmem:[%s240 + $0xd94] sm:$0xf]
        %v1402 = vld [vmem:[%s240 + $0xd98] sm:$0xf]
        %v1403 = vld [vmem:[%s240 + $0xd9c] sm:$0xf]
        %v1404 = vld [vmem:[%s240 + $0xda0] sm:$0xf]
        %v1405 = vld [vmem:[%s240 + $0xda4] sm:$0xf]
        %v1406 = vld [vmem:[%s240 + $0xda8] sm:$0xf]
        %v1407 = vld [vmem:[%s240 + $0xdac] sm:$0xf]
        %v1408 = vld [vmem:[%s240 + $0xdb0] sm:$0xf]
        %v1409 = vld [vmem:[%s240 + $0xdb4] sm:$0xf]
        %v1410 = vld [vmem:[%s240 + $0xdb8] sm:$0xf]
        %v1411 = vld [vmem:[%s240 + $0xdbc] sm:$0xf]
        %v1412 = vld [vmem:[%s240 + $0xdc0] sm:$0xf]
        %v1413 = vld [vmem:[%s240 + $0xdc4] sm:$0xf]
        %v1414 = vld [vmem:[%s240 + $0xdc8] sm:$0xf]
        %v1415 = vld [vmem:[%s240 + $0xdcc] sm:$0xf]
        %v1416 = vld [vmem:[%s240 + $0xdd0] sm:$0xf]
        %v1417 = vld [vmem:[%s240 + $0xdd4] sm:$0xf]
        %v1418 = vld [vmem:[%s240 + $0xdd8] sm:$0xf]
        %v1419 = vld [vmem:[%s240 + $0xddc] sm:$0xf]
        %v1420 = vld [vmem:[%s240 + $0xde0] sm:$0xf]
        %v1421 = vld [vmem:[%s240 + $0xde4] sm:$0xf]
        %v1422 = vld [vmem:[%s240 + $0xde8] sm:$0xf]
        %v1423 = vld [vmem:[%s240 + $0xdec] sm:$0xf]
        %v1424 = vld [vmem:[%s240 + $0xdf0] sm:$0xf]
        %v1425 = vld [vmem:[%s240 + $0xdf4] sm:$0xf]
        %v1426 = vld [vmem:[%s240 + $0xdf8] sm:$0xf]
        %v1427 = vld [vmem:[%s240 + $0xdfc] sm:$0xf]
        %v1428 = vld [vmem:[%s240 + $0xe00] sm:$0xf]
        %v1429 = vld [vmem:[%s240 + $0xe04] sm:$0xf]
        %v1430 = vld [vmem:[%s240 + $0xe08] sm:$0xf]
        %v1431 = vld [vmem:[%s240 + $0xe0c] sm:$0xf]
        %v1432 = vld [vmem:[%s240 + $0xe10] sm:$0xf]
        %v1433 = vld [vmem:[%s240 + $0xe14] sm:$0xf]
        %v1434 = vld [vmem:[%s240 + $0xe18] sm:$0xf]
        %v1435 = vld [vmem:[%s240 + $0xe1c] sm:$0xf]
        %v1436 = vld [vmem:[%s240 + $0xe20] sm:$0xf]
        %v1437 = vld [vmem:[%s240 + $0xe24] sm:$0xf]
        %v1438 = vld [vmem:[%s240 + $0xe28] sm:$0xf]
        %v1439 = vld [vmem:[%s240 + $0xe2c] sm:$0xf]
        %v1440 = vld [vmem:[%s240 + $0xe30] sm:$0xf]
        %v1441 = vld [vmem:[%s240 + $0xe34] sm:$0xf]
        %v1442 = vld [vmem:[%s240 + $0xe38] sm:$0xf]
        %v1443 = vld [vmem:[%s240 + $0xe3c] sm:$0xf]
        %v1444 = vld [vmem:[%s240 + $0xe40] sm:$0xf]
        %v1445 = vld [vmem:[%s240 + $0xe44] sm:$0xf]
        %v1446 = vld [vmem:[%s240 + $0xe48] sm:$0xf]
        %v1447 = vld [vmem:[%s240 + $0xe4c] sm:$0xf]
        %v1448 = vld [vmem:[%s240 + $0xe50] sm:$0xf]
        %v1449 = vld [vmem:[%s240 + $0xe54] sm:$0xf]
        %v1450 = vld [vmem:[%s240 + $0xe58] sm:$0xf]
        %v1451 = vld [vmem:[%s240 + $0xe5c] sm:$0xf]
        %v1452 = vld [vmem:[%s240 + $0xe60] sm:$0xf]
        %v1453 = vld [vmem:[%s240 + $0xe64] sm:$0xf]
        %v1454 = vld [vmem:[%s240 + $0xe68] sm:$0xf]
        %v1455 = vld [vmem:[%s240 + $0xe6c] sm:$0xf]
        %v1456 = vld [vmem:[%s240 + $0xe70] sm:$0xf]
        %v1457 = vld [vmem:[%s240 + $0xe74] sm:$0xf]
        %v1458 = vld [vmem:[%s240 + $0xe78] sm:$0xf]
        %v1459 = vld [vmem:[%s240 + $0xe7c] sm:$0xf]
        %v1460 = vld [vmem:[%s240 + $0xe80] sm:$0xf]
        %v1461 = vld [vmem:[%s240 + $0xe84] sm:$0xf]
        %v1462 = vld [vmem:[%s240 + $0xe88] sm:$0xf]
        %v1463 = vld [vmem:[%s240 + $0xe8c] sm:$0xf]
        %v1464 = vld [vmem:[%s240 + $0xe90] sm:$0xf]
        %v1465 = vld [vmem:[%s240 + $0xe94] sm:$0xf]
        %v1466 = vld [vmem:[%s240 + $0xe98] sm:$0xf]
        %v1467 = vld [vmem:[%s240 + $0xe9c] sm:$0xf]
        %v1468 = vld [vmem:[%s240 + $0xea0] sm:$0xf]
        %v1469 = vld [vmem:[%s240 + $0xea4] sm:$0xf]
        %v1470 = vld [vmem:[%s240 + $0xea8] sm:$0xf]
        %v1471 = vld [vmem:[%s240 + $0xeac] sm:$0xf]
        %v1472 = vld [vmem:[%s240 + $0xeb0] sm:$0xf]
        %v1473 = vld [vmem:[%s240 + $0xeb4] sm:$0xf]
        %v1474 = vld [vmem:[%s240 + $0xeb8] sm:$0xf]
        %v1475 = vld [vmem:[%s240 + $0xebc] sm:$0xf]
        %v1476 = vld [vmem:[%s240 + $0xec0] sm:$0xf]
        %v1477 = vld [vmem:[%s240 + $0xec4] sm:$0xf]
        %v1478 = vld [vmem:[%s240 + $0xec8] sm:$0xf]
        %v1479 = vld [vmem:[%s240 + $0xecc] sm:$0xf]
        %v1480 = vld [vmem:[%s240 + $0xed0] sm:$0xf]
        %v1481 = vld [vmem:[%s240 + $0xed4] sm:$0xf]
        %v1482 = vld [vmem:[%s240 + $0xed8] sm:$0xf]
        %v1483 = vld [vmem:[%s240 + $0xedc] sm:$0xf]
        %v1484 = vld [vmem:[%s240 + $0xee0] sm:$0xf]
        %v1485 = vld [vmem:[%s240 + $0xee4] sm:$0xf]
        %v1486 = vld [vmem:[%s240 + $0xee8] sm:$0xf]
        %v1487 = vld [vmem:[%s240 + $0xeec] sm:$0xf]
        %v1488 = vld [vmem:[%s240 + $0xef0] sm:$0xf]
        %v1489 = vld [vmem:[%s240 + $0xef4] sm:$0xf]
        %v1490 = vld [vmem:[%s240 + $0xef8] sm:$0xf]
        %v1491 = vld [vmem:[%s240 + $0xefc] sm:$0xf]
        %v1492 = vld [vmem:[%s240 + $0xf00] sm:$0xf]
        %v1493 = vld [vmem:[%s240 + $0xf04] sm:$0xf]
        %v1494 = vld [vmem:[%s240 + $0xf08] sm:$0xf]
        %v1495 = vld [vmem:[%s240 + $0xf0c] sm:$0xf]
        %v1496 = vld [vmem:[%s240 + $0xf10] sm:$0xf]
        %v1497 = vld [vmem:[%s240 + $0xf14] sm:$0xf]
        %v1498 = vld [vmem:[%s240 + $0xf18] sm:$0xf]
        %v1499 = vld [vmem:[%s240 + $0xf1c] sm:$0xf]
        %v1500 = vld [vmem:[%s240 + $0xf20] sm:$0xf]
        %v1501 = vld [vmem:[%s240 + $0xf24] sm:$0xf]
        %v1502 = vld [vmem:[%s240 + $0xf28] sm:$0xf]
        %v1503 = vld [vmem:[%s240 + $0xf2c] sm:$0xf]
        %v1504 = vld [vmem:[%s240 + $0xf30] sm:$0xf]
        %v1505 = vld [vmem:[%s240 + $0xf34] sm:$0xf]
        %v1506 = vld [vmem:[%s240 + $0xf38] sm:$0xf]
        %v1507 = vld [vmem:[%s240 + $0xf3c] sm:$0xf]
        %v1508 = vld [vmem:[%s240 + $0xf40] sm:$0xf]
        %v1509 = vld [vmem:[%s240 + $0xf44] sm:$0xf]
        %v1510 = vld [vmem:[%s240 + $0xf48] sm:$0xf]
        %v1511 = vld [vmem:[%s240 + $0xf4c] sm:$0xf]
        %v1512 = vld [vmem:[%s240 + $0xf50] sm:$0xf]
        %v1513 = vld [vmem:[%s240 + $0xf54] sm:$0xf]
        %v1514 = vld [vmem:[%s240 + $0xf58] sm:$0xf]
        %v1515 = vld [vmem:[%s240 + $0xf5c] sm:$0xf]
        %v1516 = vld [vmem:[%s240 + $0xf60] sm:$0xf]
        %v1517 = vld [vmem:[%s240 + $0xf64] sm:$0xf]
        %v1518 = vld [vmem:[%s240 + $0xf68] sm:$0xf]
        %v1519 = vld [vmem:[%s240 + $0xf6c] sm:$0xf]
        %v1520 = vld [vmem:[%s240 + $0xf70] sm:$0xf]
        %v1521 = vld [vmem:[%s240 + $0xf74] sm:$0xf]
        %v1522 = vld [vmem:[%s240 + $0xf78] sm:$0xf]
        %v1523 = vld [vmem:[%s240 + $0xf7c] sm:$0xf]
        %v1524 = vld [vmem:[%s240 + $0xf80] sm:$0xf]
        %v1525 = vld [vmem:[%s240 + $0xf84] sm:$0xf]
        %v1526 = vld [vmem:[%s240 + $0xf88] sm:$0xf]
        %v1527 = vld [vmem:[%s240 + $0xf8c] sm:$0xf]
        %v1528 = vld [vmem:[%s240 + $0xf90] sm:$0xf]
        %v1529 = vld [vmem:[%s240 + $0xf94] sm:$0xf]
        %v1530 = vld [vmem:[%s240 + $0xf98] sm:$0xf]
        %v1531 = vld [vmem:[%s240 + $0xf9c] sm:$0xf]
        %v1532 = vld [vmem:[%s240 + $0xfa0] sm:$0xf]
        %v1533 = vld [vmem:[%s240 + $0xfa4] sm:$0xf]
        %v1534 = vld [vmem:[%s240 + $0xfa8] sm:$0xf]
        %v1535 = vld [vmem:[%s240 + $0xfac] sm:$0xf]
        %v1536 = vld [vmem:[%s240 + $0xfb0] sm:$0xf]
        %v1537 = vld [vmem:[%s240 + $0xfb4] sm:$0xf]
        %v1538 = vld [vmem:[%s240 + $0xfb8] sm:$0xf]
        %v1539 = vld [vmem:[%s240 + $0xfbc] sm:$0xf]
        %v1540 = vld [vmem:[%s240 + $0xfc0] sm:$0xf]
        %v1541 = vld [vmem:[%s240 + $0xfc4] sm:$0xf]
        %v1542 = vld [vmem:[%s240 + $0xfc8] sm:$0xf]
        %v1543 = vld [vmem:[%s240 + $0xfcc] sm:$0xf]
        %v1544 = vld [vmem:[%s240 + $0xfd0] sm:$0xf]
        %v1545 = vld [vmem:[%s240 + $0xfd4] sm:$0xf]
        %v1546 = vld [vmem:[%s240 + $0xfd8] sm:$0xf]
        %v1547 = vld [vmem:[%s240 + $0xfdc] sm:$0xf]
        %v1548 = vld [vmem:[%s240 + $0xfe0] sm:$0xf]
        %v1549 = vld [vmem:[%s240 + $0xfe4] sm:$0xf]
        %v1550 = vld [vmem:[%s240 + $0xfe8] sm:$0xf]
        %v1551 = vld [vmem:[%s240 + $0xfec] sm:$0xf]
        %v1552 = vld [vmem:[%s240 + $0xff0] sm:$0xf]
        %v1553 = vld [vmem:[%s240 + $0xff4] sm:$0xf]
        %v1554 = vld [vmem:[%s240 + $0xff8] sm:$0xf]
        %v1555 = vld [vmem:[%s240 + $0xffc] sm:$0xf]
        %v2580 = vunpack.c.l.b16 %v532
        %v2581 = vunpack.c.l.b16 %v533
        %v2582 = vunpack.c.l.b16 %v534
        %v2583 = vunpack.c.l.b16 %v535
        %v2584 = vunpack.c.l.b16 %v536
        %v2585 = vunpack.c.l.b16 %v537
        %v2586 = vunpack.c.l.b16 %v538
        %v2587 = vunpack.c.l.b16 %v539
        %v2588 = vunpack.c.l.b16 %v540
        %v2589 = vunpack.c.l.b16 %v541
        %v2590 = vunpack.c.l.b16 %v542
        %v2591 = vunpack.c.l.b16 %v543
        %v2592 = vunpack.c.l.b16 %v544
        %v2593 = vunpack.c.l.b16 %v545
        %v2594 = vunpack.c.l.b16 %v546
        %v2595 = vunpack.c.l.b16 %v547
        %v2596 = vunpack.c.l.b16 %v548
        %v2597 = vunpack.c.l.b16 %v549
        %v2598 = vunpack.c.l.b16 %v550
        %v2599 = vunpack.c.l.b16 %v551
        %v2600 = vunpack.c.l.b16 %v552
        %v2601 = vunpack.c.l.b16 %v553
        %v2602 = vunpack.c.l.b16 %v554
        %v2603 = vunpack.c.l.b16 %v555
        %v2604 = vunpack.c.l.b16 %v556
        %v2605 = vunpack.c.l.b16 %v557
        %v2606 = vunpack.c.l.b16 %v558
        %v2607 = vunpack.c.l.b16 %v559
        %v2608 = vunpack.c.l.b16 %v560
        %v2609 = vunpack.c.l.b16 %v561
        %v2610 = vunpack.c.l.b16 %v562
        %v2611 = vunpack.c.l.b16 %v563
        %v2612 = vunpack.c.l.b16 %v564
        %v2613 = vunpack.c.l.b16 %v565
        %v2614 = vunpack.c.l.b16 %v566
        %v2615 = vunpack.c.l.b16 %v567
        %v2616 = vunpack.c.l.b16 %v568
        %v2617 = vunpack.c.l.b16 %v569
        %v2618 = vunpack.c.l.b16 %v570
        %v2619 = vunpack.c.l.b16 %v571
        %v2620 = vunpack.c.l.b16 %v572
        %v2621 = vunpack.c.l.b16 %v573
        %v2622 = vunpack.c.l.b16 %v574
        %v2623 = vunpack.c.l.b16 %v575
        %v2624 = vunpack.c.l.b16 %v576
        %v2625 = vunpack.c.l.b16 %v577
        %v2626 = vunpack.c.l.b16 %v578
        %v2627 = vunpack.c.l.b16 %v579
        %v2628 = vunpack.c.l.b16 %v580
        %v2629 = vunpack.c.l.b16 %v581
        %v2630 = vunpack.c.l.b16 %v582
        %v2631 = vunpack.c.l.b16 %v583
        %v2632 = vunpack.c.l.b16 %v584
        %v2633 = vunpack.c.l.b16 %v585
        %v2634 = vunpack.c.l.b16 %v586
        %v2635 = vunpack.c.l.b16 %v587
        %v2636 = vunpack.c.l.b16 %v588
        %v2637 = vunpack.c.l.b16 %v589
        %v2638 = vunpack.c.l.b16 %v590
        %v2639 = vunpack.c.l.b16 %v591
        %v2640 = vunpack.c.l.b16 %v592
        %v2641 = vunpack.c.l.b16 %v593
        %v2642 = vunpack.c.l.b16 %v594
        %v2643 = vunpack.c.l.b16 %v595
        %v2644 = vunpack.c.l.b16 %v596
        %v2645 = vunpack.c.l.b16 %v597
        %v2646 = vunpack.c.l.b16 %v598
        %v2647 = vunpack.c.l.b16 %v599
        %v2648 = vunpack.c.l.b16 %v600
        %v2649 = vunpack.c.l.b16 %v601
        %v2650 = vunpack.c.l.b16 %v602
        %v2651 = vunpack.c.l.b16 %v603
        %v2652 = vunpack.c.l.b16 %v604
        %v2653 = vunpack.c.l.b16 %v605
        %v2654 = vunpack.c.l.b16 %v606
        %v2655 = vunpack.c.l.b16 %v607
        %v2656 = vunpack.c.l.b16 %v608
        %v2657 = vunpack.c.l.b16 %v609
        %v2658 = vunpack.c.l.b16 %v610
        %v2659 = vunpack.c.l.b16 %v611
        %v2660 = vunpack.c.l.b16 %v612
        %v2661 = vunpack.c.l.b16 %v613
        %v2662 = vunpack.c.l.b16 %v614
        %v2663 = vunpack.c.l.b16 %v615
        %v2664 = vunpack.c.l.b16 %v616
        %v2665 = vunpack.c.l.b16 %v617
        %v2666 = vunpack.c.l.b16 %v618
        %v2667 = vunpack.c.l.b16 %v619
        %v2668 = vunpack.c.l.b16 %v620
        %v2669 = vunpack.c.l.b16 %v621
        %v2670 = vunpack.c.l.b16 %v622
        %v2671 = vunpack.c.l.b16 %v623
        %v2672 = vunpack.c.l.b16 %v624
        %v2673 = vunpack.c.l.b16 %v625
        %v2674 = vunpack.c.l.b16 %v626
        %v2675 = vunpack.c.l.b16 %v627
        %v2676 = vunpack.c.l.b16 %v628
        %v2677 = vunpack.c.l.b16 %v629
        %v2678 = vunpack.c.l.b16 %v630
        %v2679 = vunpack.c.l.b16 %v631
        %v2680 = vunpack.c.l.b16 %v632
        %v2681 = vunpack.c.l.b16 %v633
        %v2682 = vunpack.c.l.b16 %v634
        %v2683 = vunpack.c.l.b16 %v635
        %v2684 = vunpack.c.l.b16 %v636
        %v2685 = vunpack.c.l.b16 %v637
        %v2686 = vunpack.c.l.b16 %v638
        %v2687 = vunpack.c.l.b16 %v639
        %v2688 = vunpack.c.l.b16 %v640
        %v2689 = vunpack.c.l.b16 %v641
        %v2690 = vunpack.c.l.b16 %v642
        %v2691 = vunpack.c.l.b16 %v643
        %v2692 = vunpack.c.l.b16 %v644
        %v2693 = vunpack.c.l.b16 %v645
        %v2694 = vunpack.c.l.b16 %v646
        %v2695 = vunpack.c.l.b16 %v647
        %v2696 = vunpack.c.l.b16 %v648
        %v2697 = vunpack.c.l.b16 %v649
        %v2698 = vunpack.c.l.b16 %v650
        %v2699 = vunpack.c.l.b16 %v651
        %v2700 = vunpack.c.l.b16 %v652
        %v2701 = vunpack.c.l.b16 %v653
        %v2702 = vunpack.c.l.b16 %v654
        %v2703 = vunpack.c.l.b16 %v655
        %v2704 = vunpack.c.l.b16 %v656
        %v2705 = vunpack.c.l.b16 %v657
        %v2706 = vunpack.c.l.b16 %v658
        %v2707 = vunpack.c.l.b16 %v659
        %v2708 = vunpack.c.l.b16 %v660
        %v2709 = vunpack.c.l.b16 %v661
        %v2710 = vunpack.c.l.b16 %v662
        %v2711 = vunpack.c.l.b16 %v663
        %v2712 = vunpack.c.l.b16 %v664
        %v2713 = vunpack.c.l.b16 %v665
        %v2714 = vunpack.c.l.b16 %v666
        %v2715 = vunpack.c.l.b16 %v667
        %v2716 = vunpack.c.l.b16 %v668
        %v2717 = vunpack.c.l.b16 %v669
        %v2718 = vunpack.c.l.b16 %v670
        %v2719 = vunpack.c.l.b16 %v671
        %v2720 = vunpack.c.l.b16 %v672
        %v2721 = vunpack.c.l.b16 %v673
        %v2722 = vunpack.c.l.b16 %v674
        %v2723 = vunpack.c.l.b16 %v675
        %v2724 = vunpack.c.l.b16 %v676
        %v2725 = vunpack.c.l.b16 %v677
        %v2726 = vunpack.c.l.b16 %v678
        %v2727 = vunpack.c.l.b16 %v679
        %v2728 = vunpack.c.l.b16 %v680
        %v2729 = vunpack.c.l.b16 %v681
        %v2730 = vunpack.c.l.b16 %v682
        %v2731 = vunpack.c.l.b16 %v683
        %v2732 = vunpack.c.l.b16 %v684
        %v2733 = vunpack.c.l.b16 %v685
        %v2734 = vunpack.c.l.b16 %v686
        %v2735 = vunpack.c.l.b16 %v687
        %v2736 = vunpack.c.l.b16 %v688
        %v2737 = vunpack.c.l.b16 %v689
        %v2738 = vunpack.c.l.b16 %v690
        %v2739 = vunpack.c.l.b16 %v691
        %v2740 = vunpack.c.l.b16 %v692
        %v2741 = vunpack.c.l.b16 %v693
        %v2742 = vunpack.c.l.b16 %v694
        %v2743 = vunpack.c.l.b16 %v695
        %v2744 = vunpack.c.l.b16 %v696
        %v2745 = vunpack.c.l.b16 %v697
        %v2746 = vunpack.c.l.b16 %v698
        %v2747 = vunpack.c.l.b16 %v699
        %v2748 = vunpack.c.l.b16 %v700
        %v2749 = vunpack.c.l.b16 %v701
        %v2750 = vunpack.c.l.b16 %v702
        %v2751 = vunpack.c.l.b16 %v703
        %v2752 = vunpack.c.l.b16 %v704
        %v2753 = vunpack.c.l.b16 %v705
        %v2754 = vunpack.c.l.b16 %v706
        %v2755 = vunpack.c.l.b16 %v707
        %v2756 = vunpack.c.l.b16 %v708
        %v2757 = vunpack.c.l.b16 %v709
        %v2758 = vunpack.c.l.b16 %v710
        %v2759 = vunpack.c.l.b16 %v711
        %v2760 = vunpack.c.l.b16 %v712
        %v2761 = vunpack.c.l.b16 %v713
        %v2762 = vunpack.c.l.b16 %v714
        %v2763 = vunpack.c.l.b16 %v715
        %v2764 = vunpack.c.l.b16 %v716
        %v2765 = vunpack.c.l.b16 %v717
        %v2766 = vunpack.c.l.b16 %v718
        %v2767 = vunpack.c.l.b16 %v719
        %v2768 = vunpack.c.l.b16 %v720
        %v2769 = vunpack.c.l.b16 %v721
        %v2770 = vunpack.c.l.b16 %v722
        %v2771 = vunpack.c.l.b16 %v723
        %v2772 = vunpack.c.l.b16 %v724
        %v2773 = vunpack.c.l.b16 %v725
        %v2774 = vunpack.c.l.b16 %v726
        %v2775 = vunpack.c.l.b16 %v727
        %v2776 = vunpack.c.l.b16 %v728
        %v2777 = vunpack.c.l.b16 %v729
        %v2778 = vunpack.c.l.b16 %v730
        %v2779 = vunpack.c.l.b16 %v731
        %v2780 = vunpack.c.l.b16 %v732
        %v2781 = vunpack.c.l.b16 %v733
        %v2782 = vunpack.c.l.b16 %v734
        %v2783 = vunpack.c.l.b16 %v735
        %v2784 = vunpack.c.l.b16 %v736
        %v2785 = vunpack.c.l.b16 %v737
        %v2786 = vunpack.c.l.b16 %v738
        %v2787 = vunpack.c.l.b16 %v739
        %v2788 = vunpack.c.l.b16 %v740
        %v2789 = vunpack.c.l.b16 %v741
        %v2790 = vunpack.c.l.b16 %v742
        %v2791 = vunpack.c.l.b16 %v743
        %v2792 = vunpack.c.l.b16 %v744
        %v2793 = vunpack.c.l.b16 %v745
        %v2794 = vunpack.c.l.b16 %v746
        %v2795 = vunpack.c.l.b16 %v747
        %v2796 = vunpack.c.l.b16 %v748
        %v2797 = vunpack.c.l.b16 %v749
        %v2798 = vunpack.c.l.b16 %v750
        %v2799 = vunpack.c.l.b16 %v751
        %v2800 = vunpack.c.l.b16 %v752
        %v2801 = vunpack.c.l.b16 %v753
        %v2802 = vunpack.c.l.b16 %v754
        %v2803 = vunpack.c.l.b16 %v755
        %v2804 = vunpack.c.l.b16 %v756
        %v2805 = vunpack.c.l.b16 %v757
        %v2806 = vunpack.c.l.b16 %v758
        %v2807 = vunpack.c.l.b16 %v759
        %v2808 = vunpack.c.l.b16 %v760
        %v2809 = vunpack.c.l.b16 %v761
        %v2810 = vunpack.c.l.b16 %v762
        %v2811 = vunpack.c.l.b16 %v763
        %v2812 = vunpack.c.l.b16 %v764
        %v2813 = vunpack.c.l.b16 %v765
        %v2814 = vunpack.c.l.b16 %v766
        %v2815 = vunpack.c.l.b16 %v767
        %v2816 = vunpack.c.l.b16 %v768
        %v2817 = vunpack.c.l.b16 %v769
        %v2818 = vunpack.c.l.b16 %v770
        %v2819 = vunpack.c.l.b16 %v771
        %v2820 = vunpack.c.l.b16 %v772
        %v2821 = vunpack.c.l.b16 %v773
        %v2822 = vunpack.c.l.b16 %v774
        %v2823 = vunpack.c.l.b16 %v775
        %v2824 = vunpack.c.l.b16 %v776
        %v2825 = vunpack.c.l.b16 %v777
        %v2826 = vunpack.c.l.b16 %v778
        %v2827 = vunpack.c.l.b16 %v779
        %v2828 = vunpack.c.l.b16 %v780
        %v2829 = vunpack.c.l.b16 %v781
        %v2830 = vunpack.c.l.b16 %v782
        %v2831 = vunpack.c.l.b16 %v783
        %v2832 = vunpack.c.l.b16 %v784
        %v2833 = vunpack.c.l.b16 %v785
        %v2834 = vunpack.c.l.b16 %v786
        %v2835 = vunpack.c.l.b16 %v787
        %v2836 = vunpack.c.l.b16 %v788
        %v2837 = vunpack.c.l.b16 %v789
        %v2838 = vunpack.c.l.b16 %v790
        %v2839 = vunpack.c.l.b16 %v791
        %v2840 = vunpack.c.l.b16 %v792
        %v2841 = vunpack.c.l.b16 %v793
        %v2842 = vunpack.c.l.b16 %v794
        %v2843 = vunpack.c.l.b16 %v795
        %v2844 = vunpack.c.l.b16 %v796
        %v2845 = vunpack.c.l.b16 %v797
        %v2846 = vunpack.c.l.b16 %v798
        %v2847 = vunpack.c.l.b16 %v799
        %v2848 = vunpack.c.l.b16 %v800
        %v2849 = vunpack.c.l.b16 %v801
        %v2850 = vunpack.c.l.b16 %v802
        %v2851 = vunpack.c.l.b16 %v803
        %v2852 = vunpack.c.l.b16 %v804
        %v2853 = vunpack.c.l.b16 %v805
        %v2854 = vunpack.c.l.b16 %v806
        %v2855 = vunpack.c.l.b16 %v807
        %v2856 = vunpack.c.l.b16 %v808
        %v2857 = vunpack.c.l.b16 %v809
        %v2858 = vunpack.c.l.b16 %v810
        %v2859 = vunpack.c.l.b16 %v811
        %v2860 = vunpack.c.l.b16 %v812
        %v2861 = vunpack.c.l.b16 %v813
        %v2862 = vunpack.c.l.b16 %v814
        %v2863 = vunpack.c.l.b16 %v815
        %v2864 = vunpack.c.l.b16 %v816
        %v2865 = vunpack.c.l.b16 %v817
        %v2866 = vunpack.c.l.b16 %v818
        %v2867 = vunpack.c.l.b16 %v819
        %v2868 = vunpack.c.l.b16 %v820
        %v2869 = vunpack.c.l.b16 %v821
        %v2870 = vunpack.c.l.b16 %v822
        %v2871 = vunpack.c.l.b16 %v823
        %v2872 = vunpack.c.l.b16 %v824
        %v2873 = vunpack.c.l.b16 %v825
        %v2874 = vunpack.c.l.b16 %v826
        %v2875 = vunpack.c.l.b16 %v827
        %v2876 = vunpack.c.l.b16 %v828
        %v2877 = vunpack.c.l.b16 %v829
        %v2878 = vunpack.c.l.b16 %v830
        %v2879 = vunpack.c.l.b16 %v831
        %v2880 = vunpack.c.l.b16 %v832
        %v2881 = vunpack.c.l.b16 %v833
        %v2882 = vunpack.c.l.b16 %v834
        %v2883 = vunpack.c.l.b16 %v835
        %v2884 = vunpack.c.l.b16 %v836
        %v2885 = vunpack.c.l.b16 %v837
        %v2886 = vunpack.c.l.b16 %v838
        %v2887 = vunpack.c.l.b16 %v839
        %v2888 = vunpack.c.l.b16 %v840
        %v2889 = vunpack.c.l.b16 %v841
        %v2890 = vunpack.c.l.b16 %v842
        %v2891 = vunpack.c.l.b16 %v843
        %v2892 = vunpack.c.l.b16 %v844
        %v2893 = vunpack.c.l.b16 %v845
        %v2894 = vunpack.c.l.b16 %v846
        %v2895 = vunpack.c.l.b16 %v847
        %v2896 = vunpack.c.l.b16 %v848
        %v2897 = vunpack.c.l.b16 %v849
        %v2898 = vunpack.c.l.b16 %v850
        %v2899 = vunpack.c.l.b16 %v851
        %v2900 = vunpack.c.l.b16 %v852
        %v2901 = vunpack.c.l.b16 %v853
        %v2902 = vunpack.c.l.b16 %v854
        %v2903 = vunpack.c.l.b16 %v855
        %v2904 = vunpack.c.l.b16 %v856
        %v2905 = vunpack.c.l.b16 %v857
        %v2906 = vunpack.c.l.b16 %v858
        %v2907 = vunpack.c.l.b16 %v859
        %v2908 = vunpack.c.l.b16 %v860
        %v2909 = vunpack.c.l.b16 %v861
        %v2910 = vunpack.c.l.b16 %v862
        %v2911 = vunpack.c.l.b16 %v863
        %v2912 = vunpack.c.l.b16 %v864
        %v2913 = vunpack.c.l.b16 %v865
        %v2914 = vunpack.c.l.b16 %v866
        %v2915 = vunpack.c.l.b16 %v867
        %v2916 = vunpack.c.l.b16 %v868
        %v2917 = vunpack.c.l.b16 %v869
        %v2918 = vunpack.c.l.b16 %v870
        %v2919 = vunpack.c.l.b16 %v871
        %v2920 = vunpack.c.l.b16 %v872
        %v2921 = vunpack.c.l.b16 %v873
        %v2922 = vunpack.c.l.b16 %v874
        %v2923 = vunpack.c.l.b16 %v875
        %v2924 = vunpack.c.l.b16 %v876
        %v2925 = vunpack.c.l.b16 %v877
        %v2926 = vunpack.c.l.b16 %v878
        %v2927 = vunpack.c.l.b16 %v879
        %v2928 = vunpack.c.l.b16 %v880
        %v2929 = vunpack.c.l.b16 %v881
        %v2930 = vunpack.c.l.b16 %v882
        %v2931 = vunpack.c.l.b16 %v883
        %v2932 = vunpack.c.l.b16 %v884
        %v2933 = vunpack.c.l.b16 %v885
        %v2934 = vunpack.c.l.b16 %v886
        %v2935 = vunpack.c.l.b16 %v887
        %v2936 = vunpack.c.l.b16 %v888
        %v2937 = vunpack.c.l.b16 %v889
        %v2938 = vunpack.c.l.b16 %v890
        %v2939 = vunpack.c.l.b16 %v891
        %v2940 = vunpack.c.l.b16 %v892
        %v2941 = vunpack.c.l.b16 %v893
        %v2942 = vunpack.c.l.b16 %v894
        %v2943 = vunpack.c.l.b16 %v895
        %v2944 = vunpack.c.l.b16 %v896
        %v2945 = vunpack.c.l.b16 %v897
        %v2946 = vunpack.c.l.b16 %v898
        %v2947 = vunpack.c.l.b16 %v899
        %v2948 = vunpack.c.l.b16 %v900
        %v2949 = vunpack.c.l.b16 %v901
        %v2950 = vunpack.c.l.b16 %v902
        %v2951 = vunpack.c.l.b16 %v903
        %v2952 = vunpack.c.l.b16 %v904
        %v2953 = vunpack.c.l.b16 %v905
        %v2954 = vunpack.c.l.b16 %v906
        %v2955 = vunpack.c.l.b16 %v907
        %v2956 = vunpack.c.l.b16 %v908
        %v2957 = vunpack.c.l.b16 %v909
        %v2958 = vunpack.c.l.b16 %v910
        %v2959 = vunpack.c.l.b16 %v911
        %v2960 = vunpack.c.l.b16 %v912
        %v2961 = vunpack.c.l.b16 %v913
        %v2962 = vunpack.c.l.b16 %v914
        %v2963 = vunpack.c.l.b16 %v915
        %v2964 = vunpack.c.l.b16 %v916
        %v2965 = vunpack.c.l.b16 %v917
        %v2966 = vunpack.c.l.b16 %v918
        %v2967 = vunpack.c.l.b16 %v919
        %v2968 = vunpack.c.l.b16 %v920
        %v2969 = vunpack.c.l.b16 %v921
        %v2970 = vunpack.c.l.b16 %v922
        %v2971 = vunpack.c.l.b16 %v923
        %v2972 = vunpack.c.l.b16 %v924
        %v2973 = vunpack.c.l.b16 %v925
        %v2974 = vunpack.c.l.b16 %v926
        %v2975 = vunpack.c.l.b16 %v927
        %v2976 = vunpack.c.l.b16 %v928
        %v2977 = vunpack.c.l.b16 %v929
        %v2978 = vunpack.c.l.b16 %v930
        %v2979 = vunpack.c.l.b16 %v931
        %v2980 = vunpack.c.l.b16 %v932
        %v2981 = vunpack.c.l.b16 %v933
        %v2982 = vunpack.c.l.b16 %v934
        %v2983 = vunpack.c.l.b16 %v935
        %v2984 = vunpack.c.l.b16 %v936
        %v2985 = vunpack.c.l.b16 %v937
        %v2986 = vunpack.c.l.b16 %v938
        %v2987 = vunpack.c.l.b16 %v939
        %v2988 = vunpack.c.l.b16 %v940
        %v2989 = vunpack.c.l.b16 %v941
        %v2990 = vunpack.c.l.b16 %v942
        %v2991 = vunpack.c.l.b16 %v943
        %v2992 = vunpack.c.l.b16 %v944
        %v2993 = vunpack.c.l.b16 %v945
        %v2994 = vunpack.c.l.b16 %v946
        %v2995 = vunpack.c.l.b16 %v947
        %v2996 = vunpack.c.l.b16 %v948
        %v2997 = vunpack.c.l.b16 %v949
        %v2998 = vunpack.c.l.b16 %v950
        %v2999 = vunpack.c.l.b16 %v951
        %v3000 = vunpack.c.l.b16 %v952
        %v3001 = vunpack.c.l.b16 %v953
        %v3002 = vunpack.c.l.b16 %v954
        %v3003 = vunpack.c.l.b16 %v955
        %v3004 = vunpack.c.l.b16 %v956
        %v3005 = vunpack.c.l.b16 %v957
        %v3006 = vunpack.c.l.b16 %v958
        %v3007 = vunpack.c.l.b16 %v959
        %v3008 = vunpack.c.l.b16 %v960
        %v3009 = vunpack.c.l.b16 %v961
        %v3010 = vunpack.c.l.b16 %v962
        %v3011 = vunpack.c.l.b16 %v963
        %v3012 = vunpack.c.l.b16 %v964
        %v3013 = vunpack.c.l.b16 %v965
        %v3014 = vunpack.c.l.b16 %v966
        %v3015 = vunpack.c.l.b16 %v967
        %v3016 = vunpack.c.l.b16 %v968
        %v3017 = vunpack.c.l.b16 %v969
        %v3018 = vunpack.c.l.b16 %v970
        %v3019 = vunpack.c.l.b16 %v971
        %v3020 = vunpack.c.l.b16 %v972
        %v3021 = vunpack.c.l.b16 %v973
        %v3022 = vunpack.c.l.b16 %v974
        %v3023 = vunpack.c.l.b16 %v975
        %v3024 = vunpack.c.l.b16 %v976
        %v3025 = vunpack.c.l.b16 %v977
        %v3026 = vunpack.c.l.b16 %v978
        %v3027 = vunpack.c.l.b16 %v979
        %v3028 = vunpack.c.l.b16 %v980
        %v3029 = vunpack.c.l.b16 %v981
        %v3030 = vunpack.c.l.b16 %v982
        %v3031 = vunpack.c.l.b16 %v983
        %v3032 = vunpack.c.l.b16 %v984
        %v3033 = vunpack.c.l.b16 %v985
        %v3034 = vunpack.c.l.b16 %v986
        %v3035 = vunpack.c.l.b16 %v987
        %v3036 = vunpack.c.l.b16 %v988
        %v3037 = vunpack.c.l.b16 %v989
        %v3038 = vunpack.c.l.b16 %v990
        %v3039 = vunpack.c.l.b16 %v991
        %v3040 = vunpack.c.l.b16 %v992
        %v3041 = vunpack.c.l.b16 %v993
        %v3042 = vunpack.c.l.b16 %v994
        %v3043 = vunpack.c.l.b16 %v995
        %v3044 = vunpack.c.l.b16 %v996
        %v3045 = vunpack.c.l.b16 %v997
        %v3046 = vunpack.c.l.b16 %v998
        %v3047 = vunpack.c.l.b16 %v999
        %v3048 = vunpack.c.l.b16 %v1000
        %v3049 = vunpack.c.l.b16 %v1001
        %v3050 = vunpack.c.l.b16 %v1002
        %v3051 = vunpack.c.l.b16 %v1003
        %v3052 = vunpack.c.l.b16 %v1004
        %v3053 = vunpack.c.l.b16 %v1005
        %v3054 = vunpack.c.l.b16 %v1006
        %v3055 = vunpack.c.l.b16 %v1007
        %v3056 = vunpack.c.l.b16 %v1008
        %v3057 = vunpack.c.l.b16 %v1009
        %v3058 = vunpack.c.l.b16 %v1010
        %v3059 = vunpack.c.l.b16 %v1011
        %v3060 = vunpack.c.l.b16 %v1012
        %v3061 = vunpack.c.l.b16 %v1013
        %v3062 = vunpack.c.l.b16 %v1014
        %v3063 = vunpack.c.l.b16 %v1015
        %v3064 = vunpack.c.l.b16 %v1016
        %v3065 = vunpack.c.l.b16 %v1017
        %v3066 = vunpack.c.l.b16 %v1018
        %v3067 = vunpack.c.l.b16 %v1019
        %v3068 = vunpack.c.l.b16 %v1020
        %v3069 = vunpack.c.l.b16 %v1021
        %v3070 = vunpack.c.l.b16 %v1022
        %v3071 = vunpack.c.l.b16 %v1023
        %v3072 = vunpack.c.l.b16 %v1024
        %v3073 = vunpack.c.l.b16 %v1025
        %v3074 = vunpack.c.l.b16 %v1026
        %v3075 = vunpack.c.l.b16 %v1027
        %v3076 = vunpack.c.l.b16 %v1028
        %v3077 = vunpack.c.l.b16 %v1029
        %v3078 = vunpack.c.l.b16 %v1030
        %v3079 = vunpack.c.l.b16 %v1031
        %v3080 = vunpack.c.l.b16 %v1032
        %v3081 = vunpack.c.l.b16 %v1033
        %v3082 = vunpack.c.l.b16 %v1034
        %v3083 = vunpack.c.l.b16 %v1035
        %v3084 = vunpack.c.l.b16 %v1036
        %v3085 = vunpack.c.l.b16 %v1037
        %v3086 = vunpack.c.l.b16 %v1038
        %v3087 = vunpack.c.l.b16 %v1039
        %v3088 = vunpack.c.l.b16 %v1040
        %v3089 = vunpack.c.l.b16 %v1041
        %v3090 = vunpack.c.l.b16 %v1042
        %v3091 = vunpack.c.l.b16 %v1043
        %v3092 = vunpack.c.l.b16 %v1044
        %v3093 = vunpack.c.l.b16 %v1045
        %v3094 = vunpack.c.l.b16 %v1046
        %v3095 = vunpack.c.l.b16 %v1047
        %v3096 = vunpack.c.l.b16 %v1048
        %v3097 = vunpack.c.l.b16 %v1049
        %v3098 = vunpack.c.l.b16 %v1050
        %v3099 = vunpack.c.l.b16 %v1051
        %v3100 = vunpack.c.l.b16 %v1052
        %v3101 = vunpack.c.l.b16 %v1053
        %v3102 = vunpack.c.l.b16 %v1054
        %v3103 = vunpack.c.l.b16 %v1055
        %v3104 = vunpack.c.l.b16 %v1056
        %v3105 = vunpack.c.l.b16 %v1057
        %v3106 = vunpack.c.l.b16 %v1058
        %v3107 = vunpack.c.l.b16 %v1059
        %v3108 = vunpack.c.l.b16 %v1060
        %v3109 = vunpack.c.l.b16 %v1061
        %v3110 = vunpack.c.l.b16 %v1062
        %v3111 = vunpack.c.l.b16 %v1063
        %v3112 = vunpack.c.l.b16 %v1064
        %v3113 = vunpack.c.l.b16 %v1065
        %v3114 = vunpack.c.l.b16 %v1066
        %v3115 = vunpack.c.l.b16 %v1067
        %v3116 = vunpack.c.l.b16 %v1068
        %v3117 = vunpack.c.l.b16 %v1069
        %v3118 = vunpack.c.l.b16 %v1070
        %v3119 = vunpack.c.l.b16 %v1071
        %v3120 = vunpack.c.l.b16 %v1072
        %v3121 = vunpack.c.l.b16 %v1073
        %v3122 = vunpack.c.l.b16 %v1074
        %v3123 = vunpack.c.l.b16 %v1075
        %v3124 = vunpack.c.l.b16 %v1076
        %v3125 = vunpack.c.l.b16 %v1077
        %v3126 = vunpack.c.l.b16 %v1078
        %v3127 = vunpack.c.l.b16 %v1079
        %v3128 = vunpack.c.l.b16 %v1080
        %v3129 = vunpack.c.l.b16 %v1081
        %v3130 = vunpack.c.l.b16 %v1082
        %v3131 = vunpack.c.l.b16 %v1083
        %v3132 = vunpack.c.l.b16 %v1084
        %v3133 = vunpack.c.l.b16 %v1085
        %v3134 = vunpack.c.l.b16 %v1086
        %v3135 = vunpack.c.l.b16 %v1087
        %v3136 = vunpack.c.l.b16 %v1088
        %v3137 = vunpack.c.l.b16 %v1089
        %v3138 = vunpack.c.l.b16 %v1090
        %v3139 = vunpack.c.l.b16 %v1091
        %v3140 = vunpack.c.l.b16 %v1092
        %v3141 = vunpack.c.l.b16 %v1093
        %v3142 = vunpack.c.l.b16 %v1094
        %v3143 = vunpack.c.l.b16 %v1095
        %v3144 = vunpack.c.l.b16 %v1096
        %v3145 = vunpack.c.l.b16 %v1097
        %v3146 = vunpack.c.l.b16 %v1098
        %v3147 = vunpack.c.l.b16 %v1099
        %v3148 = vunpack.c.l.b16 %v1100
        %v3149 = vunpack.c.l.b16 %v1101
        %v3150 = vunpack.c.l.b16 %v1102
        %v3151 = vunpack.c.l.b16 %v1103
        %v3152 = vunpack.c.l.b16 %v1104
        %v3153 = vunpack.c.l.b16 %v1105
        %v3154 = vunpack.c.l.b16 %v1106
        %v3155 = vunpack.c.l.b16 %v1107
        %v3156 = vunpack.c.l.b16 %v1108
        %v3157 = vunpack.c.l.b16 %v1109
        %v3158 = vunpack.c.l.b16 %v1110
        %v3159 = vunpack.c.l.b16 %v1111
        %v3160 = vunpack.c.l.b16 %v1112
        %v3161 = vunpack.c.l.b16 %v1113
        %v3162 = vunpack.c.l.b16 %v1114
        %v3163 = vunpack.c.l.b16 %v1115
        %v3164 = vunpack.c.l.b16 %v1116
        %v3165 = vunpack.c.l.b16 %v1117
        %v3166 = vunpack.c.l.b16 %v1118
        %v3167 = vunpack.c.l.b16 %v1119
        %v3168 = vunpack.c.l.b16 %v1120
        %v3169 = vunpack.c.l.b16 %v1121
        %v3170 = vunpack.c.l.b16 %v1122
        %v3171 = vunpack.c.l.b16 %v1123
        %v3172 = vunpack.c.l.b16 %v1124
        %v3173 = vunpack.c.l.b16 %v1125
        %v3174 = vunpack.c.l.b16 %v1126
        %v3175 = vunpack.c.l.b16 %v1127
        %v3176 = vunpack.c.l.b16 %v1128
        %v3177 = vunpack.c.l.b16 %v1129
        %v3178 = vunpack.c.l.b16 %v1130
        %v3179 = vunpack.c.l.b16 %v1131
        %v3180 = vunpack.c.l.b16 %v1132
        %v3181 = vunpack.c.l.b16 %v1133
        %v3182 = vunpack.c.l.b16 %v1134
        %v3183 = vunpack.c.l.b16 %v1135
        %v3184 = vunpack.c.l.b16 %v1136
        %v3185 = vunpack.c.l.b16 %v1137
        %v3186 = vunpack.c.l.b16 %v1138
        %v3187 = vunpack.c.l.b16 %v1139
        %v3188 = vunpack.c.l.b16 %v1140
        %v3189 = vunpack.c.l.b16 %v1141
        %v3190 = vunpack.c.l.b16 %v1142
        %v3191 = vunpack.c.l.b16 %v1143
        %v3192 = vunpack.c.l.b16 %v1144
        %v3193 = vunpack.c.l.b16 %v1145
        %v3194 = vunpack.c.l.b16 %v1146
        %v3195 = vunpack.c.l.b16 %v1147
        %v3196 = vunpack.c.l.b16 %v1148
        %v3197 = vunpack.c.l.b16 %v1149
        %v3198 = vunpack.c.l.b16 %v1150
        %v3199 = vunpack.c.l.b16 %v1151
        %v3200 = vunpack.c.l.b16 %v1152
        %v3201 = vunpack.c.l.b16 %v1153
        %v3202 = vunpack.c.l.b16 %v1154
        %v3203 = vunpack.c.l.b16 %v1155
        %v3204 = vunpack.c.l.b16 %v1156
        %v3205 = vunpack.c.l.b16 %v1157
        %v3206 = vunpack.c.l.b16 %v1158
        %v3207 = vunpack.c.l.b16 %v1159
        %v3208 = vunpack.c.l.b16 %v1160
        %v3209 = vunpack.c.l.b16 %v1161
        %v3210 = vunpack.c.l.b16 %v1162
        %v3211 = vunpack.c.l.b16 %v1163
        %v3212 = vunpack.c.l.b16 %v1164
        %v3213 = vunpack.c.l.b16 %v1165
        %v3214 = vunpack.c.l.b16 %v1166
        %v3215 = vunpack.c.l.b16 %v1167
        %v3216 = vunpack.c.l.b16 %v1168
        %v3217 = vunpack.c.l.b16 %v1169
        %v3218 = vunpack.c.l.b16 %v1170
        %v3219 = vunpack.c.l.b16 %v1171
        %v3220 = vunpack.c.l.b16 %v1172
        %v3221 = vunpack.c.l.b16 %v1173
        %v3222 = vunpack.c.l.b16 %v1174
        %v3223 = vunpack.c.l.b16 %v1175
        %v3224 = vunpack.c.l.b16 %v1176
        %v3225 = vunpack.c.l.b16 %v1177
        %v3226 = vunpack.c.l.b16 %v1178
        %v3227 = vunpack.c.l.b16 %v1179
        %v3228 = vunpack.c.l.b16 %v1180
        %v3229 = vunpack.c.l.b16 %v1181
        %v3230 = vunpack.c.l.b16 %v1182
        %v3231 = vunpack.c.l.b16 %v1183
        %v3232 = vunpack.c.l.b16 %v1184
        %v3233 = vunpack.c.l.b16 %v1185
        %v3234 = vunpack.c.l.b16 %v1186
        %v3235 = vunpack.c.l.b16 %v1187
        %v3236 = vunpack.c.l.b16 %v1188
        %v3237 = vunpack.c.l.b16 %v1189
        %v3238 = vunpack.c.l.b16 %v1190
        %v3239 = vunpack.c.l.b16 %v1191
        %v3240 = vunpack.c.l.b16 %v1192
        %v3241 = vunpack.c.l.b16 %v1193
        %v3242 = vunpack.c.l.b16 %v1194
        %v3243 = vunpack.c.l.b16 %v1195
        %v3244 = vunpack.c.l.b16 %v1196
        %v3245 = vunpack.c.l.b16 %v1197
        %v3246 = vunpack.c.l.b16 %v1198
        %v3247 = vunpack.c.l.b16 %v1199
        %v3248 = vunpack.c.l.b16 %v1200
        %v3249 = vunpack.c.l.b16 %v1201
        %v3250 = vunpack.c.l.b16 %v1202
        %v3251 = vunpack.c.l.b16 %v1203
        %v3252 = vunpack.c.l.b16 %v1204
        %v3253 = vunpack.c.l.b16 %v1205
        %v3254 = vunpack.c.l.b16 %v1206
        %v3255 = vunpack.c.l.b16 %v1207
        %v3256 = vunpack.c.l.b16 %v1208
        %v3257 = vunpack.c.l.b16 %v1209
        %v3258 = vunpack.c.l.b16 %v1210
        %v3259 = vunpack.c.l.b16 %v1211
        %v3260 = vunpack.c.l.b16 %v1212
        %v3261 = vunpack.c.l.b16 %v1213
        %v3262 = vunpack.c.l.b16 %v1214
        %v3263 = vunpack.c.l.b16 %v1215
        %v3264 = vunpack.c.l.b16 %v1216
        %v3265 = vunpack.c.l.b16 %v1217
        %v3266 = vunpack.c.l.b16 %v1218
        %v3267 = vunpack.c.l.b16 %v1219
        %v3268 = vunpack.c.l.b16 %v1220
        %v3269 = vunpack.c.l.b16 %v1221
        %v3270 = vunpack.c.l.b16 %v1222
        %v3271 = vunpack.c.l.b16 %v1223
        %v3272 = vunpack.c.l.b16 %v1224
        %v3273 = vunpack.c.l.b16 %v1225
        %v3274 = vunpack.c.l.b16 %v1226
        %v3275 = vunpack.c.l.b16 %v1227
        %v3276 = vunpack.c.l.b16 %v1228
        %v3277 = vunpack.c.l.b16 %v1229
        %v3278 = vunpack.c.l.b16 %v1230
        %v3279 = vunpack.c.l.b16 %v1231
        %v3280 = vunpack.c.l.b16 %v1232
        %v3281 = vunpack.c.l.b16 %v1233
        %v3282 = vunpack.c.l.b16 %v1234
        %v3283 = vunpack.c.l.b16 %v1235
        %v3284 = vunpack.c.l.b16 %v1236
        %v3285 = vunpack.c.l.b16 %v1237
        %v3286 = vunpack.c.l.b16 %v1238
        %v3287 = vunpack.c.l.b16 %v1239
        %v3288 = vunpack.c.l.b16 %v1240
        %v3289 = vunpack.c.l.b16 %v1241
        %v3290 = vunpack.c.l.b16 %v1242
        %v3291 = vunpack.c.l.b16 %v1243
        %v3292 = vunpack.c.l.b16 %v1244
        %v3293 = vunpack.c.l.b16 %v1245
        %v3294 = vunpack.c.l.b16 %v1246
        %v3295 = vunpack.c.l.b16 %v1247
        %v3296 = vunpack.c.l.b16 %v1248
        %v3297 = vunpack.c.l.b16 %v1249
        %v3298 = vunpack.c.l.b16 %v1250
        %v3299 = vunpack.c.l.b16 %v1251
        %v3300 = vunpack.c.l.b16 %v1252
        %v3301 = vunpack.c.l.b16 %v1253
        %v3302 = vunpack.c.l.b16 %v1254
        %v3303 = vunpack.c.l.b16 %v1255
        %v3304 = vunpack.c.l.b16 %v1256
        %v3305 = vunpack.c.l.b16 %v1257
        %v3306 = vunpack.c.l.b16 %v1258
        %v3307 = vunpack.c.l.b16 %v1259
        %v3308 = vunpack.c.l.b16 %v1260
        %v3309 = vunpack.c.l.b16 %v1261
        %v3310 = vunpack.c.l.b16 %v1262
        %v3311 = vunpack.c.l.b16 %v1263
        %v3312 = vunpack.c.l.b16 %v1264
        %v3313 = vunpack.c.l.b16 %v1265
        %v3314 = vunpack.c.l.b16 %v1266
        %v3315 = vunpack.c.l.b16 %v1267
        %v3316 = vunpack.c.l.b16 %v1268
        %v3317 = vunpack.c.l.b16 %v1269
        %v3318 = vunpack.c.l.b16 %v1270
        %v3319 = vunpack.c.l.b16 %v1271
        %v3320 = vunpack.c.l.b16 %v1272
        %v3321 = vunpack.c.l.b16 %v1273
        %v3322 = vunpack.c.l.b16 %v1274
        %v3323 = vunpack.c.l.b16 %v1275
        %v3324 = vunpack.c.l.b16 %v1276
        %v3325 = vunpack.c.l.b16 %v1277
        %v3326 = vunpack.c.l.b16 %v1278
        %v3327 = vunpack.c.l.b16 %v1279
        %v3328 = vunpack.c.l.b16 %v1280
        %v3329 = vunpack.c.l.b16 %v1281
        %v3330 = vunpack.c.l.b16 %v1282
        %v3331 = vunpack.c.l.b16 %v1283
        %v3332 = vunpack.c.l.b16 %v1284
        %v3333 = vunpack.c.l.b16 %v1285
        %v3334 = vunpack.c.l.b16 %v1286
        %v3335 = vunpack.c.l.b16 %v1287
        %v3336 = vunpack.c.l.b16 %v1288
        %v3337 = vunpack.c.l.b16 %v1289
        %v3338 = vunpack.c.l.b16 %v1290
        %v3339 = vunpack.c.l.b16 %v1291
        %v3340 = vunpack.c.l.b16 %v1292
        %v3341 = vunpack.c.l.b16 %v1293
        %v3342 = vunpack.c.l.b16 %v1294
        %v3343 = vunpack.c.l.b16 %v1295
        %v3344 = vunpack.c.l.b16 %v1296
        %v3345 = vunpack.c.l.b16 %v1297
        %v3346 = vunpack.c.l.b16 %v1298
        %v3347 = vunpack.c.l.b16 %v1299
        %v3348 = vunpack.c.l.b16 %v1300
        %v3349 = vunpack.c.l.b16 %v1301
        %v3350 = vunpack.c.l.b16 %v1302
        %v3351 = vunpack.c.l.b16 %v1303
        %v3352 = vunpack.c.l.b16 %v1304
        %v3353 = vunpack.c.l.b16 %v1305
        %v3354 = vunpack.c.l.b16 %v1306
        %v3355 = vunpack.c.l.b16 %v1307
        %v3356 = vunpack.c.l.b16 %v1308
        %v3357 = vunpack.c.l.b16 %v1309
        %v3358 = vunpack.c.l.b16 %v1310
        %v3359 = vunpack.c.l.b16 %v1311
        %v3360 = vunpack.c.l.b16 %v1312
        %v3361 = vunpack.c.l.b16 %v1313
        %v3362 = vunpack.c.l.b16 %v1314
        %v3363 = vunpack.c.l.b16 %v1315
        %v3364 = vunpack.c.l.b16 %v1316
        %v3365 = vunpack.c.l.b16 %v1317
        %v3366 = vunpack.c.l.b16 %v1318
        %v3367 = vunpack.c.l.b16 %v1319
        %v3368 = vunpack.c.l.b16 %v1320
        %v3369 = vunpack.c.l.b16 %v1321
        %v3370 = vunpack.c.l.b16 %v1322
        %v3371 = vunpack.c.l.b16 %v1323
        %v3372 = vunpack.c.l.b16 %v1324
        %v3373 = vunpack.c.l.b16 %v1325
        %v3374 = vunpack.c.l.b16 %v1326
        %v3375 = vunpack.c.l.b16 %v1327
        %v3376 = vunpack.c.l.b16 %v1328
        %v3377 = vunpack.c.l.b16 %v1329
        %v3378 = vunpack.c.l.b16 %v1330
        %v3379 = vunpack.c.l.b16 %v1331
        %v3380 = vunpack.c.l.b16 %v1332
        %v3381 = vunpack.c.l.b16 %v1333
        %v3382 = vunpack.c.l.b16 %v1334
        %v3383 = vunpack.c.l.b16 %v1335
        %v3384 = vunpack.c.l.b16 %v1336
        %v3385 = vunpack.c.l.b16 %v1337
        %v3386 = vunpack.c.l.b16 %v1338
        %v3387 = vunpack.c.l.b16 %v1339
        %v3388 = vunpack.c.l.b16 %v1340
        %v3389 = vunpack.c.l.b16 %v1341
        %v3390 = vunpack.c.l.b16 %v1342
        %v3391 = vunpack.c.l.b16 %v1343
        %v3392 = vunpack.c.l.b16 %v1344
        %v3393 = vunpack.c.l.b16 %v1345
        %v3394 = vunpack.c.l.b16 %v1346
        %v3395 = vunpack.c.l.b16 %v1347
        %v3396 = vunpack.c.l.b16 %v1348
        %v3397 = vunpack.c.l.b16 %v1349
        %v3398 = vunpack.c.l.b16 %v1350
        %v3399 = vunpack.c.l.b16 %v1351
        %v3400 = vunpack.c.l.b16 %v1352
        %v3401 = vunpack.c.l.b16 %v1353
        %v3402 = vunpack.c.l.b16 %v1354
        %v3403 = vunpack.c.l.b16 %v1355
        %v3404 = vunpack.c.l.b16 %v1356
        %v3405 = vunpack.c.l.b16 %v1357
        %v3406 = vunpack.c.l.b16 %v1358
        %v3407 = vunpack.c.l.b16 %v1359
        %v3408 = vunpack.c.l.b16 %v1360
        %v3409 = vunpack.c.l.b16 %v1361
        %v3410 = vunpack.c.l.b16 %v1362
        %v3411 = vunpack.c.l.b16 %v1363
        %v3412 = vunpack.c.l.b16 %v1364
        %v3413 = vunpack.c.l.b16 %v1365
        %v3414 = vunpack.c.l.b16 %v1366
        %v3415 = vunpack.c.l.b16 %v1367
        %v3416 = vunpack.c.l.b16 %v1368
        %v3417 = vunpack.c.l.b16 %v1369
        %v3418 = vunpack.c.l.b16 %v1370
        %v3419 = vunpack.c.l.b16 %v1371
        %v3420 = vunpack.c.l.b16 %v1372
        %v3421 = vunpack.c.l.b16 %v1373
        %v3422 = vunpack.c.l.b16 %v1374
        %v3423 = vunpack.c.l.b16 %v1375
        %v3424 = vunpack.c.l.b16 %v1376
        %v3425 = vunpack.c.l.b16 %v1377
        %v3426 = vunpack.c.l.b16 %v1378
        %v3427 = vunpack.c.l.b16 %v1379
        %v3428 = vunpack.c.l.b16 %v1380
        %v3429 = vunpack.c.l.b16 %v1381
        %v3430 = vunpack.c.l.b16 %v1382
        %v3431 = vunpack.c.l.b16 %v1383
        %v3432 = vunpack.c.l.b16 %v1384
        %v3433 = vunpack.c.l.b16 %v1385
        %v3434 = vunpack.c.l.b16 %v1386
        %v3435 = vunpack.c.l.b16 %v1387
        %v3436 = vunpack.c.l.b16 %v1388
        %v3437 = vunpack.c.l.b16 %v1389
        %v3438 = vunpack.c.l.b16 %v1390
        %v3439 = vunpack.c.l.b16 %v1391
        %v3440 = vunpack.c.l.b16 %v1392
        %v3441 = vunpack.c.l.b16 %v1393
        %v3442 = vunpack.c.l.b16 %v1394
        %v3443 = vunpack.c.l.b16 %v1395
        %v3444 = vunpack.c.l.b16 %v1396
        %v3445 = vunpack.c.l.b16 %v1397
        %v3446 = vunpack.c.l.b16 %v1398
        %v3447 = vunpack.c.l.b16 %v1399
        %v3448 = vunpack.c.l.b16 %v1400
        %v3449 = vunpack.c.l.b16 %v1401
        %v3450 = vunpack.c.l.b16 %v1402
        %v3451 = vunpack.c.l.b16 %v1403
        %v3452 = vunpack.c.l.b16 %v1404
        %v3453 = vunpack.c.l.b16 %v1405
        %v3454 = vunpack.c.l.b16 %v1406
        %v3455 = vunpack.c.l.b16 %v1407
        %v3456 = vunpack.c.l.b16 %v1408
        %v3457 = vunpack.c.l.b16 %v1409
        %v3458 = vunpack.c.l.b16 %v1410
        %v3459 = vunpack.c.l.b16 %v1411
        %v3460 = vunpack.c.l.b16 %v1412
        %v3461 = vunpack.c.l.b16 %v1413
        %v3462 = vunpack.c.l.b16 %v1414
        %v3463 = vunpack.c.l.b16 %v1415
        %v3464 = vunpack.c.l.b16 %v1416
        %v3465 = vunpack.c.l.b16 %v1417
        %v3466 = vunpack.c.l.b16 %v1418
        %v3467 = vunpack.c.l.b16 %v1419
        %v3468 = vunpack.c.l.b16 %v1420
        %v3469 = vunpack.c.l.b16 %v1421
        %v3470 = vunpack.c.l.b16 %v1422
        %v3471 = vunpack.c.l.b16 %v1423
        %v3472 = vunpack.c.l.b16 %v1424
        %v3473 = vunpack.c.l.b16 %v1425
        %v3474 = vunpack.c.l.b16 %v1426
        %v3475 = vunpack.c.l.b16 %v1427
        %v3476 = vunpack.c.l.b16 %v1428
        %v3477 = vunpack.c.l.b16 %v1429
        %v3478 = vunpack.c.l.b16 %v1430
        %v3479 = vunpack.c.l.b16 %v1431
        %v3480 = vunpack.c.l.b16 %v1432
        %v3481 = vunpack.c.l.b16 %v1433
        %v3482 = vunpack.c.l.b16 %v1434
        %v3483 = vunpack.c.l.b16 %v1435
        %v3484 = vunpack.c.l.b16 %v1436
        %v3485 = vunpack.c.l.b16 %v1437
        %v3486 = vunpack.c.l.b16 %v1438
        %v3487 = vunpack.c.l.b16 %v1439
        %v3488 = vunpack.c.l.b16 %v1440
        %v3489 = vunpack.c.l.b16 %v1441
        %v3490 = vunpack.c.l.b16 %v1442
        %v3491 = vunpack.c.l.b16 %v1443
        %v3492 = vunpack.c.l.b16 %v1444
        %v3493 = vunpack.c.l.b16 %v1445
        %v3494 = vunpack.c.l.b16 %v1446
        %v3495 = vunpack.c.l.b16 %v1447
        %v3496 = vunpack.c.l.b16 %v1448
        %v3497 = vunpack.c.l.b16 %v1449
        %v3498 = vunpack.c.l.b16 %v1450
        %v3499 = vunpack.c.l.b16 %v1451
        %v3500 = vunpack.c.l.b16 %v1452
        %v3501 = vunpack.c.l.b16 %v1453
        %v3502 = vunpack.c.l.b16 %v1454
        %v3503 = vunpack.c.l.b16 %v1455
        %v3504 = vunpack.c.l.b16 %v1456
        %v3505 = vunpack.c.l.b16 %v1457
        %v3506 = vunpack.c.l.b16 %v1458
        %v3507 = vunpack.c.l.b16 %v1459
        %v3508 = vunpack.c.l.b16 %v1460
        %v3509 = vunpack.c.l.b16 %v1461
        %v3510 = vunpack.c.l.b16 %v1462
        %v3511 = vunpack.c.l.b16 %v1463
        %v3512 = vunpack.c.l.b16 %v1464
        %v3513 = vunpack.c.l.b16 %v1465
        %v3514 = vunpack.c.l.b16 %v1466
        %v3515 = vunpack.c.l.b16 %v1467
        %v3516 = vunpack.c.l.b16 %v1468
        %v3517 = vunpack.c.l.b16 %v1469
        %v3518 = vunpack.c.l.b16 %v1470
        %v3519 = vunpack.c.l.b16 %v1471
        %v3520 = vunpack.c.l.b16 %v1472
        %v3521 = vunpack.c.l.b16 %v1473
        %v3522 = vunpack.c.l.b16 %v1474
        %v3523 = vunpack.c.l.b16 %v1475
        %v3524 = vunpack.c.l.b16 %v1476
        %v3525 = vunpack.c.l.b16 %v1477
        %v3526 = vunpack.c.l.b16 %v1478
        %v3527 = vunpack.c.l.b16 %v1479
        %v3528 = vunpack.c.l.b16 %v1480
        %v3529 = vunpack.c.l.b16 %v1481
        %v3530 = vunpack.c.l.b16 %v1482
        %v3531 = vunpack.c.l.b16 %v1483
        %v3532 = vunpack.c.l.b16 %v1484
        %v3533 = vunpack.c.l.b16 %v1485
        %v3534 = vunpack.c.l.b16 %v1486
        %v3535 = vunpack.c.l.b16 %v1487
        %v3536 = vunpack.c.l.b16 %v1488
        %v3537 = vunpack.c.l.b16 %v1489
        %v3538 = vunpack.c.l.b16 %v1490
        %v3539 = vunpack.c.l.b16 %v1491
        %v3540 = vunpack.c.l.b16 %v1492
        %v3541 = vunpack.c.l.b16 %v1493
        %v3542 = vunpack.c.l.b16 %v1494
        %v3543 = vunpack.c.l.b16 %v1495
        %v3544 = vunpack.c.l.b16 %v1496
        %v3545 = vunpack.c.l.b16 %v1497
        %v3546 = vunpack.c.l.b16 %v1498
        %v3547 = vunpack.c.l.b16 %v1499
        %v3548 = vunpack.c.l.b16 %v1500
        %v3549 = vunpack.c.l.b16 %v1501
        %v3550 = vunpack.c.l.b16 %v1502
        %v3551 = vunpack.c.l.b16 %v1503
        %v3552 = vunpack.c.l.b16 %v1504
        %v3553 = vunpack.c.l.b16 %v1505
        %v3554 = vunpack.c.l.b16 %v1506
        %v3555 = vunpack.c.l.b16 %v1507
        %v3556 = vunpack.c.l.b16 %v1508
        %v3557 = vunpack.c.l.b16 %v1509
        %v3558 = vunpack.c.l.b16 %v1510
        %v3559 = vunpack.c.l.b16 %v1511
        %v3560 = vunpack.c.l.b16 %v1512
        %v3561 = vunpack.c.l.b16 %v1513
        %v3562 = vunpack.c.l.b16 %v1514
        %v3563 = vunpack.c.l.b16 %v1515
        %v3564 = vunpack.c.l.b16 %v1516
        %v3565 = vunpack.c.l.b16 %v1517
        %v3566 = vunpack.c.l.b16 %v1518
        %v3567 = vunpack.c.l.b16 %v1519
        %v3568 = vunpack.c.l.b16 %v1520
        %v3569 = vunpack.c.l.b16 %v1521
        %v3570 = vunpack.c.l.b16 %v1522
        %v3571 = vunpack.c.l.b16 %v1523
        %v3572 = vunpack.c.l.b16 %v1524
        %v3573 = vunpack.c.l.b16 %v1525
        %v3574 = vunpack.c.l.b16 %v1526
        %v3575 = vunpack.c.l.b16 %v1527
        %v3576 = vunpack.c.l.b16 %v1528
        %v3577 = vunpack.c.l.b16 %v1529
        %v3578 = vunpack.c.l.b16 %v1530
        %v3579 = vunpack.c.l.b16 %v1531
        %v3580 = vunpack.c.l.b16 %v1532
        %v3581 = vunpack.c.l.b16 %v1533
        %v3582 = vunpack.c.l.b16 %v1534
        %v3583 = vunpack.c.l.b16 %v1535
        %v3584 = vunpack.c.l.b16 %v1536
        %v3585 = vunpack.c.l.b16 %v1537
        %v3586 = vunpack.c.l.b16 %v1538
        %v3587 = vunpack.c.l.b16 %v1539
        %v3588 = vunpack.c.l.b16 %v1540
        %v3589 = vunpack.c.l.b16 %v1541
        %v3590 = vunpack.c.l.b16 %v1542
        %v3591 = vunpack.c.l.b16 %v1543
        %v3592 = vunpack.c.l.b16 %v1544
        %v3593 = vunpack.c.l.b16 %v1545
        %v3594 = vunpack.c.l.b16 %v1546
        %v3595 = vunpack.c.l.b16 %v1547
        %v3596 = vunpack.c.l.b16 %v1548
        %v3597 = vunpack.c.l.b16 %v1549
        %v3598 = vunpack.c.l.b16 %v1550
        %v3599 = vunpack.c.l.b16 %v1551
        %v3600 = vunpack.c.l.b16 %v1552
        %v3601 = vunpack.c.l.b16 %v1553
        %v3602 = vunpack.c.l.b16 %v1554
        %v3603 = vunpack.c.l.b16 %v1555
        %v3604 = vpack.c.b16 %v2581, %v2580
        %v3605 = vpack.c.b16 %v2583, %v2582
        %v3606 = vpack.c.b16 %v2585, %v2584
        %v3607 = vpack.c.b16 %v2587, %v2586
        %v3608 = vpack.c.b16 %v2589, %v2588
        %v3609 = vpack.c.b16 %v2591, %v2590
        %v3610 = vpack.c.b16 %v2593, %v2592
        %v3611 = vpack.c.b16 %v2595, %v2594
        %v3612 = vpack.c.b16 %v2597, %v2596
        %v3613 = vpack.c.b16 %v2599, %v2598
        %v3614 = vpack.c.b16 %v2601, %v2600
        %v3615 = vpack.c.b16 %v2603, %v2602
        %v3616 = vpack.c.b16 %v2605, %v2604
        %v3617 = vpack.c.b16 %v2607, %v2606
        %v3618 = vpack.c.b16 %v2609, %v2608
        %v3619 = vpack.c.b16 %v2611, %v2610
        %v3620 = vpack.c.b16 %v2613, %v2612
        %v3621 = vpack.c.b16 %v2615, %v2614
        %v3622 = vpack.c.b16 %v2617, %v2616
        %v3623 = vpack.c.b16 %v2619, %v2618
        %v3624 = vpack.c.b16 %v2621, %v2620
        %v3625 = vpack.c.b16 %v2623, %v2622
        %v3626 = vpack.c.b16 %v2625, %v2624
        %v3627 = vpack.c.b16 %v2627, %v2626
        %v3628 = vpack.c.b16 %v2629, %v2628
        %v3629 = vpack.c.b16 %v2631, %v2630
        %v3630 = vpack.c.b16 %v2633, %v2632
        %v3631 = vpack.c.b16 %v2635, %v2634
        %v3632 = vpack.c.b16 %v2637, %v2636
        %v3633 = vpack.c.b16 %v2639, %v2638
        %v3634 = vpack.c.b16 %v2641, %v2640
        %v3635 = vpack.c.b16 %v2643, %v2642
        %v3636 = vpack.c.b16 %v2645, %v2644
        %v3637 = vpack.c.b16 %v2647, %v2646
        %v3638 = vpack.c.b16 %v2649, %v2648
        %v3639 = vpack.c.b16 %v2651, %v2650
        %v3640 = vpack.c.b16 %v2653, %v2652
        %v3641 = vpack.c.b16 %v2655, %v2654
        %v3642 = vpack.c.b16 %v2657, %v2656
        %v3643 = vpack.c.b16 %v2659, %v2658
        %v3644 = vpack.c.b16 %v2661, %v2660
        %v3645 = vpack.c.b16 %v2663, %v2662
        %v3646 = vpack.c.b16 %v2665, %v2664
        %v3647 = vpack.c.b16 %v2667, %v2666
        %v3648 = vpack.c.b16 %v2669, %v2668
        %v3649 = vpack.c.b16 %v2671, %v2670
        %v3650 = vpack.c.b16 %v2673, %v2672
        %v3651 = vpack.c.b16 %v2675, %v2674
        %v3652 = vpack.c.b16 %v2677, %v2676
        %v3653 = vpack.c.b16 %v2679, %v2678
        %v3654 = vpack.c.b16 %v2681, %v2680
        %v3655 = vpack.c.b16 %v2683, %v2682
        %v3656 = vpack.c.b16 %v2685, %v2684
        %v3657 = vpack.c.b16 %v2687, %v2686
        %v3658 = vpack.c.b16 %v2689, %v2688
        %v3659 = vpack.c.b16 %v2691, %v2690
        %v3660 = vpack.c.b16 %v2693, %v2692
        %v3661 = vpack.c.b16 %v2695, %v2694
        %v3662 = vpack.c.b16 %v2697, %v2696
        %v3663 = vpack.c.b16 %v2699, %v2698
        %v3664 = vpack.c.b16 %v2701, %v2700
        %v3665 = vpack.c.b16 %v2703, %v2702
        %v3666 = vpack.c.b16 %v2705, %v2704
        %v3667 = vpack.c.b16 %v2707, %v2706
        %v3668 = vpack.c.b16 %v2709, %v2708
        %v3669 = vpack.c.b16 %v2711, %v2710
        %v3670 = vpack.c.b16 %v2713, %v2712
        %v3671 = vpack.c.b16 %v2715, %v2714
        %v3672 = vpack.c.b16 %v2717, %v2716
        %v3673 = vpack.c.b16 %v2719, %v2718
        %v3674 = vpack.c.b16 %v2721, %v2720
        %v3675 = vpack.c.b16 %v2723, %v2722
        %v3676 = vpack.c.b16 %v2725, %v2724
        %v3677 = vpack.c.b16 %v2727, %v2726
        %v3678 = vpack.c.b16 %v2729, %v2728
        %v3679 = vpack.c.b16 %v2731, %v2730
        %v3680 = vpack.c.b16 %v2733, %v2732
        %v3681 = vpack.c.b16 %v2735, %v2734
        %v3682 = vpack.c.b16 %v2737, %v2736
        %v3683 = vpack.c.b16 %v2739, %v2738
        %v3684 = vpack.c.b16 %v2741, %v2740
        %v3685 = vpack.c.b16 %v2743, %v2742
        %v3686 = vpack.c.b16 %v2745, %v2744
        %v3687 = vpack.c.b16 %v2747, %v2746
        %v3688 = vpack.c.b16 %v2749, %v2748
        %v3689 = vpack.c.b16 %v2751, %v2750
        %v3690 = vpack.c.b16 %v2753, %v2752
        %v3691 = vpack.c.b16 %v2755, %v2754
        %v3692 = vpack.c.b16 %v2757, %v2756
        %v3693 = vpack.c.b16 %v2759, %v2758
        %v3694 = vpack.c.b16 %v2761, %v2760
        %v3695 = vpack.c.b16 %v2763, %v2762
        %v3696 = vpack.c.b16 %v2765, %v2764
        %v3697 = vpack.c.b16 %v2767, %v2766
        %v3698 = vpack.c.b16 %v2769, %v2768
        %v3699 = vpack.c.b16 %v2771, %v2770
        %v3700 = vpack.c.b16 %v2773, %v2772
        %v3701 = vpack.c.b16 %v2775, %v2774
        %v3702 = vpack.c.b16 %v2777, %v2776
        %v3703 = vpack.c.b16 %v2779, %v2778
        %v3704 = vpack.c.b16 %v2781, %v2780
        %v3705 = vpack.c.b16 %v2783, %v2782
        %v3706 = vpack.c.b16 %v2785, %v2784
        %v3707 = vpack.c.b16 %v2787, %v2786
        %v3708 = vpack.c.b16 %v2789, %v2788
        %v3709 = vpack.c.b16 %v2791, %v2790
        %v3710 = vpack.c.b16 %v2793, %v2792
        %v3711 = vpack.c.b16 %v2795, %v2794
        %v3712 = vpack.c.b16 %v2797, %v2796
        %v3713 = vpack.c.b16 %v2799, %v2798
        %v3714 = vpack.c.b16 %v2801, %v2800
        %v3715 = vpack.c.b16 %v2803, %v2802
        %v3716 = vpack.c.b16 %v2805, %v2804
        %v3717 = vpack.c.b16 %v2807, %v2806
        %v3718 = vpack.c.b16 %v2809, %v2808
        %v3719 = vpack.c.b16 %v2811, %v2810
        %v3720 = vpack.c.b16 %v2813, %v2812
        %v3721 = vpack.c.b16 %v2815, %v2814
        %v3722 = vpack.c.b16 %v2817, %v2816
        %v3723 = vpack.c.b16 %v2819, %v2818
        %v3724 = vpack.c.b16 %v2821, %v2820
        %v3725 = vpack.c.b16 %v2823, %v2822
        %v3726 = vpack.c.b16 %v2825, %v2824
        %v3727 = vpack.c.b16 %v2827, %v2826
        %v3728 = vpack.c.b16 %v2829, %v2828
        %v3729 = vpack.c.b16 %v2831, %v2830
        %v3730 = vpack.c.b16 %v2833, %v2832
        %v3731 = vpack.c.b16 %v2835, %v2834
        %v3732 = vpack.c.b16 %v2837, %v2836
        %v3733 = vpack.c.b16 %v2839, %v2838
        %v3734 = vpack.c.b16 %v2841, %v2840
        %v3735 = vpack.c.b16 %v2843, %v2842
        %v3736 = vpack.c.b16 %v2845, %v2844
        %v3737 = vpack.c.b16 %v2847, %v2846
        %v3738 = vpack.c.b16 %v2849, %v2848
        %v3739 = vpack.c.b16 %v2851, %v2850
        %v3740 = vpack.c.b16 %v2853, %v2852
        %v3741 = vpack.c.b16 %v2855, %v2854
        %v3742 = vpack.c.b16 %v2857, %v2856
        %v3743 = vpack.c.b16 %v2859, %v2858
        %v3744 = vpack.c.b16 %v2861, %v2860
        %v3745 = vpack.c.b16 %v2863, %v2862
        %v3746 = vpack.c.b16 %v2865, %v2864
        %v3747 = vpack.c.b16 %v2867, %v2866
        %v3748 = vpack.c.b16 %v2869, %v2868
        %v3749 = vpack.c.b16 %v2871, %v2870
        %v3750 = vpack.c.b16 %v2873, %v2872
        %v3751 = vpack.c.b16 %v2875, %v2874
        %v3752 = vpack.c.b16 %v2877, %v2876
        %v3753 = vpack.c.b16 %v2879, %v2878
        %v3754 = vpack.c.b16 %v2881, %v2880
        %v3755 = vpack.c.b16 %v2883, %v2882
        %v3756 = vpack.c.b16 %v2885, %v2884
        %v3757 = vpack.c.b16 %v2887, %v2886
        %v3758 = vpack.c.b16 %v2889, %v2888
        %v3759 = vpack.c.b16 %v2891, %v2890
        %v3760 = vpack.c.b16 %v2893, %v2892
        %v3761 = vpack.c.b16 %v2895, %v2894
        %v3762 = vpack.c.b16 %v2897, %v2896
        %v3763 = vpack.c.b16 %v2899, %v2898
        %v3764 = vpack.c.b16 %v2901, %v2900
        %v3765 = vpack.c.b16 %v2903, %v2902
        %v3766 = vpack.c.b16 %v2905, %v2904
        %v3767 = vpack.c.b16 %v2907, %v2906
        %v3768 = vpack.c.b16 %v2909, %v2908
        %v3769 = vpack.c.b16 %v2911, %v2910
        %v3770 = vpack.c.b16 %v2913, %v2912
        %v3771 = vpack.c.b16 %v2915, %v2914
        %v3772 = vpack.c.b16 %v2917, %v2916
        %v3773 = vpack.c.b16 %v2919, %v2918
        %v3774 = vpack.c.b16 %v2921, %v2920
        %v3775 = vpack.c.b16 %v2923, %v2922
        %v3776 = vpack.c.b16 %v2925, %v2924
        %v3777 = vpack.c.b16 %v2927, %v2926
        %v3778 = vpack.c.b16 %v2929, %v2928
        %v3779 = vpack.c.b16 %v2931, %v2930
        %v3780 = vpack.c.b16 %v2933, %v2932
        %v3781 = vpack.c.b16 %v2935, %v2934
        %v3782 = vpack.c.b16 %v2937, %v2936
        %v3783 = vpack.c.b16 %v2939, %v2938
        %v3784 = vpack.c.b16 %v2941, %v2940
        %v3785 = vpack.c.b16 %v2943, %v2942
        %v3786 = vpack.c.b16 %v2945, %v2944
        %v3787 = vpack.c.b16 %v2947, %v2946
        %v3788 = vpack.c.b16 %v2949, %v2948
        %v3789 = vpack.c.b16 %v2951, %v2950
        %v3790 = vpack.c.b16 %v2953, %v2952
        %v3791 = vpack.c.b16 %v2955, %v2954
        %v3792 = vpack.c.b16 %v2957, %v2956
        %v3793 = vpack.c.b16 %v2959, %v2958
        %v3794 = vpack.c.b16 %v2961, %v2960
        %v3795 = vpack.c.b16 %v2963, %v2962
        %v3796 = vpack.c.b16 %v2965, %v2964
        %v3797 = vpack.c.b16 %v2967, %v2966
        %v3798 = vpack.c.b16 %v2969, %v2968
        %v3799 = vpack.c.b16 %v2971, %v2970
        %v3800 = vpack.c.b16 %v2973, %v2972
        %v3801 = vpack.c.b16 %v2975, %v2974
        %v3802 = vpack.c.b16 %v2977, %v2976
        %v3803 = vpack.c.b16 %v2979, %v2978
        %v3804 = vpack.c.b16 %v2981, %v2980
        %v3805 = vpack.c.b16 %v2983, %v2982
        %v3806 = vpack.c.b16 %v2985, %v2984
        %v3807 = vpack.c.b16 %v2987, %v2986
        %v3808 = vpack.c.b16 %v2989, %v2988
        %v3809 = vpack.c.b16 %v2991, %v2990
        %v3810 = vpack.c.b16 %v2993, %v2992
        %v3811 = vpack.c.b16 %v2995, %v2994
        %v3812 = vpack.c.b16 %v2997, %v2996
        %v3813 = vpack.c.b16 %v2999, %v2998
        %v3814 = vpack.c.b16 %v3001, %v3000
        %v3815 = vpack.c.b16 %v3003, %v3002
        %v3816 = vpack.c.b16 %v3005, %v3004
        %v3817 = vpack.c.b16 %v3007, %v3006
        %v3818 = vpack.c.b16 %v3009, %v3008
        %v3819 = vpack.c.b16 %v3011, %v3010
        %v3820 = vpack.c.b16 %v3013, %v3012
        %v3821 = vpack.c.b16 %v3015, %v3014
        %v3822 = vpack.c.b16 %v3017, %v3016
        %v3823 = vpack.c.b16 %v3019, %v3018
        %v3824 = vpack.c.b16 %v3021, %v3020
        %v3825 = vpack.c.b16 %v3023, %v3022
        %v3826 = vpack.c.b16 %v3025, %v3024
        %v3827 = vpack.c.b16 %v3027, %v3026
        %v3828 = vpack.c.b16 %v3029, %v3028
        %v3829 = vpack.c.b16 %v3031, %v3030
        %v3830 = vpack.c.b16 %v3033, %v3032
        %v3831 = vpack.c.b16 %v3035, %v3034
        %v3832 = vpack.c.b16 %v3037, %v3036
        %v3833 = vpack.c.b16 %v3039, %v3038
        %v3834 = vpack.c.b16 %v3041, %v3040
        %v3835 = vpack.c.b16 %v3043, %v3042
        %v3836 = vpack.c.b16 %v3045, %v3044
        %v3837 = vpack.c.b16 %v3047, %v3046
        %v3838 = vpack.c.b16 %v3049, %v3048
        %v3839 = vpack.c.b16 %v3051, %v3050
        %v3840 = vpack.c.b16 %v3053, %v3052
        %v3841 = vpack.c.b16 %v3055, %v3054
        %v3842 = vpack.c.b16 %v3057, %v3056
        %v3843 = vpack.c.b16 %v3059, %v3058
        %v3844 = vpack.c.b16 %v3061, %v3060
        %v3845 = vpack.c.b16 %v3063, %v3062
        %v3846 = vpack.c.b16 %v3065, %v3064
        %v3847 = vpack.c.b16 %v3067, %v3066
        %v3848 = vpack.c.b16 %v3069, %v3068
        %v3849 = vpack.c.b16 %v3071, %v3070
        %v3850 = vpack.c.b16 %v3073, %v3072
        %v3851 = vpack.c.b16 %v3075, %v3074
        %v3852 = vpack.c.b16 %v3077, %v3076
        %v3853 = vpack.c.b16 %v3079, %v3078
        %v3854 = vpack.c.b16 %v3081, %v3080
        %v3855 = vpack.c.b16 %v3083, %v3082
        %v3856 = vpack.c.b16 %v3085, %v3084
        %v3857 = vpack.c.b16 %v3087, %v3086
        %v3858 = vpack.c.b16 %v3089, %v3088
        %v3859 = vpack.c.b16 %v3091, %v3090
        %v3860 = vpack.c.b16 %v3093, %v3092
        %v3861 = vpack.c.b16 %v3095, %v3094
        %v3862 = vpack.c.b16 %v3097, %v3096
        %v3863 = vpack.c.b16 %v3099, %v3098
        %v3864 = vpack.c.b16 %v3101, %v3100
        %v3865 = vpack.c.b16 %v3103, %v3102
        %v3866 = vpack.c.b16 %v3105, %v3104
        %v3867 = vpack.c.b16 %v3107, %v3106
        %v3868 = vpack.c.b16 %v3109, %v3108
        %v3869 = vpack.c.b16 %v3111, %v3110
        %v3870 = vpack.c.b16 %v3113, %v3112
        %v3871 = vpack.c.b16 %v3115, %v3114
        %v3872 = vpack.c.b16 %v3117, %v3116
        %v3873 = vpack.c.b16 %v3119, %v3118
        %v3874 = vpack.c.b16 %v3121, %v3120
        %v3875 = vpack.c.b16 %v3123, %v3122
        %v3876 = vpack.c.b16 %v3125, %v3124
        %v3877 = vpack.c.b16 %v3127, %v3126
        %v3878 = vpack.c.b16 %v3129, %v3128
        %v3879 = vpack.c.b16 %v3131, %v3130
        %v3880 = vpack.c.b16 %v3133, %v3132
        %v3881 = vpack.c.b16 %v3135, %v3134
        %v3882 = vpack.c.b16 %v3137, %v3136
        %v3883 = vpack.c.b16 %v3139, %v3138
        %v3884 = vpack.c.b16 %v3141, %v3140
        %v3885 = vpack.c.b16 %v3143, %v3142
        %v3886 = vpack.c.b16 %v3145, %v3144
        %v3887 = vpack.c.b16 %v3147, %v3146
        %v3888 = vpack.c.b16 %v3149, %v3148
        %v3889 = vpack.c.b16 %v3151, %v3150
        %v3890 = vpack.c.b16 %v3153, %v3152
        %v3891 = vpack.c.b16 %v3155, %v3154
        %v3892 = vpack.c.b16 %v3157, %v3156
        %v3893 = vpack.c.b16 %v3159, %v3158
        %v3894 = vpack.c.b16 %v3161, %v3160
        %v3895 = vpack.c.b16 %v3163, %v3162
        %v3896 = vpack.c.b16 %v3165, %v3164
        %v3897 = vpack.c.b16 %v3167, %v3166
        %v3898 = vpack.c.b16 %v3169, %v3168
        %v3899 = vpack.c.b16 %v3171, %v3170
        %v3900 = vpack.c.b16 %v3173, %v3172
        %v3901 = vpack.c.b16 %v3175, %v3174
        %v3902 = vpack.c.b16 %v3177, %v3176
        %v3903 = vpack.c.b16 %v3179, %v3178
        %v3904 = vpack.c.b16 %v3181, %v3180
        %v3905 = vpack.c.b16 %v3183, %v3182
        %v3906 = vpack.c.b16 %v3185, %v3184
        %v3907 = vpack.c.b16 %v3187, %v3186
        %v3908 = vpack.c.b16 %v3189, %v3188
        %v3909 = vpack.c.b16 %v3191, %v3190
        %v3910 = vpack.c.b16 %v3193, %v3192
        %v3911 = vpack.c.b16 %v3195, %v3194
        %v3912 = vpack.c.b16 %v3197, %v3196
        %v3913 = vpack.c.b16 %v3199, %v3198
        %v3914 = vpack.c.b16 %v3201, %v3200
        %v3915 = vpack.c.b16 %v3203, %v3202
        %v3916 = vpack.c.b16 %v3205, %v3204
        %v3917 = vpack.c.b16 %v3207, %v3206
        %v3918 = vpack.c.b16 %v3209, %v3208
        %v3919 = vpack.c.b16 %v3211, %v3210
        %v3920 = vpack.c.b16 %v3213, %v3212
        %v3921 = vpack.c.b16 %v3215, %v3214
        %v3922 = vpack.c.b16 %v3217, %v3216
        %v3923 = vpack.c.b16 %v3219, %v3218
        %v3924 = vpack.c.b16 %v3221, %v3220
        %v3925 = vpack.c.b16 %v3223, %v3222
        %v3926 = vpack.c.b16 %v3225, %v3224
        %v3927 = vpack.c.b16 %v3227, %v3226
        %v3928 = vpack.c.b16 %v3229, %v3228
        %v3929 = vpack.c.b16 %v3231, %v3230
        %v3930 = vpack.c.b16 %v3233, %v3232
        %v3931 = vpack.c.b16 %v3235, %v3234
        %v3932 = vpack.c.b16 %v3237, %v3236
        %v3933 = vpack.c.b16 %v3239, %v3238
        %v3934 = vpack.c.b16 %v3241, %v3240
        %v3935 = vpack.c.b16 %v3243, %v3242
        %v3936 = vpack.c.b16 %v3245, %v3244
        %v3937 = vpack.c.b16 %v3247, %v3246
        %v3938 = vpack.c.b16 %v3249, %v3248
        %v3939 = vpack.c.b16 %v3251, %v3250
        %v3940 = vpack.c.b16 %v3253, %v3252
        %v3941 = vpack.c.b16 %v3255, %v3254
        %v3942 = vpack.c.b16 %v3257, %v3256
        %v3943 = vpack.c.b16 %v3259, %v3258
        %v3944 = vpack.c.b16 %v3261, %v3260
        %v3945 = vpack.c.b16 %v3263, %v3262
        %v3946 = vpack.c.b16 %v3265, %v3264
        %v3947 = vpack.c.b16 %v3267, %v3266
        %v3948 = vpack.c.b16 %v3269, %v3268
        %v3949 = vpack.c.b16 %v3271, %v3270
        %v3950 = vpack.c.b16 %v3273, %v3272
        %v3951 = vpack.c.b16 %v3275, %v3274
        %v3952 = vpack.c.b16 %v3277, %v3276
        %v3953 = vpack.c.b16 %v3279, %v3278
        %v3954 = vpack.c.b16 %v3281, %v3280
        %v3955 = vpack.c.b16 %v3283, %v3282
        %v3956 = vpack.c.b16 %v3285, %v3284
        %v3957 = vpack.c.b16 %v3287, %v3286
        %v3958 = vpack.c.b16 %v3289, %v3288
        %v3959 = vpack.c.b16 %v3291, %v3290
        %v3960 = vpack.c.b16 %v3293, %v3292
        %v3961 = vpack.c.b16 %v3295, %v3294
        %v3962 = vpack.c.b16 %v3297, %v3296
        %v3963 = vpack.c.b16 %v3299, %v3298
        %v3964 = vpack.c.b16 %v3301, %v3300
        %v3965 = vpack.c.b16 %v3303, %v3302
        %v3966 = vpack.c.b16 %v3305, %v3304
        %v3967 = vpack.c.b16 %v3307, %v3306
        %v3968 = vpack.c.b16 %v3309, %v3308
        %v3969 = vpack.c.b16 %v3311, %v3310
        %v3970 = vpack.c.b16 %v3313, %v3312
        %v3971 = vpack.c.b16 %v3315, %v3314
        %v3972 = vpack.c.b16 %v3317, %v3316
        %v3973 = vpack.c.b16 %v3319, %v3318
        %v3974 = vpack.c.b16 %v3321, %v3320
        %v3975 = vpack.c.b16 %v3323, %v3322
        %v3976 = vpack.c.b16 %v3325, %v3324
        %v3977 = vpack.c.b16 %v3327, %v3326
        %v3978 = vpack.c.b16 %v3329, %v3328
        %v3979 = vpack.c.b16 %v3331, %v3330
        %v3980 = vpack.c.b16 %v3333, %v3332
        %v3981 = vpack.c.b16 %v3335, %v3334
        %v3982 = vpack.c.b16 %v3337, %v3336
        %v3983 = vpack.c.b16 %v3339, %v3338
        %v3984 = vpack.c.b16 %v3341, %v3340
        %v3985 = vpack.c.b16 %v3343, %v3342
        %v3986 = vpack.c.b16 %v3345, %v3344
        %v3987 = vpack.c.b16 %v3347, %v3346
        %v3988 = vpack.c.b16 %v3349, %v3348
        %v3989 = vpack.c.b16 %v3351, %v3350
        %v3990 = vpack.c.b16 %v3353, %v3352
        %v3991 = vpack.c.b16 %v3355, %v3354
        %v3992 = vpack.c.b16 %v3357, %v3356
        %v3993 = vpack.c.b16 %v3359, %v3358
        %v3994 = vpack.c.b16 %v3361, %v3360
        %v3995 = vpack.c.b16 %v3363, %v3362
        %v3996 = vpack.c.b16 %v3365, %v3364
        %v3997 = vpack.c.b16 %v3367, %v3366
        %v3998 = vpack.c.b16 %v3369, %v3368
        %v3999 = vpack.c.b16 %v3371, %v3370
        %v4000 = vpack.c.b16 %v3373, %v3372
        %v4001 = vpack.c.b16 %v3375, %v3374
        %v4002 = vpack.c.b16 %v3377, %v3376
        %v4003 = vpack.c.b16 %v3379, %v3378
        %v4004 = vpack.c.b16 %v3381, %v3380
        %v4005 = vpack.c.b16 %v3383, %v3382
        %v4006 = vpack.c.b16 %v3385, %v3384
        %v4007 = vpack.c.b16 %v3387, %v3386
        %v4008 = vpack.c.b16 %v3389, %v3388
        %v4009 = vpack.c.b16 %v3391, %v3390
        %v4010 = vpack.c.b16 %v3393, %v3392
        %v4011 = vpack.c.b16 %v3395, %v3394
        %v4012 = vpack.c.b16 %v3397, %v3396
        %v4013 = vpack.c.b16 %v3399, %v3398
        %v4014 = vpack.c.b16 %v3401, %v3400
        %v4015 = vpack.c.b16 %v3403, %v3402
        %v4016 = vpack.c.b16 %v3405, %v3404
        %v4017 = vpack.c.b16 %v3407, %v3406
        %v4018 = vpack.c.b16 %v3409, %v3408
        %v4019 = vpack.c.b16 %v3411, %v3410
        %v4020 = vpack.c.b16 %v3413, %v3412
        %v4021 = vpack.c.b16 %v3415, %v3414
        %v4022 = vpack.c.b16 %v3417, %v3416
        %v4023 = vpack.c.b16 %v3419, %v3418
        %v4024 = vpack.c.b16 %v3421, %v3420
        %v4025 = vpack.c.b16 %v3423, %v3422
        %v4026 = vpack.c.b16 %v3425, %v3424
        %v4027 = vpack.c.b16 %v3427, %v3426
        %v4028 = vpack.c.b16 %v3429, %v3428
        %v4029 = vpack.c.b16 %v3431, %v3430
        %v4030 = vpack.c.b16 %v3433, %v3432
        %v4031 = vpack.c.b16 %v3435, %v3434
        %v4032 = vpack.c.b16 %v3437, %v3436
        %v4033 = vpack.c.b16 %v3439, %v3438
        %v4034 = vpack.c.b16 %v3441, %v3440
        %v4035 = vpack.c.b16 %v3443, %v3442
        %v4036 = vpack.c.b16 %v3445, %v3444
        %v4037 = vpack.c.b16 %v3447, %v3446
        %v4038 = vpack.c.b16 %v3449, %v3448
        %v4039 = vpack.c.b16 %v3451, %v3450
        %v4040 = vpack.c.b16 %v3453, %v3452
        %v4041 = vpack.c.b16 %v3455, %v3454
        %v4042 = vpack.c.b16 %v3457, %v3456
        %v4043 = vpack.c.b16 %v3459, %v3458
        %v4044 = vpack.c.b16 %v3461, %v3460
        %v4045 = vpack.c.b16 %v3463, %v3462
        %v4046 = vpack.c.b16 %v3465, %v3464
        %v4047 = vpack.c.b16 %v3467, %v3466
        %v4048 = vpack.c.b16 %v3469, %v3468
        %v4049 = vpack.c.b16 %v3471, %v3470
        %v4050 = vpack.c.b16 %v3473, %v3472
        %v4051 = vpack.c.b16 %v3475, %v3474
        %v4052 = vpack.c.b16 %v3477, %v3476
        %v4053 = vpack.c.b16 %v3479, %v3478
        %v4054 = vpack.c.b16 %v3481, %v3480
        %v4055 = vpack.c.b16 %v3483, %v3482
        %v4056 = vpack.c.b16 %v3485, %v3484
        %v4057 = vpack.c.b16 %v3487, %v3486
        %v4058 = vpack.c.b16 %v3489, %v3488
        %v4059 = vpack.c.b16 %v3491, %v3490
        %v4060 = vpack.c.b16 %v3493, %v3492
        %v4061 = vpack.c.b16 %v3495, %v3494
        %v4062 = vpack.c.b16 %v3497, %v3496
        %v4063 = vpack.c.b16 %v3499, %v3498
        %v4064 = vpack.c.b16 %v3501, %v3500
        %v4065 = vpack.c.b16 %v3503, %v3502
        %v4066 = vpack.c.b16 %v3505, %v3504
        %v4067 = vpack.c.b16 %v3507, %v3506
        %v4068 = vpack.c.b16 %v3509, %v3508
        %v4069 = vpack.c.b16 %v3511, %v3510
        %v4070 = vpack.c.b16 %v3513, %v3512
        %v4071 = vpack.c.b16 %v3515, %v3514
        %v4072 = vpack.c.b16 %v3517, %v3516
        %v4073 = vpack.c.b16 %v3519, %v3518
        %v4074 = vpack.c.b16 %v3521, %v3520
        %v4075 = vpack.c.b16 %v3523, %v3522
        %v4076 = vpack.c.b16 %v3525, %v3524
        %v4077 = vpack.c.b16 %v3527, %v3526
        %v4078 = vpack.c.b16 %v3529, %v3528
        %v4079 = vpack.c.b16 %v3531, %v3530
        %v4080 = vpack.c.b16 %v3533, %v3532
        %v4081 = vpack.c.b16 %v3535, %v3534
        %v4082 = vpack.c.b16 %v3537, %v3536
        %v4083 = vpack.c.b16 %v3539, %v3538
        %v4084 = vpack.c.b16 %v3541, %v3540
        %v4085 = vpack.c.b16 %v3543, %v3542
        %v4086 = vpack.c.b16 %v3545, %v3544
        %v4087 = vpack.c.b16 %v3547, %v3546
        %v4088 = vpack.c.b16 %v3549, %v3548
        %v4089 = vpack.c.b16 %v3551, %v3550
        %v4090 = vpack.c.b16 %v3553, %v3552
        %v4091 = vpack.c.b16 %v3555, %v3554
        %v4092 = vpack.c.b16 %v3557, %v3556
        %v4093 = vpack.c.b16 %v3559, %v3558
        %v4094 = vpack.c.b16 %v3561, %v3560
        %v4095 = vpack.c.b16 %v3563, %v3562
        %v4096 = vpack.c.b16 %v3565, %v3564
        %v4097 = vpack.c.b16 %v3567, %v3566
        %v4098 = vpack.c.b16 %v3569, %v3568
        %v4099 = vpack.c.b16 %v3571, %v3570
        %v4100 = vpack.c.b16 %v3573, %v3572
        %v4101 = vpack.c.b16 %v3575, %v3574
        %v4102 = vpack.c.b16 %v3577, %v3576
        %v4103 = vpack.c.b16 %v3579, %v3578
        %v4104 = vpack.c.b16 %v3581, %v3580
        %v4105 = vpack.c.b16 %v3583, %v3582
        %v4106 = vpack.c.b16 %v3585, %v3584
        %v4107 = vpack.c.b16 %v3587, %v3586
        %v4108 = vpack.c.b16 %v3589, %v3588
        %v4109 = vpack.c.b16 %v3591, %v3590
        %v4110 = vpack.c.b16 %v3593, %v3592
        %v4111 = vpack.c.b16 %v3595, %v3594
        %v4112 = vpack.c.b16 %v3597, %v3596
        %v4113 = vpack.c.b16 %v3599, %v3598
        %v4114 = vpack.c.b16 %v3601, %v3600
        %v4115 = vpack.c.b16 %v3603, %v3602
        %4628 = vmatpush.bf16.msra.mxu0 %v3611
        %4629 = vmatpush.bf16.msra.mxu0 %v3610
        %4630 = vmatpush.bf16.msra.mxu0 %v3609
        %4631 = vmatpush.bf16.msra.mxu0 %v3608
        %4632 = vmatpush.bf16.msra.mxu0 %v3607
        %4633 = vmatpush.bf16.msra.mxu0 %v3606
        %4634 = vmatpush.bf16.msra.mxu0 %v3605
        %4635 = vmatpush.bf16.msra.mxu0 %v3604
        %4636 = vmatmul.bf16.gmra.mxu0 %v468
        %v4637 = vpop.f32.mrf.mxu0
        %v4638 = vadd.f32 0.0, %v4637
        %v4639 = vpop.f32.mrf.mxu0
        %4640 = vdwg.mxu0
        %4641 = vmatpush.bf16.msra.mxu0 %v3619
        %4642 = vmatpush.bf16.msra.mxu0 %v3618
        %4643 = vmatpush.bf16.msra.mxu0 %v3617
        %4644 = vmatpush.bf16.msra.mxu0 %v3616
        %4645 = vmatpush.bf16.msra.mxu0 %v3615
        %4646 = vmatpush.bf16.msra.mxu0 %v3614
        %4647 = vmatpush.bf16.msra.mxu0 %v3613
        %4648 = vmatpush.bf16.msra.mxu0 %v3612
        %4649 = vmatmul.bf16.gmra.mxu0 %v469
        %v4650 = vpop.f32.mrf.mxu0
        %v4651 = vadd.f32 %v4638, %v4650
        %v4652 = vpop.f32.mrf.mxu0
        %4653 = vdwg.mxu0
        %4654 = vmatpush.bf16.msra.mxu0 %v3627
        %4655 = vmatpush.bf16.msra.mxu0 %v3626
        %4656 = vmatpush.bf16.msra.mxu0 %v3625
        %4657 = vmatpush.bf16.msra.mxu0 %v3624
        %4658 = vmatpush.bf16.msra.mxu0 %v3623
        %4659 = vmatpush.bf16.msra.mxu0 %v3622
        %4660 = vmatpush.bf16.msra.mxu0 %v3621
        %4661 = vmatpush.bf16.msra.mxu0 %v3620
        %4662 = vmatmul.bf16.gmra.mxu0 %v470
        %v4663 = vpop.f32.mrf.mxu0
        %v4664 = vadd.f32 %v4651, %v4663
        %v4665 = vpop.f32.mrf.mxu0
        %4666 = vdwg.mxu0
        %4667 = vmatpush.bf16.msra.mxu0 %v3635
        %4668 = vmatpush.bf16.msra.mxu0 %v3634
        %4669 = vmatpush.bf16.msra.mxu0 %v3633
        %4670 = vmatpush.bf16.msra.mxu0 %v3632
        %4671 = vmatpush.bf16.msra.mxu0 %v3631
        %4672 = vmatpush.bf16.msra.mxu0 %v3630
        %4673 = vmatpush.bf16.msra.mxu0 %v3629
        %4674 = vmatpush.bf16.msra.mxu0 %v3628
        %4675 = vmatmul.bf16.gmra.mxu0 %v471
        %v4676 = vpop.f32.mrf.mxu0
        %v4677 = vadd.f32 %v4664, %v4676
        %v4678 = vpop.f32.mrf.mxu0
        %4679 = vdwg.mxu0
        %4680 = vmatpush.bf16.msra.mxu0 %v3643
        %4681 = vmatpush.bf16.msra.mxu0 %v3642
        %4682 = vmatpush.bf16.msra.mxu0 %v3641
        %4683 = vmatpush.bf16.msra.mxu0 %v3640
        %4684 = vmatpush.bf16.msra.mxu0 %v3639
        %4685 = vmatpush.bf16.msra.mxu0 %v3638
        %4686 = vmatpush.bf16.msra.mxu0 %v3637
        %4687 = vmatpush.bf16.msra.mxu0 %v3636
        %4688 = vmatmul.bf16.gmra.mxu0 %v472
        %v4689 = vpop.f32.mrf.mxu0
        %v4690 = vadd.f32 %v4677, %v4689
        %v4691 = vpop.f32.mrf.mxu0
        %4692 = vdwg.mxu0
        %4693 = vmatpush.bf16.msra.mxu0 %v3651
        %4694 = vmatpush.bf16.msra.mxu0 %v3650
        %4695 = vmatpush.bf16.msra.mxu0 %v3649
        %4696 = vmatpush.bf16.msra.mxu0 %v3648
        %4697 = vmatpush.bf16.msra.mxu0 %v3647
        %4698 = vmatpush.bf16.msra.mxu0 %v3646
        %4699 = vmatpush.bf16.msra.mxu0 %v3645
        %4700 = vmatpush.bf16.msra.mxu0 %v3644
        %4701 = vmatmul.bf16.gmra.mxu0 %v473
        %v4702 = vpop.f32.mrf.mxu0
        %v4703 = vadd.f32 %v4690, %v4702
        %v4704 = vpop.f32.mrf.mxu0
        %4705 = vdwg.mxu0
        %4706 = vmatpush.bf16.msra.mxu0 %v3659
        %4707 = vmatpush.bf16.msra.mxu0 %v3658
        %4708 = vmatpush.bf16.msra.mxu0 %v3657
        %4709 = vmatpush.bf16.msra.mxu0 %v3656
        %4710 = vmatpush.bf16.msra.mxu0 %v3655
        %4711 = vmatpush.bf16.msra.mxu0 %v3654
        %4712 = vmatpush.bf16.msra.mxu0 %v3653
        %4713 = vmatpush.bf16.msra.mxu0 %v3652
        %4714 = vmatmul.bf16.gmra.mxu0 %v474
        %v4715 = vpop.f32.mrf.mxu0
        %v4716 = vadd.f32 %v4703, %v4715
        %v4717 = vpop.f32.mrf.mxu0
        %4718 = vdwg.mxu0
        %4719 = vmatpush.bf16.msra.mxu0 %v3667
        %4720 = vmatpush.bf16.msra.mxu0 %v3666
        %4721 = vmatpush.bf16.msra.mxu0 %v3665
        %4722 = vmatpush.bf16.msra.mxu0 %v3664
        %4723 = vmatpush.bf16.msra.mxu0 %v3663
        %4724 = vmatpush.bf16.msra.mxu0 %v3662
        %4725 = vmatpush.bf16.msra.mxu0 %v3661
        %4726 = vmatpush.bf16.msra.mxu0 %v3660
        %4727 = vmatmul.bf16.gmra.mxu0 %v475
        %v4728 = vpop.f32.mrf.mxu0
        %v4729 = vadd.f32 %v4716, %v4728
        %v4730 = vpop.f32.mrf.mxu0
        %4731 = vdwg.mxu0
        %4732 = vmatpush.bf16.msra.mxu0 %v3675
        %4733 = vmatpush.bf16.msra.mxu0 %v3674
        %4734 = vmatpush.bf16.msra.mxu0 %v3673
        %4735 = vmatpush.bf16.msra.mxu0 %v3672
        %4736 = vmatpush.bf16.msra.mxu0 %v3671
        %4737 = vmatpush.bf16.msra.mxu0 %v3670
        %4738 = vmatpush.bf16.msra.mxu0 %v3669
        %4739 = vmatpush.bf16.msra.mxu0 %v3668
        %4740 = vmatmul.bf16.gmra.mxu0 %v476
        %v4741 = vpop.f32.mrf.mxu0
        %v4742 = vadd.f32 %v4729, %v4741
        %v4743 = vpop.f32.mrf.mxu0
        %4744 = vdwg.mxu0
        %4745 = vmatpush.bf16.msra.mxu0 %v3683
        %4746 = vmatpush.bf16.msra.mxu0 %v3682
        %4747 = vmatpush.bf16.msra.mxu0 %v3681
        %4748 = vmatpush.bf16.msra.mxu0 %v3680
        %4749 = vmatpush.bf16.msra.mxu0 %v3679
        %4750 = vmatpush.bf16.msra.mxu0 %v3678
        %4751 = vmatpush.bf16.msra.mxu0 %v3677
        %4752 = vmatpush.bf16.msra.mxu0 %v3676
        %4753 = vmatmul.bf16.gmra.mxu0 %v477
        %v4754 = vpop.f32.mrf.mxu0
        %v4755 = vadd.f32 %v4742, %v4754
        %v4756 = vpop.f32.mrf.mxu0
        %4757 = vdwg.mxu0
        %4758 = vmatpush.bf16.msra.mxu0 %v3691
        %4759 = vmatpush.bf16.msra.mxu0 %v3690
        %4760 = vmatpush.bf16.msra.mxu0 %v3689
        %4761 = vmatpush.bf16.msra.mxu0 %v3688
        %4762 = vmatpush.bf16.msra.mxu0 %v3687
        %4763 = vmatpush.bf16.msra.mxu0 %v3686
        %4764 = vmatpush.bf16.msra.mxu0 %v3685
        %4765 = vmatpush.bf16.msra.mxu0 %v3684
        %4766 = vmatmul.bf16.gmra.mxu0 %v478
        %v4767 = vpop.f32.mrf.mxu0
        %v4768 = vadd.f32 %v4755, %v4767
        %v4769 = vpop.f32.mrf.mxu0
        %4770 = vdwg.mxu0
        %4771 = vmatpush.bf16.msra.mxu0 %v3699
        %4772 = vmatpush.bf16.msra.mxu0 %v3698
        %4773 = vmatpush.bf16.msra.mxu0 %v3697
        %4774 = vmatpush.bf16.msra.mxu0 %v3696
        %4775 = vmatpush.bf16.msra.mxu0 %v3695
        %4776 = vmatpush.bf16.msra.mxu0 %v3694
        %4777 = vmatpush.bf16.msra.mxu0 %v3693
        %4778 = vmatpush.bf16.msra.mxu0 %v3692
        %4779 = vmatmul.bf16.gmra.mxu0 %v479
        %v4780 = vpop.f32.mrf.mxu0
        %v4781 = vadd.f32 %v4768, %v4780
        %v4782 = vpop.f32.mrf.mxu0
        %4783 = vdwg.mxu0
        %4784 = vmatpush.bf16.msra.mxu0 %v3707
        %4785 = vmatpush.bf16.msra.mxu0 %v3706
        %4786 = vmatpush.bf16.msra.mxu0 %v3705
        %4787 = vmatpush.bf16.msra.mxu0 %v3704
        %4788 = vmatpush.bf16.msra.mxu0 %v3703
        %4789 = vmatpush.bf16.msra.mxu0 %v3702
        %4790 = vmatpush.bf16.msra.mxu0 %v3701
        %4791 = vmatpush.bf16.msra.mxu0 %v3700
        %4792 = vmatmul.bf16.gmra.mxu0 %v480
        %v4793 = vpop.f32.mrf.mxu0
        %v4794 = vadd.f32 %v4781, %v4793
        %v4795 = vpop.f32.mrf.mxu0
        %4796 = vdwg.mxu0
        %4797 = vmatpush.bf16.msra.mxu0 %v3715
        %4798 = vmatpush.bf16.msra.mxu0 %v3714
        %4799 = vmatpush.bf16.msra.mxu0 %v3713
        %4800 = vmatpush.bf16.msra.mxu0 %v3712
        %4801 = vmatpush.bf16.msra.mxu0 %v3711
        %4802 = vmatpush.bf16.msra.mxu0 %v3710
        %4803 = vmatpush.bf16.msra.mxu0 %v3709
        %4804 = vmatpush.bf16.msra.mxu0 %v3708
        %4805 = vmatmul.bf16.gmra.mxu0 %v481
        %v4806 = vpop.f32.mrf.mxu0
        %v4807 = vadd.f32 %v4794, %v4806
        %v4808 = vpop.f32.mrf.mxu0
        %4809 = vdwg.mxu0
        %4810 = vmatpush.bf16.msra.mxu0 %v3723
        %4811 = vmatpush.bf16.msra.mxu0 %v3722
        %4812 = vmatpush.bf16.msra.mxu0 %v3721
        %4813 = vmatpush.bf16.msra.mxu0 %v3720
        %4814 = vmatpush.bf16.msra.mxu0 %v3719
        %4815 = vmatpush.bf16.msra.mxu0 %v3718
        %4816 = vmatpush.bf16.msra.mxu0 %v3717
        %4817 = vmatpush.bf16.msra.mxu0 %v3716
        %4818 = vmatmul.bf16.gmra.mxu0 %v482
        %v4819 = vpop.f32.mrf.mxu0
        %v4820 = vadd.f32 %v4807, %v4819
        %v4821 = vpop.f32.mrf.mxu0
        %4822 = vdwg.mxu0
        %4823 = vmatpush.bf16.msra.mxu0 %v3731
        %4824 = vmatpush.bf16.msra.mxu0 %v3730
        %4825 = vmatpush.bf16.msra.mxu0 %v3729
        %4826 = vmatpush.bf16.msra.mxu0 %v3728
        %4827 = vmatpush.bf16.msra.mxu0 %v3727
        %4828 = vmatpush.bf16.msra.mxu0 %v3726
        %4829 = vmatpush.bf16.msra.mxu0 %v3725
        %4830 = vmatpush.bf16.msra.mxu0 %v3724
        %4831 = vmatmul.bf16.gmra.mxu0 %v483
        %v4832 = vpop.f32.mrf.mxu0
        %v4833 = vadd.f32 %v4820, %v4832
        %v4834 = vpop.f32.mrf.mxu0
        %4835 = vdwg.mxu0
        %4836 = vmatpush.bf16.msra.mxu0 %v3739
        %4837 = vmatpush.bf16.msra.mxu0 %v3738
        %4838 = vmatpush.bf16.msra.mxu0 %v3737
        %4839 = vmatpush.bf16.msra.mxu0 %v3736
        %4840 = vmatpush.bf16.msra.mxu0 %v3735
        %4841 = vmatpush.bf16.msra.mxu0 %v3734
        %4842 = vmatpush.bf16.msra.mxu0 %v3733
        %4843 = vmatpush.bf16.msra.mxu0 %v3732
        %4844 = vmatmul.bf16.gmra.mxu0 %v484
        %v4845 = vpop.f32.mrf.mxu0
        %v4846 = vadd.f32 %v4833, %v4845
        %v4847 = vpop.f32.mrf.mxu0
        %4848 = vdwg.mxu0
        %4849 = vmatpush.bf16.msra.mxu0 %v3747
        %4850 = vmatpush.bf16.msra.mxu0 %v3746
        %4851 = vmatpush.bf16.msra.mxu0 %v3745
        %4852 = vmatpush.bf16.msra.mxu0 %v3744
        %4853 = vmatpush.bf16.msra.mxu0 %v3743
        %4854 = vmatpush.bf16.msra.mxu0 %v3742
        %4855 = vmatpush.bf16.msra.mxu0 %v3741
        %4856 = vmatpush.bf16.msra.mxu0 %v3740
        %4857 = vmatmul.bf16.gmra.mxu0 %v485
        %v4858 = vpop.f32.mrf.mxu0
        %v4859 = vadd.f32 %v4846, %v4858
        %v4860 = vpop.f32.mrf.mxu0
        %4861 = vdwg.mxu0
        %4862 = vmatpush.bf16.msra.mxu0 %v3755
        %4863 = vmatpush.bf16.msra.mxu0 %v3754
        %4864 = vmatpush.bf16.msra.mxu0 %v3753
        %4865 = vmatpush.bf16.msra.mxu0 %v3752
        %4866 = vmatpush.bf16.msra.mxu0 %v3751
        %4867 = vmatpush.bf16.msra.mxu0 %v3750
        %4868 = vmatpush.bf16.msra.mxu0 %v3749
        %4869 = vmatpush.bf16.msra.mxu0 %v3748
        %4870 = vmatmul.bf16.gmra.mxu0 %v486
        %v4871 = vpop.f32.mrf.mxu0
        %v4872 = vadd.f32 %v4859, %v4871
        %v4873 = vpop.f32.mrf.mxu0
        %4874 = vdwg.mxu0
        %4875 = vmatpush.bf16.msra.mxu0 %v3763
        %4876 = vmatpush.bf16.msra.mxu0 %v3762
        %4877 = vmatpush.bf16.msra.mxu0 %v3761
        %4878 = vmatpush.bf16.msra.mxu0 %v3760
        %4879 = vmatpush.bf16.msra.mxu0 %v3759
        %4880 = vmatpush.bf16.msra.mxu0 %v3758
        %4881 = vmatpush.bf16.msra.mxu0 %v3757
        %4882 = vmatpush.bf16.msra.mxu0 %v3756
        %4883 = vmatmul.bf16.gmra.mxu0 %v487
        %v4884 = vpop.f32.mrf.mxu0
        %v4885 = vadd.f32 %v4872, %v4884
        %v4886 = vpop.f32.mrf.mxu0
        %4887 = vdwg.mxu0
        %4888 = vmatpush.bf16.msra.mxu0 %v3771
        %4889 = vmatpush.bf16.msra.mxu0 %v3770
        %4890 = vmatpush.bf16.msra.mxu0 %v3769
        %4891 = vmatpush.bf16.msra.mxu0 %v3768
        %4892 = vmatpush.bf16.msra.mxu0 %v3767
        %4893 = vmatpush.bf16.msra.mxu0 %v3766
        %4894 = vmatpush.bf16.msra.mxu0 %v3765
        %4895 = vmatpush.bf16.msra.mxu0 %v3764
        %4896 = vmatmul.bf16.gmra.mxu0 %v488
        %v4897 = vpop.f32.mrf.mxu0
        %v4898 = vadd.f32 %v4885, %v4897
        %v4899 = vpop.f32.mrf.mxu0
        %4900 = vdwg.mxu0
        %4901 = vmatpush.bf16.msra.mxu0 %v3779
        %4902 = vmatpush.bf16.msra.mxu0 %v3778
        %4903 = vmatpush.bf16.msra.mxu0 %v3777
        %4904 = vmatpush.bf16.msra.mxu0 %v3776
        %4905 = vmatpush.bf16.msra.mxu0 %v3775
        %4906 = vmatpush.bf16.msra.mxu0 %v3774
        %4907 = vmatpush.bf16.msra.mxu0 %v3773
        %4908 = vmatpush.bf16.msra.mxu0 %v3772
        %4909 = vmatmul.bf16.gmra.mxu0 %v489
        %v4910 = vpop.f32.mrf.mxu0
        %v4911 = vadd.f32 %v4898, %v4910
        %v4912 = vpop.f32.mrf.mxu0
        %4913 = vdwg.mxu0
        %4914 = vmatpush.bf16.msra.mxu0 %v3787
        %4915 = vmatpush.bf16.msra.mxu0 %v3786
        %4916 = vmatpush.bf16.msra.mxu0 %v3785
        %4917 = vmatpush.bf16.msra.mxu0 %v3784
        %4918 = vmatpush.bf16.msra.mxu0 %v3783
        %4919 = vmatpush.bf16.msra.mxu0 %v3782
        %4920 = vmatpush.bf16.msra.mxu0 %v3781
        %4921 = vmatpush.bf16.msra.mxu0 %v3780
        %4922 = vmatmul.bf16.gmra.mxu0 %v490
        %v4923 = vpop.f32.mrf.mxu0
        %v4924 = vadd.f32 %v4911, %v4923
        %v4925 = vpop.f32.mrf.mxu0
        %4926 = vdwg.mxu0
        %4927 = vmatpush.bf16.msra.mxu0 %v3795
        %4928 = vmatpush.bf16.msra.mxu0 %v3794
        %4929 = vmatpush.bf16.msra.mxu0 %v3793
        %4930 = vmatpush.bf16.msra.mxu0 %v3792
        %4931 = vmatpush.bf16.msra.mxu0 %v3791
        %4932 = vmatpush.bf16.msra.mxu0 %v3790
        %4933 = vmatpush.bf16.msra.mxu0 %v3789
        %4934 = vmatpush.bf16.msra.mxu0 %v3788
        %4935 = vmatmul.bf16.gmra.mxu0 %v491
        %v4936 = vpop.f32.mrf.mxu0
        %v4937 = vadd.f32 %v4924, %v4936
        %v4938 = vpop.f32.mrf.mxu0
        %4939 = vdwg.mxu0
        %4940 = vmatpush.bf16.msra.mxu0 %v3803
        %4941 = vmatpush.bf16.msra.mxu0 %v3802
        %4942 = vmatpush.bf16.msra.mxu0 %v3801
        %4943 = vmatpush.bf16.msra.mxu0 %v3800
        %4944 = vmatpush.bf16.msra.mxu0 %v3799
        %4945 = vmatpush.bf16.msra.mxu0 %v3798
        %4946 = vmatpush.bf16.msra.mxu0 %v3797
        %4947 = vmatpush.bf16.msra.mxu0 %v3796
        %4948 = vmatmul.bf16.gmra.mxu0 %v492
        %v4949 = vpop.f32.mrf.mxu0
        %v4950 = vadd.f32 %v4937, %v4949
        %v4951 = vpop.f32.mrf.mxu0
        %4952 = vdwg.mxu0
        %4953 = vmatpush.bf16.msra.mxu0 %v3811
        %4954 = vmatpush.bf16.msra.mxu0 %v3810
        %4955 = vmatpush.bf16.msra.mxu0 %v3809
        %4956 = vmatpush.bf16.msra.mxu0 %v3808
        %4957 = vmatpush.bf16.msra.mxu0 %v3807
        %4958 = vmatpush.bf16.msra.mxu0 %v3806
        %4959 = vmatpush.bf16.msra.mxu0 %v3805
        %4960 = vmatpush.bf16.msra.mxu0 %v3804
        %4961 = vmatmul.bf16.gmra.mxu0 %v493
        %v4962 = vpop.f32.mrf.mxu0
        %v4963 = vadd.f32 %v4950, %v4962
        %v4964 = vpop.f32.mrf.mxu0
        %4965 = vdwg.mxu0
        %4966 = vmatpush.bf16.msra.mxu0 %v3819
        %4967 = vmatpush.bf16.msra.mxu0 %v3818
        %4968 = vmatpush.bf16.msra.mxu0 %v3817
        %4969 = vmatpush.bf16.msra.mxu0 %v3816
        %4970 = vmatpush.bf16.msra.mxu0 %v3815
        %4971 = vmatpush.bf16.msra.mxu0 %v3814
        %4972 = vmatpush.bf16.msra.mxu0 %v3813
        %4973 = vmatpush.bf16.msra.mxu0 %v3812
        %4974 = vmatmul.bf16.gmra.mxu0 %v494
        %v4975 = vpop.f32.mrf.mxu0
        %v4976 = vadd.f32 %v4963, %v4975
        %v4977 = vpop.f32.mrf.mxu0
        %4978 = vdwg.mxu0
        %4979 = vmatpush.bf16.msra.mxu0 %v3827
        %4980 = vmatpush.bf16.msra.mxu0 %v3826
        %4981 = vmatpush.bf16.msra.mxu0 %v3825
        %4982 = vmatpush.bf16.msra.mxu0 %v3824
        %4983 = vmatpush.bf16.msra.mxu0 %v3823
        %4984 = vmatpush.bf16.msra.mxu0 %v3822
        %4985 = vmatpush.bf16.msra.mxu0 %v3821
        %4986 = vmatpush.bf16.msra.mxu0 %v3820
        %4987 = vmatmul.bf16.gmra.mxu0 %v495
        %v4988 = vpop.f32.mrf.mxu0
        %v4989 = vadd.f32 %v4976, %v4988
        %v4990 = vpop.f32.mrf.mxu0
        %4991 = vdwg.mxu0
        %4992 = vmatpush.bf16.msra.mxu0 %v3835
        %4993 = vmatpush.bf16.msra.mxu0 %v3834
        %4994 = vmatpush.bf16.msra.mxu0 %v3833
        %4995 = vmatpush.bf16.msra.mxu0 %v3832
        %4996 = vmatpush.bf16.msra.mxu0 %v3831
        %4997 = vmatpush.bf16.msra.mxu0 %v3830
        %4998 = vmatpush.bf16.msra.mxu0 %v3829
        %4999 = vmatpush.bf16.msra.mxu0 %v3828
        %5000 = vmatmul.bf16.gmra.mxu0 %v496
        %v5001 = vpop.f32.mrf.mxu0
        %v5002 = vadd.f32 %v4989, %v5001
        %v5003 = vpop.f32.mrf.mxu0
        %5004 = vdwg.mxu0
        %5005 = vmatpush.bf16.msra.mxu0 %v3843
        %5006 = vmatpush.bf16.msra.mxu0 %v3842
        %5007 = vmatpush.bf16.msra.mxu0 %v3841
        %5008 = vmatpush.bf16.msra.mxu0 %v3840
        %5009 = vmatpush.bf16.msra.mxu0 %v3839
        %5010 = vmatpush.bf16.msra.mxu0 %v3838
        %5011 = vmatpush.bf16.msra.mxu0 %v3837
        %5012 = vmatpush.bf16.msra.mxu0 %v3836
        %5013 = vmatmul.bf16.gmra.mxu0 %v497
        %v5014 = vpop.f32.mrf.mxu0
        %v5015 = vadd.f32 %v5002, %v5014
        %v5016 = vpop.f32.mrf.mxu0
        %5017 = vdwg.mxu0
        %5018 = vmatpush.bf16.msra.mxu0 %v3851
        %5019 = vmatpush.bf16.msra.mxu0 %v3850
        %5020 = vmatpush.bf16.msra.mxu0 %v3849
        %5021 = vmatpush.bf16.msra.mxu0 %v3848
        %5022 = vmatpush.bf16.msra.mxu0 %v3847
        %5023 = vmatpush.bf16.msra.mxu0 %v3846
        %5024 = vmatpush.bf16.msra.mxu0 %v3845
        %5025 = vmatpush.bf16.msra.mxu0 %v3844
        %5026 = vmatmul.bf16.gmra.mxu0 %v498
        %v5027 = vpop.f32.mrf.mxu0
        %v5028 = vadd.f32 %v5015, %v5027
        %v5029 = vpop.f32.mrf.mxu0
        %5030 = vdwg.mxu0
        %5031 = vmatpush.bf16.msra.mxu0 %v3859
        %5032 = vmatpush.bf16.msra.mxu0 %v3858
        %5033 = vmatpush.bf16.msra.mxu0 %v3857
        %5034 = vmatpush.bf16.msra.mxu0 %v3856
        %5035 = vmatpush.bf16.msra.mxu0 %v3855
        %5036 = vmatpush.bf16.msra.mxu0 %v3854
        %5037 = vmatpush.bf16.msra.mxu0 %v3853
        %5038 = vmatpush.bf16.msra.mxu0 %v3852
        %5039 = vmatmul.bf16.gmra.mxu0 %v499
        %v5040 = vpop.f32.mrf.mxu0
        %v5041 = vadd.f32 %v5028, %v5040
        %v5042 = vpop.f32.mrf.mxu0
        %5043 = vdwg.mxu0
        %5044 = vmatpush.bf16.msra.mxu0 %v3867
        %5045 = vmatpush.bf16.msra.mxu0 %v3866
        %5046 = vmatpush.bf16.msra.mxu0 %v3865
        %5047 = vmatpush.bf16.msra.mxu0 %v3864
        %5048 = vmatpush.bf16.msra.mxu0 %v3863
        %5049 = vmatpush.bf16.msra.mxu0 %v3862
        %5050 = vmatpush.bf16.msra.mxu0 %v3861
        %5051 = vmatpush.bf16.msra.mxu0 %v3860
        %5052 = vmatmul.bf16.gmra.mxu0 %v500
        %v5053 = vpop.f32.mrf.mxu0
        %v5054 = vadd.f32 %v5041, %v5053
        %v5055 = vpop.f32.mrf.mxu0
        %5056 = vdwg.mxu0
        %5057 = vmatpush.bf16.msra.mxu0 %v3875
        %5058 = vmatpush.bf16.msra.mxu0 %v3874
        %5059 = vmatpush.bf16.msra.mxu0 %v3873
        %5060 = vmatpush.bf16.msra.mxu0 %v3872
        %5061 = vmatpush.bf16.msra.mxu0 %v3871
        %5062 = vmatpush.bf16.msra.mxu0 %v3870
        %5063 = vmatpush.bf16.msra.mxu0 %v3869
        %5064 = vmatpush.bf16.msra.mxu0 %v3868
        %5065 = vmatmul.bf16.gmra.mxu0 %v501
        %v5066 = vpop.f32.mrf.mxu0
        %v5067 = vadd.f32 %v5054, %v5066
        %v5068 = vpop.f32.mrf.mxu0
        %5069 = vdwg.mxu0
        %5070 = vmatpush.bf16.msra.mxu0 %v3883
        %5071 = vmatpush.bf16.msra.mxu0 %v3882
        %5072 = vmatpush.bf16.msra.mxu0 %v3881
        %5073 = vmatpush.bf16.msra.mxu0 %v3880
        %5074 = vmatpush.bf16.msra.mxu0 %v3879
        %5075 = vmatpush.bf16.msra.mxu0 %v3878
        %5076 = vmatpush.bf16.msra.mxu0 %v3877
        %5077 = vmatpush.bf16.msra.mxu0 %v3876
        %5078 = vmatmul.bf16.gmra.mxu0 %v502
        %v5079 = vpop.f32.mrf.mxu0
        %v5080 = vadd.f32 %v5067, %v5079
        %v5081 = vpop.f32.mrf.mxu0
        %5082 = vdwg.mxu0
        %5083 = vmatpush.bf16.msra.mxu0 %v3891
        %5084 = vmatpush.bf16.msra.mxu0 %v3890
        %5085 = vmatpush.bf16.msra.mxu0 %v3889
        %5086 = vmatpush.bf16.msra.mxu0 %v3888
        %5087 = vmatpush.bf16.msra.mxu0 %v3887
        %5088 = vmatpush.bf16.msra.mxu0 %v3886
        %5089 = vmatpush.bf16.msra.mxu0 %v3885
        %5090 = vmatpush.bf16.msra.mxu0 %v3884
        %5091 = vmatmul.bf16.gmra.mxu0 %v503
        %v5092 = vpop.f32.mrf.mxu0
        %v5093 = vadd.f32 %v5080, %v5092
        %v5094 = vpop.f32.mrf.mxu0
        %5095 = vdwg.mxu0
        %5096 = vmatpush.bf16.msra.mxu0 %v3899
        %5097 = vmatpush.bf16.msra.mxu0 %v3898
        %5098 = vmatpush.bf16.msra.mxu0 %v3897
        %5099 = vmatpush.bf16.msra.mxu0 %v3896
        %5100 = vmatpush.bf16.msra.mxu0 %v3895
        %5101 = vmatpush.bf16.msra.mxu0 %v3894
        %5102 = vmatpush.bf16.msra.mxu0 %v3893
        %5103 = vmatpush.bf16.msra.mxu0 %v3892
        %5104 = vmatmul.bf16.gmra.mxu0 %v504
        %v5105 = vpop.f32.mrf.mxu0
        %v5106 = vadd.f32 %v5093, %v5105
        %v5107 = vpop.f32.mrf.mxu0
        %5108 = vdwg.mxu0
        %5109 = vmatpush.bf16.msra.mxu0 %v3907
        %5110 = vmatpush.bf16.msra.mxu0 %v3906
        %5111 = vmatpush.bf16.msra.mxu0 %v3905
        %5112 = vmatpush.bf16.msra.mxu0 %v3904
        %5113 = vmatpush.bf16.msra.mxu0 %v3903
        %5114 = vmatpush.bf16.msra.mxu0 %v3902
        %5115 = vmatpush.bf16.msra.mxu0 %v3901
        %5116 = vmatpush.bf16.msra.mxu0 %v3900
        %5117 = vmatmul.bf16.gmra.mxu0 %v505
        %v5118 = vpop.f32.mrf.mxu0
        %v5119 = vadd.f32 %v5106, %v5118
        %v5120 = vpop.f32.mrf.mxu0
        %5121 = vdwg.mxu0
        %5122 = vmatpush.bf16.msra.mxu0 %v3915
        %5123 = vmatpush.bf16.msra.mxu0 %v3914
        %5124 = vmatpush.bf16.msra.mxu0 %v3913
        %5125 = vmatpush.bf16.msra.mxu0 %v3912
        %5126 = vmatpush.bf16.msra.mxu0 %v3911
        %5127 = vmatpush.bf16.msra.mxu0 %v3910
        %5128 = vmatpush.bf16.msra.mxu0 %v3909
        %5129 = vmatpush.bf16.msra.mxu0 %v3908
        %5130 = vmatmul.bf16.gmra.mxu0 %v506
        %v5131 = vpop.f32.mrf.mxu0
        %v5132 = vadd.f32 %v5119, %v5131
        %v5133 = vpop.f32.mrf.mxu0
        %5134 = vdwg.mxu0
        %5135 = vmatpush.bf16.msra.mxu0 %v3923
        %5136 = vmatpush.bf16.msra.mxu0 %v3922
        %5137 = vmatpush.bf16.msra.mxu0 %v3921
        %5138 = vmatpush.bf16.msra.mxu0 %v3920
        %5139 = vmatpush.bf16.msra.mxu0 %v3919
        %5140 = vmatpush.bf16.msra.mxu0 %v3918
        %5141 = vmatpush.bf16.msra.mxu0 %v3917
        %5142 = vmatpush.bf16.msra.mxu0 %v3916
        %5143 = vmatmul.bf16.gmra.mxu0 %v507
        %v5144 = vpop.f32.mrf.mxu0
        %v5145 = vadd.f32 %v5132, %v5144
        %v5146 = vpop.f32.mrf.mxu0
        %5147 = vdwg.mxu0
        %5148 = vmatpush.bf16.msra.mxu0 %v3931
        %5149 = vmatpush.bf16.msra.mxu0 %v3930
        %5150 = vmatpush.bf16.msra.mxu0 %v3929
        %5151 = vmatpush.bf16.msra.mxu0 %v3928
        %5152 = vmatpush.bf16.msra.mxu0 %v3927
        %5153 = vmatpush.bf16.msra.mxu0 %v3926
        %5154 = vmatpush.bf16.msra.mxu0 %v3925
        %5155 = vmatpush.bf16.msra.mxu0 %v3924
        %5156 = vmatmul.bf16.gmra.mxu0 %v508
        %v5157 = vpop.f32.mrf.mxu0
        %v5158 = vadd.f32 %v5145, %v5157
        %v5159 = vpop.f32.mrf.mxu0
        %5160 = vdwg.mxu0
        %5161 = vmatpush.bf16.msra.mxu0 %v3939
        %5162 = vmatpush.bf16.msra.mxu0 %v3938
        %5163 = vmatpush.bf16.msra.mxu0 %v3937
        %5164 = vmatpush.bf16.msra.mxu0 %v3936
        %5165 = vmatpush.bf16.msra.mxu0 %v3935
        %5166 = vmatpush.bf16.msra.mxu0 %v3934
        %5167 = vmatpush.bf16.msra.mxu0 %v3933
        %5168 = vmatpush.bf16.msra.mxu0 %v3932
        %5169 = vmatmul.bf16.gmra.mxu0 %v509
        %v5170 = vpop.f32.mrf.mxu0
        %v5171 = vadd.f32 %v5158, %v5170
        %v5172 = vpop.f32.mrf.mxu0
        %5173 = vdwg.mxu0
        %5174 = vmatpush.bf16.msra.mxu0 %v3947
        %5175 = vmatpush.bf16.msra.mxu0 %v3946
        %5176 = vmatpush.bf16.msra.mxu0 %v3945
        %5177 = vmatpush.bf16.msra.mxu0 %v3944
        %5178 = vmatpush.bf16.msra.mxu0 %v3943
        %5179 = vmatpush.bf16.msra.mxu0 %v3942
        %5180 = vmatpush.bf16.msra.mxu0 %v3941
        %5181 = vmatpush.bf16.msra.mxu0 %v3940
        %5182 = vmatmul.bf16.gmra.mxu0 %v510
        %v5183 = vpop.f32.mrf.mxu0
        %v5184 = vadd.f32 %v5171, %v5183
        %v5185 = vpop.f32.mrf.mxu0
        %5186 = vdwg.mxu0
        %5187 = vmatpush.bf16.msra.mxu0 %v3955
        %5188 = vmatpush.bf16.msra.mxu0 %v3954
        %5189 = vmatpush.bf16.msra.mxu0 %v3953
        %5190 = vmatpush.bf16.msra.mxu0 %v3952
        %5191 = vmatpush.bf16.msra.mxu0 %v3951
        %5192 = vmatpush.bf16.msra.mxu0 %v3950
        %5193 = vmatpush.bf16.msra.mxu0 %v3949
        %5194 = vmatpush.bf16.msra.mxu0 %v3948
        %5195 = vmatmul.bf16.gmra.mxu0 %v511
        %v5196 = vpop.f32.mrf.mxu0
        %v5197 = vadd.f32 %v5184, %v5196
        %v5198 = vpop.f32.mrf.mxu0
        %5199 = vdwg.mxu0
        %5200 = vmatpush.bf16.msra.mxu0 %v3963
        %5201 = vmatpush.bf16.msra.mxu0 %v3962
        %5202 = vmatpush.bf16.msra.mxu0 %v3961
        %5203 = vmatpush.bf16.msra.mxu0 %v3960
        %5204 = vmatpush.bf16.msra.mxu0 %v3959
        %5205 = vmatpush.bf16.msra.mxu0 %v3958
        %5206 = vmatpush.bf16.msra.mxu0 %v3957
        %5207 = vmatpush.bf16.msra.mxu0 %v3956
        %5208 = vmatmul.bf16.gmra.mxu0 %v512
        %v5209 = vpop.f32.mrf.mxu0
        %v5210 = vadd.f32 %v5197, %v5209
        %v5211 = vpop.f32.mrf.mxu0
        %5212 = vdwg.mxu0
        %5213 = vmatpush.bf16.msra.mxu0 %v3971
        %5214 = vmatpush.bf16.msra.mxu0 %v3970
        %5215 = vmatpush.bf16.msra.mxu0 %v3969
        %5216 = vmatpush.bf16.msra.mxu0 %v3968
        %5217 = vmatpush.bf16.msra.mxu0 %v3967
        %5218 = vmatpush.bf16.msra.mxu0 %v3966
        %5219 = vmatpush.bf16.msra.mxu0 %v3965
        %5220 = vmatpush.bf16.msra.mxu0 %v3964
        %5221 = vmatmul.bf16.gmra.mxu0 %v513
        %v5222 = vpop.f32.mrf.mxu0
        %v5223 = vadd.f32 %v5210, %v5222
        %v5224 = vpop.f32.mrf.mxu0
        %5225 = vdwg.mxu0
        %5226 = vmatpush.bf16.msra.mxu0 %v3979
        %5227 = vmatpush.bf16.msra.mxu0 %v3978
        %5228 = vmatpush.bf16.msra.mxu0 %v3977
        %5229 = vmatpush.bf16.msra.mxu0 %v3976
        %5230 = vmatpush.bf16.msra.mxu0 %v3975
        %5231 = vmatpush.bf16.msra.mxu0 %v3974
        %5232 = vmatpush.bf16.msra.mxu0 %v3973
        %5233 = vmatpush.bf16.msra.mxu0 %v3972
        %5234 = vmatmul.bf16.gmra.mxu0 %v514
        %v5235 = vpop.f32.mrf.mxu0
        %v5236 = vadd.f32 %v5223, %v5235
        %v5237 = vpop.f32.mrf.mxu0
        %5238 = vdwg.mxu0
        %5239 = vmatpush.bf16.msra.mxu0 %v3987
        %5240 = vmatpush.bf16.msra.mxu0 %v3986
        %5241 = vmatpush.bf16.msra.mxu0 %v3985
        %5242 = vmatpush.bf16.msra.mxu0 %v3984
        %5243 = vmatpush.bf16.msra.mxu0 %v3983
        %5244 = vmatpush.bf16.msra.mxu0 %v3982
        %5245 = vmatpush.bf16.msra.mxu0 %v3981
        %5246 = vmatpush.bf16.msra.mxu0 %v3980
        %5247 = vmatmul.bf16.gmra.mxu0 %v515
        %v5248 = vpop.f32.mrf.mxu0
        %v5249 = vadd.f32 %v5236, %v5248
        %v5250 = vpop.f32.mrf.mxu0
        %5251 = vdwg.mxu0
        %5252 = vmatpush.bf16.msra.mxu0 %v3995
        %5253 = vmatpush.bf16.msra.mxu0 %v3994
        %5254 = vmatpush.bf16.msra.mxu0 %v3993
        %5255 = vmatpush.bf16.msra.mxu0 %v3992
        %5256 = vmatpush.bf16.msra.mxu0 %v3991
        %5257 = vmatpush.bf16.msra.mxu0 %v3990
        %5258 = vmatpush.bf16.msra.mxu0 %v3989
        %5259 = vmatpush.bf16.msra.mxu0 %v3988
        %5260 = vmatmul.bf16.gmra.mxu0 %v516
        %v5261 = vpop.f32.mrf.mxu0
        %v5262 = vadd.f32 %v5249, %v5261
        %v5263 = vpop.f32.mrf.mxu0
        %5264 = vdwg.mxu0
        %5265 = vmatpush.bf16.msra.mxu0 %v4003
        %5266 = vmatpush.bf16.msra.mxu0 %v4002
        %5267 = vmatpush.bf16.msra.mxu0 %v4001
        %5268 = vmatpush.bf16.msra.mxu0 %v4000
        %5269 = vmatpush.bf16.msra.mxu0 %v3999
        %5270 = vmatpush.bf16.msra.mxu0 %v3998
        %5271 = vmatpush.bf16.msra.mxu0 %v3997
        %5272 = vmatpush.bf16.msra.mxu0 %v3996
        %5273 = vmatmul.bf16.gmra.mxu0 %v517
        %v5274 = vpop.f32.mrf.mxu0
        %v5275 = vadd.f32 %v5262, %v5274
        %v5276 = vpop.f32.mrf.mxu0
        %5277 = vdwg.mxu0
        %5278 = vmatpush.bf16.msra.mxu0 %v4011
        %5279 = vmatpush.bf16.msra.mxu0 %v4010
        %5280 = vmatpush.bf16.msra.mxu0 %v4009
        %5281 = vmatpush.bf16.msra.mxu0 %v4008
        %5282 = vmatpush.bf16.msra.mxu0 %v4007
        %5283 = vmatpush.bf16.msra.mxu0 %v4006
        %5284 = vmatpush.bf16.msra.mxu0 %v4005
        %5285 = vmatpush.bf16.msra.mxu0 %v4004
        %5286 = vmatmul.bf16.gmra.mxu0 %v518
        %v5287 = vpop.f32.mrf.mxu0
        %v5288 = vadd.f32 %v5275, %v5287
        %v5289 = vpop.f32.mrf.mxu0
        %5290 = vdwg.mxu0
        %5291 = vmatpush.bf16.msra.mxu0 %v4019
        %5292 = vmatpush.bf16.msra.mxu0 %v4018
        %5293 = vmatpush.bf16.msra.mxu0 %v4017
        %5294 = vmatpush.bf16.msra.mxu0 %v4016
        %5295 = vmatpush.bf16.msra.mxu0 %v4015
        %5296 = vmatpush.bf16.msra.mxu0 %v4014
        %5297 = vmatpush.bf16.msra.mxu0 %v4013
        %5298 = vmatpush.bf16.msra.mxu0 %v4012
        %5299 = vmatmul.bf16.gmra.mxu0 %v519
        %v5300 = vpop.f32.mrf.mxu0
        %v5301 = vadd.f32 %v5288, %v5300
        %v5302 = vpop.f32.mrf.mxu0
        %5303 = vdwg.mxu0
        %5304 = vmatpush.bf16.msra.mxu0 %v4027
        %5305 = vmatpush.bf16.msra.mxu0 %v4026
        %5306 = vmatpush.bf16.msra.mxu0 %v4025
        %5307 = vmatpush.bf16.msra.mxu0 %v4024
        %5308 = vmatpush.bf16.msra.mxu0 %v4023
        %5309 = vmatpush.bf16.msra.mxu0 %v4022
        %5310 = vmatpush.bf16.msra.mxu0 %v4021
        %5311 = vmatpush.bf16.msra.mxu0 %v4020
        %5312 = vmatmul.bf16.gmra.mxu0 %v520
        %v5313 = vpop.f32.mrf.mxu0
        %v5314 = vadd.f32 %v5301, %v5313
        %v5315 = vpop.f32.mrf.mxu0
        %5316 = vdwg.mxu0
        %5317 = vmatpush.bf16.msra.mxu0 %v4035
        %5318 = vmatpush.bf16.msra.mxu0 %v4034
        %5319 = vmatpush.bf16.msra.mxu0 %v4033
        %5320 = vmatpush.bf16.msra.mxu0 %v4032
        %5321 = vmatpush.bf16.msra.mxu0 %v4031
        %5322 = vmatpush.bf16.msra.mxu0 %v4030
        %5323 = vmatpush.bf16.msra.mxu0 %v4029
        %5324 = vmatpush.bf16.msra.mxu0 %v4028
        %5325 = vmatmul.bf16.gmra.mxu0 %v521
        %v5326 = vpop.f32.mrf.mxu0
        %v5327 = vadd.f32 %v5314, %v5326
        %v5328 = vpop.f32.mrf.mxu0
        %5329 = vdwg.mxu0
        %5330 = vmatpush.bf16.msra.mxu0 %v4043
        %5331 = vmatpush.bf16.msra.mxu0 %v4042
        %5332 = vmatpush.bf16.msra.mxu0 %v4041
        %5333 = vmatpush.bf16.msra.mxu0 %v4040
        %5334 = vmatpush.bf16.msra.mxu0 %v4039
        %5335 = vmatpush.bf16.msra.mxu0 %v4038
        %5336 = vmatpush.bf16.msra.mxu0 %v4037
        %5337 = vmatpush.bf16.msra.mxu0 %v4036
        %5338 = vmatmul.bf16.gmra.mxu0 %v522
        %v5339 = vpop.f32.mrf.mxu0
        %v5340 = vadd.f32 %v5327, %v5339
        %v5341 = vpop.f32.mrf.mxu0
        %5342 = vdwg.mxu0
        %5343 = vmatpush.bf16.msra.mxu0 %v4051
        %5344 = vmatpush.bf16.msra.mxu0 %v4050
        %5345 = vmatpush.bf16.msra.mxu0 %v4049
        %5346 = vmatpush.bf16.msra.mxu0 %v4048
        %5347 = vmatpush.bf16.msra.mxu0 %v4047
        %5348 = vmatpush.bf16.msra.mxu0 %v4046
        %5349 = vmatpush.bf16.msra.mxu0 %v4045
        %5350 = vmatpush.bf16.msra.mxu0 %v4044
        %5351 = vmatmul.bf16.gmra.mxu0 %v523
        %v5352 = vpop.f32.mrf.mxu0
        %v5353 = vadd.f32 %v5340, %v5352
        %v5354 = vpop.f32.mrf.mxu0
        %5355 = vdwg.mxu0
        %5356 = vmatpush.bf16.msra.mxu0 %v4059
        %5357 = vmatpush.bf16.msra.mxu0 %v4058
        %5358 = vmatpush.bf16.msra.mxu0 %v4057
        %5359 = vmatpush.bf16.msra.mxu0 %v4056
        %5360 = vmatpush.bf16.msra.mxu0 %v4055
        %5361 = vmatpush.bf16.msra.mxu0 %v4054
        %5362 = vmatpush.bf16.msra.mxu0 %v4053
        %5363 = vmatpush.bf16.msra.mxu0 %v4052
        %5364 = vmatmul.bf16.gmra.mxu0 %v524
        %v5365 = vpop.f32.mrf.mxu0
        %v5366 = vadd.f32 %v5353, %v5365
        %v5367 = vpop.f32.mrf.mxu0
        %5368 = vdwg.mxu0
        %5369 = vmatpush.bf16.msra.mxu0 %v4067
        %5370 = vmatpush.bf16.msra.mxu0 %v4066
        %5371 = vmatpush.bf16.msra.mxu0 %v4065
        %5372 = vmatpush.bf16.msra.mxu0 %v4064
        %5373 = vmatpush.bf16.msra.mxu0 %v4063
        %5374 = vmatpush.bf16.msra.mxu0 %v4062
        %5375 = vmatpush.bf16.msra.mxu0 %v4061
        %5376 = vmatpush.bf16.msra.mxu0 %v4060
        %5377 = vmatmul.bf16.gmra.mxu0 %v525
        %v5378 = vpop.f32.mrf.mxu0
        %v5379 = vadd.f32 %v5366, %v5378
        %v5380 = vpop.f32.mrf.mxu0
        %5381 = vdwg.mxu0
        %5382 = vmatpush.bf16.msra.mxu0 %v4075
        %5383 = vmatpush.bf16.msra.mxu0 %v4074
        %5384 = vmatpush.bf16.msra.mxu0 %v4073
        %5385 = vmatpush.bf16.msra.mxu0 %v4072
        %5386 = vmatpush.bf16.msra.mxu0 %v4071
        %5387 = vmatpush.bf16.msra.mxu0 %v4070
        %5388 = vmatpush.bf16.msra.mxu0 %v4069
        %5389 = vmatpush.bf16.msra.mxu0 %v4068
        %5390 = vmatmul.bf16.gmra.mxu0 %v526
        %v5391 = vpop.f32.mrf.mxu0
        %v5392 = vadd.f32 %v5379, %v5391
        %v5393 = vpop.f32.mrf.mxu0
        %5394 = vdwg.mxu0
        %5395 = vmatpush.bf16.msra.mxu0 %v4083
        %5396 = vmatpush.bf16.msra.mxu0 %v4082
        %5397 = vmatpush.bf16.msra.mxu0 %v4081
        %5398 = vmatpush.bf16.msra.mxu0 %v4080
        %5399 = vmatpush.bf16.msra.mxu0 %v4079
        %5400 = vmatpush.bf16.msra.mxu0 %v4078
        %5401 = vmatpush.bf16.msra.mxu0 %v4077
        %5402 = vmatpush.bf16.msra.mxu0 %v4076
        %5403 = vmatmul.bf16.gmra.mxu0 %v527
        %v5404 = vpop.f32.mrf.mxu0
        %v5405 = vadd.f32 %v5392, %v5404
        %v5406 = vpop.f32.mrf.mxu0
        %5407 = vdwg.mxu0
        %5408 = vmatpush.bf16.msra.mxu0 %v4091
        %5409 = vmatpush.bf16.msra.mxu0 %v4090
        %5410 = vmatpush.bf16.msra.mxu0 %v4089
        %5411 = vmatpush.bf16.msra.mxu0 %v4088
        %5412 = vmatpush.bf16.msra.mxu0 %v4087
        %5413 = vmatpush.bf16.msra.mxu0 %v4086
        %5414 = vmatpush.bf16.msra.mxu0 %v4085
        %5415 = vmatpush.bf16.msra.mxu0 %v4084
        %5416 = vmatmul.bf16.gmra.mxu0 %v528
        %v5417 = vpop.f32.mrf.mxu0
        %v5418 = vadd.f32 %v5405, %v5417
        %v5419 = vpop.f32.mrf.mxu0
        %5420 = vdwg.mxu0
        %5421 = vmatpush.bf16.msra.mxu0 %v4099
        %5422 = vmatpush.bf16.msra.mxu0 %v4098
        %5423 = vmatpush.bf16.msra.mxu0 %v4097
        %5424 = vmatpush.bf16.msra.mxu0 %v4096
        %5425 = vmatpush.bf16.msra.mxu0 %v4095
        %5426 = vmatpush.bf16.msra.mxu0 %v4094
        %5427 = vmatpush.bf16.msra.mxu0 %v4093
        %5428 = vmatpush.bf16.msra.mxu0 %v4092
        %5429 = vmatmul.bf16.gmra.mxu0 %v529
        %v5430 = vpop.f32.mrf.mxu0
        %v5431 = vadd.f32 %v5418, %v5430
        %v5432 = vpop.f32.mrf.mxu0
        %5433 = vdwg.mxu0
        %5434 = vmatpush.bf16.msra.mxu0 %v4107
        %5435 = vmatpush.bf16.msra.mxu0 %v4106
        %5436 = vmatpush.bf16.msra.mxu0 %v4105
        %5437 = vmatpush.bf16.msra.mxu0 %v4104
        %5438 = vmatpush.bf16.msra.mxu0 %v4103
        %5439 = vmatpush.bf16.msra.mxu0 %v4102
        %5440 = vmatpush.bf16.msra.mxu0 %v4101
        %5441 = vmatpush.bf16.msra.mxu0 %v4100
        %5442 = vmatmul.bf16.gmra.mxu0 %v530
        %v5443 = vpop.f32.mrf.mxu0
        %v5444 = vadd.f32 %v5431, %v5443
        %v5445 = vpop.f32.mrf.mxu0
        %5446 = vdwg.mxu0
        %5447 = vmatpush.bf16.msra.mxu0 %v4115
        %5448 = vmatpush.bf16.msra.mxu0 %v4114
        %5449 = vmatpush.bf16.msra.mxu0 %v4113
        %5450 = vmatpush.bf16.msra.mxu0 %v4112
        %5451 = vmatpush.bf16.msra.mxu0 %v4111
        %5452 = vmatpush.bf16.msra.mxu0 %v4110
        %5453 = vmatpush.bf16.msra.mxu0 %v4109
        %5454 = vmatpush.bf16.msra.mxu0 %v4108
        %5455 = vmatmul.bf16.gmra.mxu0 %v531
        %v5456 = vpop.f32.mrf.mxu0
        %v5457 = vadd.f32 %v5444, %v5456
        %v5458 = vpop.f32.mrf.mxu0
        %5459 = vdwg.mxu0
        %v5460 = vadd.f32 %v290, %v5457
        %5461 = vst [vmem:[#allocation2] sm:$0x3] %v5460
        %p5462 = scmp.eq.s32.totalorder %s21, 2
        // Predicated region
        $region57: #{routed_cnn_forward.5} parent=39 // pred_check
          %p5463 = pneg %p5462
        $region58: #{routed_cnn_forward.5} parent=39 // pred_check_branch
          %5465 = sbr.rel (%p5463) target = $region60
        $region59: #{routed_cnn_forward.5} parent=39 // pred_region
          %v5466 = vld [vmem:[#allocation2] sm:$0x3]
          %v5467 = vld [vmem:[#allocation6] sm:$0x1]
          %v5469 = vperm.slane %v5467, 0
          %v5471 = vadd.f32 %v5466, %v5469
          %v5472 = vmax.f32 %v5471, 0.0
          %v5473 = vld [vmem:[%s3] sm:$0xff]
          %v5474 = vld [vmem:[%s3 + $0x8] sm:$0xff]
          %v5475 = vld [vmem:[%s3 + $0x10] sm:$0xff]
          %v5476 = vld [vmem:[%s3 + $0x18] sm:$0xff]
          %v5477 = vld [vmem:[%s3 + $0x20] sm:$0xff]
          %v5478 = vld [vmem:[%s3 + $0x28] sm:$0xff]
          %v5479 = vld [vmem:[%s3 + $0x30] sm:$0xff]
          %v5480 = vld [vmem:[%s3 + $0x38] sm:$0xff]
          %v5481 = vld [vmem:[%s3 + $0x40] sm:$0xff]
          %v5482 = vld [vmem:[%s3 + $0x48] sm:$0xff]
          %v5483 = vld [vmem:[%s3 + $0x50] sm:$0xff]
          %v5484 = vld [vmem:[%s3 + $0x58] sm:$0xff]
          %v5485 = vld [vmem:[%s3 + $0x60] sm:$0xff]
          %v5486 = vld [vmem:[%s3 + $0x68] sm:$0xff]
          %v5487 = vld [vmem:[%s3 + $0x70] sm:$0xff]
          %v5488 = vld [vmem:[%s3 + $0x78] sm:$0xff]
          %v5489 = vld [vmem:[#allocation8] sm:$0x1]
          %v5491 = vperm.slane %v5489, 0
          %5493 = vmatpush.msra.mxu0 %v5488
          %5494 = vmatpush.msra.mxu0 %v5487
          %5495 = vmatpush.msra.mxu0 %v5486
          %5496 = vmatpush.msra.mxu0 %v5485
          %5497 = vmatpush.msra.mxu0 %v5484
          %5498 = vmatpush.msra.mxu0 %v5483
          %5499 = vmatpush.msra.mxu0 %v5482
          %5500 = vmatpush.msra.mxu0 %v5481
          %5501 = vmatpush.msra.mxu0 %v5480
          %5502 = vmatpush.msra.mxu0 %v5479
          %5503 = vmatpush.msra.mxu0 %v5478
          %5504 = vmatpush.msra.mxu0 %v5477
          %5505 = vmatpush.msra.mxu0 %v5476
          %5506 = vmatpush.msra.mxu0 %v5475
          %5507 = vmatpush.msra.mxu0 %v5474
          %5508 = vmatpush.msra.mxu0 %v5473
          %5509 = vmatmul.f32.gmra.mxu0 %v5472
          %v5510 = vpop.f32.mrf.mxu0
          %v5511 = vadd.f32 %v5491, %v5510
          %5512 = vdwg.mxu0
          %vm5513 = vcmask 74752
          %5514 = vst.msk [vmem:[#allocation9] sm:$0x3] %vm5513, %v5511
        $region60: #{routed_cnn_forward.5} parent=39 // pred_fallthru
          _
        // Predicated region
        $region61: #{routed_cnn_forward.5} parent=39 // pred_check
          %p5515 = pneg %p149
        $region62: #{routed_cnn_forward.5} parent=39 // pred_check_branch
          %5517 = sbr.rel (%p5515) target = $region64
        $region63: #{routed_cnn_forward.5} parent=39 // pred_region
          %5519 = vsyncadd [#allocation5], 0
          %s5521 = sshll.u32 [#allocation9], 4
          %s5522 = int_to_ptr.vmem [resolvable:$true] %s5521
          %s5523 = sshll.u32 %s5, 4
          %s5524 = int_to_ptr.hbm [resolvable:$true] %s5523
          %5526 = dma.vmem_to_hbm [thread:$0]  %s5522, 32, %s5524, [#allocation5]
        $region64: #{routed_cnn_forward.5} parent=39 // pred_fallthru
          _
        // Predicated region
        $region65: #{routed_cnn_forward.5} parent=39 // pred_check
          %p5527 = pneg %p149
        $region66: #{routed_cnn_forward.5} parent=39 // pred_check_branch
          %5529 = sbr.rel (%p5527) target = $region68
        $region67: #{routed_cnn_forward.5} parent=39 // pred_region
          %5531 = dma.done [#allocation5], 32
        $region68: #{routed_cnn_forward.5} parent=39 // pred_fallthru
          _
      $region40: #{routed_cnn_forward.5} parent=5 // pred_fallthru
        _
      %p5532 = scmp.le.s32.totalorder 2, %s16
      // Predicated region
      $region69: #{routed_cnn_forward.5} parent=5 // pred_check
        %p5533 = pneg %p5532
      $region70: #{routed_cnn_forward.5} parent=5 // pred_check_branch
        %5535 = sbr.rel (%p5533) target = $region72
      $region71: #{routed_cnn_forward.5} parent=5 // pred_region
        %s5536 = ssub.s32 %s16, 2
      $region72: #{routed_cnn_forward.5} parent=5 // pred_fallthru
        _
    $region6: #{routed_cnn_forward.5} parent=1 // loop_footer
      %s20 = sadd.s32 1, %s16
    $region7: #{routed_cnn_forward.5} parent=1 // loop_footer_branch
      %15 = sbr.rel target = $region3
    $region8: #{routed_cnn_forward.5} parent=1 // loop_exit
      _
    %5537 = vsyncpa [#allocation4], 1
    %s5538 = scalar_lea.sflag [#allocation4], 1
    %5539 = vsyncpa %s5538, 1
    %5540 = vsyncpa [#allocation7], 1
    %5541 = vsyncpa [#allocation5], 1
    %s5542 = scalar_lea.sflag [#allocation5], 1
    %5543 = vsyncpa %s5542, 1

</llo_original>
